<compile_context>
chip_gen: v7x
topology: tpu7x:2x2x1
jax: 0.10.0
libtpu: 0.0.40
codegen_flags: <defaults>
</compile_context>

<pallas_src>
import functools

import jax
import jax.numpy as jnp
from jax.experimental import pallas as pl
from jax.experimental.pallas import tpu as pltpu


def _layernorm(x, g, b, eps=1e-5):
    # matches torch.nn.LayerNorm (biased variance), computed in fp32
    mu = jnp.mean(x, axis=-1, keepdims=True)
    xc = x - mu
    var = jnp.mean(xc * xc, axis=-1, keepdims=True)
    return xc * jax.lax.rsqrt(var + eps) * g + b


def _residual_block_kernel(n_head,
                           x_ref,
                           ln1_g_ref, ln1_b_ref,
                           wqkv_ref, bqkv_ref,
                           wo_h_ref, bo_ref,
                           ln2_g_ref, ln2_b_ref,
                           wfc_ref, bfc_ref,
                           wproj_ref, bproj_ref,
                           out_ref):
    x = x_ref[...].astype(jnp.float32)                  # (L, D), batch dim squeezed
    L, D = x.shape
    Dh = D // n_head

    # ---- ln_1 (fp32, like the fp16-safe LayerNorm subclass) ----
    h = _layernorm(x, ln1_g_ref[...], ln1_b_ref[...])

    # ---- packed QKV in-projection: one full-width bf16 MXU GEMM with f32
    #      accumulation.  The 1/sqrt(Dh) query scale is pre-folded into
    #      w_qkv / b_qkv.  qkv is cast to bf16 exactly once; every per-head
    #      consumer below slices this single bf16 copy.
    qkv = jnp.dot(h.astype(jnp.bfloat16), wqkv_ref[...],
                  preferred_element_type=jnp.float32) + bqkv_ref[...]    # (L, 3D) f32
    qkv_bf = qkv.astype(jnp.bfloat16)

    # ---- per-head attention + fused out-projection accumulation ----
    # Static unroll over heads: only 2-D MXU dots, per-head (L, L) score
    # working set, no (H,L,Dh)/(H,L,L)/(H,L,D) materialization, no stacks.
    # TODO(synk): attn_mask is None in this configuration; an additive mask
    # would be `s = s + mask` (handle fully-masked rows before the approx
    # reciprocal).
    attn = jnp.zeros((L, D), jnp.float32)
    for hh in range(n_head):
        q = qkv_bf[:, hh * Dh:(hh + 1) * Dh]                 # (L, Dh) bf16
        k = qkv_bf[:, D + hh * Dh: D + (hh + 1) * Dh]
        v = qkv_bf[:, 2 * D + hh * Dh: 2 * D + (hh + 1) * Dh]

        # s = q @ k^T  (trans_b dot_general -> MXU, f32 accumulate)
        s = jax.lax.dot_general(q, k, (((1,), (1,)), ((), ())),
                                preferred_element_type=jnp.float32)      # (L, L) f32
        s = s - jnp.max(s, axis=-1, keepdims=True)
        p = jnp.exp(s)
        p = p * pl.reciprocal(jnp.sum(p, axis=-1, keepdims=True), approx=True)

        o = jnp.dot(p.astype(jnp.bfloat16), v,
                    preferred_element_type=jnp.float32)                  # (L, Dh) f32
        # out-projection slab for this head, accumulated into the f32 acc
        attn = attn + jnp.dot(o.astype(jnp.bfloat16), wo_h_ref[hh],
                              preferred_element_type=jnp.float32)        # (L, D) f32
    attn = attn + bo_ref[...]

    x1 = x + attn                                                        # residual 1 (f32)

    # ---- ln_2 + MLP: c_fc -> QuickGELU -> c_proj ----
    h2 = _layernorm(x1, ln2_g_ref[...], ln2_b_ref[...])
    f = jnp.dot(h2.astype(jnp.bfloat16), wfc_ref[...],
                preferred_element_type=jnp.float32) + bfc_ref[...]       # (L, 4D) f32
    f = f * jax.nn.sigmoid(1.702 * f)                                    # QuickGELU (f32)
    m = jnp.dot(f.astype(jnp.bfloat16), wproj_ref[...],
                preferred_element_type=jnp.float32) + bproj_ref[...]

    out_ref[...] = (x1 + m).astype(out_ref.dtype)                        # residual 2


def prepare_params(params, n_head, weight_dtype=jnp.bfloat16):
    """One-time conversion from PyTorch layout to kernel layout:
    pre-transposed weights, per-head out-projection slabs, the 1/sqrt(Dh)
    query scale folded into w_qkv/b_qkv, and bf16 weight storage."""
    D = params["w_out"].shape[0]
    Dh = D // n_head
    scale = 1.0 / (Dh ** 0.5)

    col_scale = jnp.concatenate([jnp.full((D,), scale, jnp.float32),
                                 jnp.ones((2 * D,), jnp.float32)])
    w_qkv_t = params["w_qkv"].T * col_scale[None, :]             # (D, 3D)
    b_qkv = params["b_qkv"] * col_scale                          # (3D,)
    wo_h = params["w_out"].T.reshape(n_head, Dh, D)              # (H, Dh, D)

    def row(v):
        return v.astype(jnp.float32).reshape(1, -1)

    return {
        "ln1_g": row(params["ln1_g"]), "ln1_b": row(params["ln1_b"]),
        "w_qkv": w_qkv_t.astype(weight_dtype), "b_qkv": row(b_qkv),
        "w_out_h": wo_h.astype(weight_dtype), "b_out": row(params["b_out"]),
        "ln2_g": row(params["ln2_g"]), "ln2_b": row(params["ln2_b"]),
        "w_fc": params["w_fc"].T.astype(weight_dtype), "b_fc": row(params["b_fc"]),
        "w_proj": params["w_proj"].T.astype(weight_dtype), "b_proj": row(params["b_proj"]),
    }


def _vmem_limit_bytes(L, D, weight_bytes, x_itemsize, weight_buffers):
    """Footprint-based VMEM limit with a generation-aware ceiling."""
    io_tiles = 2 * 2 * L * D * x_itemsize          # x + out tiles, double-buffered
    qkv = L * 3 * D * (4 + 2)                      # f32 qkv + single bf16 copy
    scores = 3 * L * L * 4                         # per-head s / p working set (f32)
    mlp = L * 4 * D * (4 + 2)                      # f32 c_fc activation + bf16 copy
    misc = 8 * L * D * 4                           # h, x1, attn accumulator, slack
    need = weight_buffers * weight_bytes + io_tiles + qkv + scores + mlp + misc
    try:
        phys = int(getattr(pltpu.get_tpu_info(), "vmem_capacity_bytes", 0)) or (64 << 20)
    except Exception:                              # pragma: no cover - defensive
        phys = 64 << 20                            # assume the smallest (v7x per-core)
    ceiling = int(phys * 0.85)                     # ~109 MiB on v5e/v6e, ~54 MiB on v7x
    return int(min(max(need, 16 << 20), ceiling))


def residual_attention_block_nld(xb, prepared, n_head):
    """xb: (N, L, D); returns (N, L, D).  One grid step per batch element."""
    N, L, D = xb.shape
    assert D % n_head == 0

    ins = (
        xb,
        prepared["ln1_g"], prepared["ln1_b"],
        prepared["w_qkv"], prepared["b_qkv"],
        prepared["w_out_h"], prepared["b_out"],
        prepared["ln2_g"], prepared["ln2_b"],
        prepared["w_fc"], prepared["b_fc"],
        prepared["w_proj"], prepared["b_proj"],
    )
    weight_bytes = sum(a.size * a.dtype.itemsize for a in ins[1:])

    def build(single_buffer_weights):
        # Grid-invariant weights/biases: full-array blocks with a constant
        # index map (DMA'd once, resident across the batch grid); single
        # buffering halves their VMEM footprint.
        def weight_spec(a):
            nd = a.ndim
            idx = lambda b, _nd=nd: (0,) * _nd
            if single_buffer_weights:
                return pl.BlockSpec(a.shape, idx, pipeline_mode=pl.Buffered(1))
            return pl.BlockSpec(a.shape, idx)

        x_spec = pl.BlockSpec((pl.Squeezed(), L, D), lambda b: (b, 0, 0))
        out_spec = pl.BlockSpec((pl.Squeezed(), L, D), lambda b: (b, 0, 0))
        in_specs = [x_spec] + [weight_spec(a) for a in ins[1:]]

        vmem_limit = _vmem_limit_bytes(
            L, D, weight_bytes, xb.dtype.itemsize,
            1 if single_buffer_weights else 2)

        return pl.pallas_call(
            functools.partial(_residual_block_kernel, n_head),
            out_shape=jax.ShapeDtypeStruct((N, L, D), xb.dtype),
            grid=(N,),
            in_specs=in_specs,
            out_specs=out_spec,
            compiler_params=pltpu.CompilerParams(
                dimension_semantics=("parallel",),
                vmem_limit_bytes=vmem_limit),
        )

    try:
        return build(True)(*ins)
    except Exception:
        # TODO(synk): pipeline_mode=pl.Buffered(1) not supported on this jax
        # version -- fall back to default (double-buffered) weight specs.
        return build(False)(*ins)


def residual_attention_block(x, prepared, n_head):
    """x: (L, N, D) float32 (PyTorch MultiheadAttention convention)."""
    # TODO(synk): when stacking several blocks, keep activations in (N, L, D)
    # between layers (call residual_attention_block_nld directly) to avoid the
    # per-layer transposes below.
    xb = jnp.transpose(x, (1, 0, 2))                     # (N, L, D)
    out = residual_attention_block_nld(xb, prepared, n_head)
    return jnp.transpose(out, (1, 0, 2))                 # back to (L, N, D)


def _reference(x, params, n_head):
    """Pure-JAX f32 reference with PyTorch-layout params (semantic ground truth)."""
    L, N, D = x.shape
    Dh = D // n_head
    out = []
    for n in range(N):
        xi = x[:, n, :]
        h = _layernorm(xi, params["ln1_g"], params["ln1_b"])
        qkv = h @ params["w_qkv"].T + params["b_qkv"]
        q, k, v = qkv[:, :D], qkv[:, D:2 * D], qkv[:, 2 * D:]
        heads = []
        for hh in range(n_head):
            sl = slice(hh * Dh, (hh + 1) * Dh)
            s = (q[:, sl] / (Dh ** 0.5)) @ k[:, sl].T
            p = jax.nn.softmax(s, axis=-1)
            heads.append(p @ v[:, sl])
        attn = jnp.concatenate(heads, axis=-1) @ params["w_out"].T + params["b_out"]
        x1 = xi + attn
        h2 = _layernorm(x1, params["ln2_g"], params["ln2_b"])
        f = h2 @ params["w_fc"].T + params["b_fc"]
        f = f * jax.nn.sigmoid(1.702 * f)
        out.append(x1 + f @ params["w_proj"].T + params["b_proj"])
    return jnp.stack(out, axis=1)


def _init_params(key, d_model):
    """Parameters in the original PyTorch layout."""
    ks = jax.random.split(key, 5)
    s = 0.02
    return {
        "ln1_g": jnp.ones((d_model,), jnp.float32),
        "ln1_b": jnp.zeros((d_model,), jnp.float32),
        "w_qkv": s * jax.random.normal(ks[0], (3 * d_model, d_model), jnp.float32),
        "b_qkv": jnp.zeros((3 * d_model,), jnp.float32),
        "w_out": s * jax.random.normal(ks[1], (d_model, d_model), jnp.float32),
        "b_out": jnp.zeros((d_model,), jnp.float32),
        "ln2_g": jnp.ones((d_model,), jnp.float32),
        "ln2_b": jnp.zeros((d_model,), jnp.float32),
        "w_fc": s * jax.random.normal(ks[2], (4 * d_model, d_model), jnp.float32),
        "b_fc": s * jax.random.normal(ks[3], (4 * d_model,), jnp.float32),
        "w_proj": s * jax.random.normal(ks[4], (d_model, 4 * d_model), jnp.float32),
        "b_proj": jnp.zeros((d_model,), jnp.float32),
    }


def _run_case(key, L, N, D, H, atol, rtol):
    kx, kp = jax.random.split(key)
    x = jax.random.normal(kx, (L, N, D), jnp.float32)    # (seq, batch, d_model)
    params = _init_params(kp, D)
    prepared = prepare_params(params, H)                 # one-time layout/dtype prep

    y = residual_attention_block(x, prepared, H)
    y = jax.block_until_ready(y)

    y_ref = _reference(x, params, H)
    assert y.shape == (L, N, D)
    # bf16 matmul operands (f32 accumulation) + approx softmax reciprocal vs.
    # the f32 reference -> small-but-nonzero tolerance.
    err = float(jnp.max(jnp.abs(y - y_ref)))
    assert jnp.allclose(y, y_ref, atol=atol, rtol=rtol), err


if __name__ == "__main__":
    key = jax.random.PRNGKey(0)
    k1, k2 = jax.random.split(key)

    # tiny smoke test (seq=8, batch=2, d_model=32, heads=4)
    _run_case(k1, L=8, N=2, D=32, H=4, atol=3e-3, rtol=3e-3)

    # (8,128)-tile-shaped test with the real CLIP head dim (Dh=64) to catch
    # per-head slicing / layout bugs that tiny shapes can hide.
    _run_case(k2, L=128, N=2, D=256, H=4, atol=1e-2, rtol=1e-2)

    print("KERNEL_OK")
</pallas_src>

<mosaic_0001>
module attributes {stable_mosaic.version = 11 : i64} {
  func.func @_residual_block_kernel(%arg0: i32, %arg1: memref<1x8x32xf32, #tpu.memory_space<vmem>>, %arg2: memref<1x32xf32, #tpu.memory_space<vmem>>, %arg3: memref<1x32xf32, #tpu.memory_space<vmem>>, %arg4: memref<32x96xbf16, #tpu.memory_space<vmem>>, %arg5: memref<1x96xf32, #tpu.memory_space<vmem>>, %arg6: memref<4x8x32xbf16, #tpu.memory_space<vmem>>, %arg7: memref<1x32xf32, #tpu.memory_space<vmem>>, %arg8: memref<1x32xf32, #tpu.memory_space<vmem>>, %arg9: memref<1x32xf32, #tpu.memory_space<vmem>>, %arg10: memref<32x128xbf16, #tpu.memory_space<vmem>>, %arg11: memref<1x128xf32, #tpu.memory_space<vmem>>, %arg12: memref<128x32xbf16, #tpu.memory_space<vmem>>, %arg13: memref<1x32xf32, #tpu.memory_space<vmem>>, %arg14: memref<1x8x32xf32, #tpu.memory_space<vmem>>) attributes {dimension_semantics = [#tpu.dimension_semantics<parallel>], iteration_bounds = array<i64: 2>, scalar_prefetch = 0 : i64, scratch_operands = 0 : i64, tpu.core_type = #tpu.core_type<tc>, window_params = [{transform_indices = @transform_0, window_bounds = array<i64: 1, 8, 32>}, {pipeline_mode = #tpu.pipeline_mode<synchronous>, transform_indices = @transform_1, window_bounds = array<i64: 1, 32>}, {pipeline_mode = #tpu.pipeline_mode<synchronous>, transform_indices = @transform_2, window_bounds = array<i64: 1, 32>}, {pipeline_mode = #tpu.pipeline_mode<synchronous>, transform_indices = @transform_3, window_bounds = array<i64: 32, 96>}, {pipeline_mode = #tpu.pipeline_mode<synchronous>, transform_indices = @transform_4, window_bounds = array<i64: 1, 96>}, {pipeline_mode = #tpu.pipeline_mode<synchronous>, transform_indices = @transform_5, window_bounds = array<i64: 4, 8, 32>}, {pipeline_mode = #tpu.pipeline_mode<synchronous>, transform_indices = @transform_6, window_bounds = array<i64: 1, 32>}, {pipeline_mode = #tpu.pipeline_mode<synchronous>, transform_indices = @transform_7, window_bounds = array<i64: 1, 32>}, {pipeline_mode = #tpu.pipeline_mode<synchronous>, transform_indices = @transform_8, window_bounds = array<i64: 1, 32>}, {pipeline_mode = #tpu.pipeline_mode<synchronous>, transform_indices = @transform_9, window_bounds = array<i64: 32, 128>}, {pipeline_mode = #tpu.pipeline_mode<synchronous>, transform_indices = @transform_10, window_bounds = array<i64: 1, 128>}, {pipeline_mode = #tpu.pipeline_mode<synchronous>, transform_indices = @transform_11, window_bounds = array<i64: 128, 32>}, {pipeline_mode = #tpu.pipeline_mode<synchronous>, transform_indices = @transform_12, window_bounds = array<i64: 1, 32>}, {transform_indices = @transform_13, window_bounds = array<i64: 1, 8, 32>}]} {
    %c0 = arith.constant 0 : index
    %c0_0 = arith.constant 0 : index
    %c0_1 = arith.constant 0 : index
    %0 = vector.load %arg1[%c0, %c0_0, %c0_1] : memref<1x8x32xf32, #tpu.memory_space<vmem>>, vector<1x8x32xf32>
    %1 = vector.shape_cast %0 : vector<1x8x32xf32> to vector<8x32xf32>
    %c0_2 = arith.constant 0 : index
    %c0_3 = arith.constant 0 : index
    %2 = vector.load %arg2[%c0_2, %c0_3] : memref<1x32xf32, #tpu.memory_space<vmem>>, vector<1x32xf32>
    %c0_4 = arith.constant 0 : index
    %c0_5 = arith.constant 0 : index
    %3 = vector.load %arg3[%c0_4, %c0_5] : memref<1x32xf32, #tpu.memory_space<vmem>>, vector<1x32xf32>
    %cst = arith.constant dense<0.000000e+00> : vector<8xf32>
    %4 = vector.multi_reduction <add>, %1, %cst [1] : vector<8x32xf32> to vector<8xf32>
    %5 = vector.shape_cast %4 : vector<8xf32> to vector<8x1xf32>
    %cst_6 = arith.constant 3.200000e+01 : f32
    %6 = vector.broadcast %cst_6 : f32 to vector<8x1xf32>
    %7 = arith.divf %5, %6 : vector<8x1xf32>
    %8 = vector.broadcast %7 : vector<8x1xf32> to vector<8x32xf32>
    %9 = arith.subf %1, %8 : vector<8x32xf32>
    %10 = arith.mulf %9, %9 : vector<8x32xf32>
    %cst_7 = arith.constant dense<0.000000e+00> : vector<8xf32>
    %11 = vector.multi_reduction <add>, %10, %cst_7 [1] : vector<8x32xf32> to vector<8xf32>
    %12 = vector.shape_cast %11 : vector<8xf32> to vector<8x1xf32>
    %cst_8 = arith.constant 3.200000e+01 : f32
    %13 = vector.broadcast %cst_8 : f32 to vector<8x1xf32>
    %14 = arith.divf %12, %13 : vector<8x1xf32>
    %cst_9 = arith.constant 9.99999974E-6 : f32
    %15 = vector.broadcast %cst_9 : f32 to vector<8x1xf32>
    %16 = arith.addf %14, %15 : vector<8x1xf32>
    %17 = math.rsqrt %16 : vector<8x1xf32>
    %18 = vector.broadcast %17 : vector<8x1xf32> to vector<8x32xf32>
    %19 = arith.mulf %9, %18 : vector<8x32xf32>
    %20 = vector.broadcast %2 : vector<1x32xf32> to vector<8x32xf32>
    %21 = arith.mulf %19, %20 : vector<8x32xf32>
    %22 = vector.broadcast %3 : vector<1x32xf32> to vector<8x32xf32>
    %23 = arith.addf %21, %22 : vector<8x32xf32>
    %24 = arith.truncf %23 : vector<8x32xf32> to vector<8x32xbf16>
    %c0_10 = arith.constant 0 : index
    %c0_11 = arith.constant 0 : index
    %25 = vector.load %arg4[%c0_10, %c0_11] : memref<32x96xbf16, #tpu.memory_space<vmem>>, vector<32x96xbf16>
    %cst_12 = arith.constant dense<0.000000e+00> : vector<8x96xf32>
    %26 = tpu.matmul %24, %25, %cst_12 {dimension_numbers = #tpu.dot_dimension_numbers<[1], [0], [0], [1], [0, 0, 1, 1], [], []>} : vector<8x32xbf16>, vector<32x96xbf16>, vector<8x96xf32> -> vector<8x96xf32>
    %c0_13 = arith.constant 0 : index
    %c0_14 = arith.constant 0 : index
    %27 = vector.load %arg5[%c0_13, %c0_14] : memref<1x96xf32, #tpu.memory_space<vmem>>, vector<1x96xf32>
    %28 = vector.broadcast %27 : vector<1x96xf32> to vector<8x96xf32>
    %29 = arith.addf %26, %28 : vector<8x96xf32>
    %30 = arith.truncf %29 : vector<8x96xf32> to vector<8x96xbf16>
    %cst_15 = arith.constant 0.000000e+00 : f32
    %31 = vector.broadcast %cst_15 : f32 to vector<8x32xf32>
    %32 = vector.extract_strided_slice %30 {offsets = [0, 0], sizes = [8, 8], strides = [1, 1]} : vector<8x96xbf16> to vector<8x8xbf16>
    %33 = vector.extract_strided_slice %30 {offsets = [0, 32], sizes = [8, 8], strides = [1, 1]} : vector<8x96xbf16> to vector<8x8xbf16>
    %34 = vector.extract_strided_slice %30 {offsets = [0, 64], sizes = [8, 8], strides = [1, 1]} : vector<8x96xbf16> to vector<8x8xbf16>
    %cst_16 = arith.constant dense<0.000000e+00> : vector<8x8xf32>
    %35 = tpu.matmul %32, %33, %cst_16 {dimension_numbers = #tpu.dot_dimension_numbers<[1], [1], [0], [0], [0, 0, 1, 0], [], []>} : vector<8x8xbf16>, vector<8x8xbf16>, vector<8x8xf32> -> vector<8x8xf32>
    %cst_17 = arith.constant dense<0xFF800000> : vector<8xf32>
    %36 = vector.multi_reduction <maximumf>, %35, %cst_17 [1] : vector<8x8xf32> to vector<8xf32>
    %37 = vector.shape_cast %36 : vector<8xf32> to vector<8x1xf32>
    %38 = vector.broadcast %37 : vector<8x1xf32> to vector<8x8xf32>
    %39 = arith.subf %35, %38 : vector<8x8xf32>
    %40 = math.exp %39 : vector<8x8xf32>
    %cst_18 = arith.constant dense<0.000000e+00> : vector<8xf32>
    %41 = vector.multi_reduction <add>, %40, %cst_18 [1] : vector<8x8xf32> to vector<8xf32>
    %42 = vector.shape_cast %41 : vector<8xf32> to vector<8x1xf32>
    %43 = tpu.reciprocal %42 {approx = true} : vector<8x1xf32> -> vector<8x1xf32>
    %44 = vector.broadcast %43 : vector<8x1xf32> to vector<8x8xf32>
    %45 = arith.mulf %40, %44 : vector<8x8xf32>
    %46 = arith.truncf %45 : vector<8x8xf32> to vector<8x8xbf16>
    %cst_19 = arith.constant dense<0.000000e+00> : vector<8x8xf32>
    %47 = tpu.matmul %46, %34, %cst_19 {dimension_numbers = #tpu.dot_dimension_numbers<[1], [0], [0], [1], [0, 0, 1, 1], [], []>} : vector<8x8xbf16>, vector<8x8xbf16>, vector<8x8xf32> -> vector<8x8xf32>
    %48 = arith.truncf %47 : vector<8x8xf32> to vector<8x8xbf16>
    %c0_20 = arith.constant 0 : index
    %c0_21 = arith.constant 0 : index
    %c0_22 = arith.constant 0 : index
    %49 = vector.load %arg6[%c0_20, %c0_21, %c0_22] : memref<4x8x32xbf16, #tpu.memory_space<vmem>>, vector<1x8x32xbf16>
    %50 = vector.shape_cast %49 : vector<1x8x32xbf16> to vector<8x32xbf16>
    %cst_23 = arith.constant dense<0.000000e+00> : vector<8x32xf32>
    %51 = tpu.matmul %48, %50, %cst_23 {dimension_numbers = #tpu.dot_dimension_numbers<[1], [0], [0], [1], [0, 0, 1, 1], [], []>} : vector<8x8xbf16>, vector<8x32xbf16>, vector<8x32xf32> -> vector<8x32xf32>
    %52 = arith.addf %31, %51 : vector<8x32xf32>
    %53 = vector.extract_strided_slice %30 {offsets = [0, 8], sizes = [8, 8], strides = [1, 1]} : vector<8x96xbf16> to vector<8x8xbf16>
    %54 = vector.extract_strided_slice %30 {offsets = [0, 40], sizes = [8, 8], strides = [1, 1]} : vector<8x96xbf16> to vector<8x8xbf16>
    %55 = vector.extract_strided_slice %30 {offsets = [0, 72], sizes = [8, 8], strides = [1, 1]} : vector<8x96xbf16> to vector<8x8xbf16>
    %cst_24 = arith.constant dense<0.000000e+00> : vector<8x8xf32>
    %56 = tpu.matmul %53, %54, %cst_24 {dimension_numbers = #tpu.dot_dimension_numbers<[1], [1], [0], [0], [0, 0, 1, 0], [], []>} : vector<8x8xbf16>, vector<8x8xbf16>, vector<8x8xf32> -> vector<8x8xf32>
    %cst_25 = arith.constant dense<0xFF800000> : vector<8xf32>
    %57 = vector.multi_reduction <maximumf>, %56, %cst_25 [1] : vector<8x8xf32> to vector<8xf32>
    %58 = vector.shape_cast %57 : vector<8xf32> to vector<8x1xf32>
    %59 = vector.broadcast %58 : vector<8x1xf32> to vector<8x8xf32>
    %60 = arith.subf %56, %59 : vector<8x8xf32>
    %61 = math.exp %60 : vector<8x8xf32>
    %cst_26 = arith.constant dense<0.000000e+00> : vector<8xf32>
    %62 = vector.multi_reduction <add>, %61, %cst_26 [1] : vector<8x8xf32> to vector<8xf32>
    %63 = vector.shape_cast %62 : vector<8xf32> to vector<8x1xf32>
    %64 = tpu.reciprocal %63 {approx = true} : vector<8x1xf32> -> vector<8x1xf32>
    %65 = vector.broadcast %64 : vector<8x1xf32> to vector<8x8xf32>
    %66 = arith.mulf %61, %65 : vector<8x8xf32>
    %67 = arith.truncf %66 : vector<8x8xf32> to vector<8x8xbf16>
    %cst_27 = arith.constant dense<0.000000e+00> : vector<8x8xf32>
    %68 = tpu.matmul %67, %55, %cst_27 {dimension_numbers = #tpu.dot_dimension_numbers<[1], [0], [0], [1], [0, 0, 1, 1], [], []>} : vector<8x8xbf16>, vector<8x8xbf16>, vector<8x8xf32> -> vector<8x8xf32>
    %69 = arith.truncf %68 : vector<8x8xf32> to vector<8x8xbf16>
    %c1 = arith.constant 1 : index
    %c0_28 = arith.constant 0 : index
    %c0_29 = arith.constant 0 : index
    %70 = vector.load %arg6[%c1, %c0_28, %c0_29] : memref<4x8x32xbf16, #tpu.memory_space<vmem>>, vector<1x8x32xbf16>
    %71 = vector.shape_cast %70 : vector<1x8x32xbf16> to vector<8x32xbf16>
    %cst_30 = arith.constant dense<0.000000e+00> : vector<8x32xf32>
    %72 = tpu.matmul %69, %71, %cst_30 {dimension_numbers = #tpu.dot_dimension_numbers<[1], [0], [0], [1], [0, 0, 1, 1], [], []>} : vector<8x8xbf16>, vector<8x32xbf16>, vector<8x32xf32> -> vector<8x32xf32>
    %73 = arith.addf %52, %72 : vector<8x32xf32>
    %74 = vector.extract_strided_slice %30 {offsets = [0, 16], sizes = [8, 8], strides = [1, 1]} : vector<8x96xbf16> to vector<8x8xbf16>
    %75 = vector.extract_strided_slice %30 {offsets = [0, 48], sizes = [8, 8], strides = [1, 1]} : vector<8x96xbf16> to vector<8x8xbf16>
    %76 = vector.extract_strided_slice %30 {offsets = [0, 80], sizes = [8, 8], strides = [1, 1]} : vector<8x96xbf16> to vector<8x8xbf16>
    %cst_31 = arith.constant dense<0.000000e+00> : vector<8x8xf32>
    %77 = tpu.matmul %74, %75, %cst_31 {dimension_numbers = #tpu.dot_dimension_numbers<[1], [1], [0], [0], [0, 0, 1, 0], [], []>} : vector<8x8xbf16>, vector<8x8xbf16>, vector<8x8xf32> -> vector<8x8xf32>
    %cst_32 = arith.constant dense<0xFF800000> : vector<8xf32>
    %78 = vector.multi_reduction <maximumf>, %77, %cst_32 [1] : vector<8x8xf32> to vector<8xf32>
    %79 = vector.shape_cast %78 : vector<8xf32> to vector<8x1xf32>
    %80 = vector.broadcast %79 : vector<8x1xf32> to vector<8x8xf32>
    %81 = arith.subf %77, %80 : vector<8x8xf32>
    %82 = math.exp %81 : vector<8x8xf32>
    %cst_33 = arith.constant dense<0.000000e+00> : vector<8xf32>
    %83 = vector.multi_reduction <add>, %82, %cst_33 [1] : vector<8x8xf32> to vector<8xf32>
    %84 = vector.shape_cast %83 : vector<8xf32> to vector<8x1xf32>
    %85 = tpu.reciprocal %84 {approx = true} : vector<8x1xf32> -> vector<8x1xf32>
    %86 = vector.broadcast %85 : vector<8x1xf32> to vector<8x8xf32>
    %87 = arith.mulf %82, %86 : vector<8x8xf32>
    %88 = arith.truncf %87 : vector<8x8xf32> to vector<8x8xbf16>
    %cst_34 = arith.constant dense<0.000000e+00> : vector<8x8xf32>
    %89 = tpu.matmul %88, %76, %cst_34 {dimension_numbers = #tpu.dot_dimension_numbers<[1], [0], [0], [1], [0, 0, 1, 1], [], []>} : vector<8x8xbf16>, vector<8x8xbf16>, vector<8x8xf32> -> vector<8x8xf32>
    %90 = arith.truncf %89 : vector<8x8xf32> to vector<8x8xbf16>
    %c2 = arith.constant 2 : index
    %c0_35 = arith.constant 0 : index
    %c0_36 = arith.constant 0 : index
    %91 = vector.load %arg6[%c2, %c0_35, %c0_36] : memref<4x8x32xbf16, #tpu.memory_space<vmem>>, vector<1x8x32xbf16>
    %92 = vector.shape_cast %91 : vector<1x8x32xbf16> to vector<8x32xbf16>
    %cst_37 = arith.constant dense<0.000000e+00> : vector<8x32xf32>
    %93 = tpu.matmul %90, %92, %cst_37 {dimension_numbers = #tpu.dot_dimension_numbers<[1], [0], [0], [1], [0, 0, 1, 1], [], []>} : vector<8x8xbf16>, vector<8x32xbf16>, vector<8x32xf32> -> vector<8x32xf32>
    %94 = arith.addf %73, %93 : vector<8x32xf32>
    %95 = vector.extract_strided_slice %30 {offsets = [0, 24], sizes = [8, 8], strides = [1, 1]} : vector<8x96xbf16> to vector<8x8xbf16>
    %96 = vector.extract_strided_slice %30 {offsets = [0, 56], sizes = [8, 8], strides = [1, 1]} : vector<8x96xbf16> to vector<8x8xbf16>
    %97 = vector.extract_strided_slice %30 {offsets = [0, 88], sizes = [8, 8], strides = [1, 1]} : vector<8x96xbf16> to vector<8x8xbf16>
    %cst_38 = arith.constant dense<0.000000e+00> : vector<8x8xf32>
    %98 = tpu.matmul %95, %96, %cst_38 {dimension_numbers = #tpu.dot_dimension_numbers<[1], [1], [0], [0], [0, 0, 1, 0], [], []>} : vector<8x8xbf16>, vector<8x8xbf16>, vector<8x8xf32> -> vector<8x8xf32>
    %cst_39 = arith.constant dense<0xFF800000> : vector<8xf32>
    %99 = vector.multi_reduction <maximumf>, %98, %cst_39 [1] : vector<8x8xf32> to vector<8xf32>
    %100 = vector.shape_cast %99 : vector<8xf32> to vector<8x1xf32>
    %101 = vector.broadcast %100 : vector<8x1xf32> to vector<8x8xf32>
    %102 = arith.subf %98, %101 : vector<8x8xf32>
    %103 = math.exp %102 : vector<8x8xf32>
    %cst_40 = arith.constant dense<0.000000e+00> : vector<8xf32>
    %104 = vector.multi_reduction <add>, %103, %cst_40 [1] : vector<8x8xf32> to vector<8xf32>
    %105 = vector.shape_cast %104 : vector<8xf32> to vector<8x1xf32>
    %106 = tpu.reciprocal %105 {approx = true} : vector<8x1xf32> -> vector<8x1xf32>
    %107 = vector.broadcast %106 : vector<8x1xf32> to vector<8x8xf32>
    %108 = arith.mulf %103, %107 : vector<8x8xf32>
    %109 = arith.truncf %108 : vector<8x8xf32> to vector<8x8xbf16>
    %cst_41 = arith.constant dense<0.000000e+00> : vector<8x8xf32>
    %110 = tpu.matmul %109, %97, %cst_41 {dimension_numbers = #tpu.dot_dimension_numbers<[1], [0], [0], [1], [0, 0, 1, 1], [], []>} : vector<8x8xbf16>, vector<8x8xbf16>, vector<8x8xf32> -> vector<8x8xf32>
    %111 = arith.truncf %110 : vector<8x8xf32> to vector<8x8xbf16>
    %c3 = arith.constant 3 : index
    %c0_42 = arith.constant 0 : index
    %c0_43 = arith.constant 0 : index
    %112 = vector.load %arg6[%c3, %c0_42, %c0_43] : memref<4x8x32xbf16, #tpu.memory_space<vmem>>, vector<1x8x32xbf16>
    %113 = vector.shape_cast %112 : vector<1x8x32xbf16> to vector<8x32xbf16>
    %cst_44 = arith.constant dense<0.000000e+00> : vector<8x32xf32>
    %114 = tpu.matmul %111, %113, %cst_44 {dimension_numbers = #tpu.dot_dimension_numbers<[1], [0], [0], [1], [0, 0, 1, 1], [], []>} : vector<8x8xbf16>, vector<8x32xbf16>, vector<8x32xf32> -> vector<8x32xf32>
    %115 = arith.addf %94, %114 : vector<8x32xf32>
    %c0_45 = arith.constant 0 : index
    %c0_46 = arith.constant 0 : index
    %116 = vector.load %arg7[%c0_45, %c0_46] : memref<1x32xf32, #tpu.memory_space<vmem>>, vector<1x32xf32>
    %117 = vector.broadcast %116 : vector<1x32xf32> to vector<8x32xf32>
    %118 = arith.addf %115, %117 : vector<8x32xf32>
    %119 = arith.addf %1, %118 : vector<8x32xf32>
    %c0_47 = arith.constant 0 : index
    %c0_48 = arith.constant 0 : index
    %120 = vector.load %arg8[%c0_47, %c0_48] : memref<1x32xf32, #tpu.memory_space<vmem>>, vector<1x32xf32>
    %c0_49 = arith.constant 0 : index
    %c0_50 = arith.constant 0 : index
    %121 = vector.load %arg9[%c0_49, %c0_50] : memref<1x32xf32, #tpu.memory_space<vmem>>, vector<1x32xf32>
    %cst_51 = arith.constant dense<0.000000e+00> : vector<8xf32>
    %122 = vector.multi_reduction <add>, %119, %cst_51 [1] : vector<8x32xf32> to vector<8xf32>
    %123 = vector.shape_cast %122 : vector<8xf32> to vector<8x1xf32>
    %cst_52 = arith.constant 3.200000e+01 : f32
    %124 = vector.broadcast %cst_52 : f32 to vector<8x1xf32>
    %125 = arith.divf %123, %124 : vector<8x1xf32>
    %126 = vector.broadcast %125 : vector<8x1xf32> to vector<8x32xf32>
    %127 = arith.subf %119, %126 : vector<8x32xf32>
    %128 = arith.mulf %127, %127 : vector<8x32xf32>
    %cst_53 = arith.constant dense<0.000000e+00> : vector<8xf32>
    %129 = vector.multi_reduction <add>, %128, %cst_53 [1] : vector<8x32xf32> to vector<8xf32>
    %130 = vector.shape_cast %129 : vector<8xf32> to vector<8x1xf32>
    %cst_54 = arith.constant 3.200000e+01 : f32
    %131 = vector.broadcast %cst_54 : f32 to vector<8x1xf32>
    %132 = arith.divf %130, %131 : vector<8x1xf32>
    %cst_55 = arith.constant 9.99999974E-6 : f32
    %133 = vector.broadcast %cst_55 : f32 to vector<8x1xf32>
    %134 = arith.addf %132, %133 : vector<8x1xf32>
    %135 = math.rsqrt %134 : vector<8x1xf32>
    %136 = vector.broadcast %135 : vector<8x1xf32> to vector<8x32xf32>
    %137 = arith.mulf %127, %136 : vector<8x32xf32>
    %138 = vector.broadcast %120 : vector<1x32xf32> to vector<8x32xf32>
    %139 = arith.mulf %137, %138 : vector<8x32xf32>
    %140 = vector.broadcast %121 : vector<1x32xf32> to vector<8x32xf32>
    %141 = arith.addf %139, %140 : vector<8x32xf32>
    %142 = arith.truncf %141 : vector<8x32xf32> to vector<8x32xbf16>
    %c0_56 = arith.constant 0 : index
    %c0_57 = arith.constant 0 : index
    %143 = vector.load %arg10[%c0_56, %c0_57] : memref<32x128xbf16, #tpu.memory_space<vmem>>, vector<32x128xbf16>
    %cst_58 = arith.constant dense<0.000000e+00> : vector<8x128xf32>
    %144 = tpu.matmul %142, %143, %cst_58 {dimension_numbers = #tpu.dot_dimension_numbers<[1], [0], [0], [1], [0, 0, 1, 1], [], []>} : vector<8x32xbf16>, vector<32x128xbf16>, vector<8x128xf32> -> vector<8x128xf32>
    %c0_59 = arith.constant 0 : index
    %c0_60 = arith.constant 0 : index
    %145 = vector.load %arg11[%c0_59, %c0_60] : memref<1x128xf32, #tpu.memory_space<vmem>>, vector<1x128xf32>
    %146 = vector.broadcast %145 : vector<1x128xf32> to vector<8x128xf32>
    %147 = arith.addf %144, %146 : vector<8x128xf32>
    %cst_61 = arith.constant 1.702000e+00 : f32
    %148 = vector.broadcast %cst_61 : f32 to vector<8x128xf32>
    %149 = arith.mulf %148, %147 : vector<8x128xf32>
    %150 = arith.negf %149 : vector<8x128xf32>
    %151 = math.exp %150 : vector<8x128xf32>
    %cst_62 = arith.constant 1.000000e+00 : f32
    %152 = vector.broadcast %cst_62 : f32 to vector<8x128xf32>
    %153 = arith.addf %152, %151 : vector<8x128xf32>
    %154 = arith.divf %152, %153 : vector<8x128xf32>
    %155 = arith.mulf %147, %154 : vector<8x128xf32>
    %156 = arith.truncf %155 : vector<8x128xf32> to vector<8x128xbf16>
    %c0_63 = arith.constant 0 : index
    %c0_64 = arith.constant 0 : index
    %157 = vector.load %arg12[%c0_63, %c0_64] : memref<128x32xbf16, #tpu.memory_space<vmem>>, vector<128x32xbf16>
    %cst_65 = arith.constant dense<0.000000e+00> : vector<8x32xf32>
    %158 = tpu.matmul %156, %157, %cst_65 {dimension_numbers = #tpu.dot_dimension_numbers<[1], [0], [0], [1], [0, 0, 1, 1], [], []>} : vector<8x128xbf16>, vector<128x32xbf16>, vector<8x32xf32> -> vector<8x32xf32>
    %c0_66 = arith.constant 0 : index
    %c0_67 = arith.constant 0 : index
    %159 = vector.load %arg13[%c0_66, %c0_67] : memref<1x32xf32, #tpu.memory_space<vmem>>, vector<1x32xf32>
    %160 = vector.broadcast %159 : vector<1x32xf32> to vector<8x32xf32>
    %161 = arith.addf %158, %160 : vector<8x32xf32>
    %162 = arith.addf %119, %161 : vector<8x32xf32>
    %c0_68 = arith.constant 0 : index
    %c0_69 = arith.constant 0 : index
    %c0_70 = arith.constant 0 : index
    %163 = vector.load %arg14[%c0_68, %c0_69, %c0_70] : memref<1x8x32xf32, #tpu.memory_space<vmem>>, vector<1x8x32xf32>
    %164 = vector.shape_cast %163 : vector<1x8x32xf32> to vector<8x32xf32>
    %165 = vector.shape_cast %162 : vector<8x32xf32> to vector<1x8x32xf32>
    tpu.vector_store %arg14[%c0_68, %c0_69, %c0_70], %165 {strides = array<i32>} : memref<1x8x32xf32, #tpu.memory_space<vmem>>, vector<1x8x32xf32>,
    return
  }
  func.func @transform_0(%arg0: i32) -> (i32, i32, i32) {
    %c0_i32 = arith.constant 0 : i32
    %c0_i32_0 = arith.constant 0 : i32
    %c0_i32_1 = arith.constant 0 : i32
    return %arg0, %c0_i32, %c0_i32_0 : i32, i32, i32
  }
  func.func @transform_1(%arg0: i32) -> (i32, i32) {
    %c0_i32 = arith.constant 0 : i32
    %c0_i32_0 = arith.constant 0 : i32
    %c0_i32_1 = arith.constant 0 : i32
    return %c0_i32, %c0_i32_0 : i32, i32
  }
  func.func @transform_2(%arg0: i32) -> (i32, i32) {
    %c0_i32 = arith.constant 0 : i32
    %c0_i32_0 = arith.constant 0 : i32
    %c0_i32_1 = arith.constant 0 : i32
    return %c0_i32, %c0_i32_0 : i32, i32
  }
  func.func @transform_3(%arg0: i32) -> (i32, i32) {
    %c0_i32 = arith.constant 0 : i32
    %c0_i32_0 = arith.constant 0 : i32
    %c0_i32_1 = arith.constant 0 : i32
    return %c0_i32, %c0_i32_0 : i32, i32
  }
  func.func @transform_4(%arg0: i32) -> (i32, i32) {
    %c0_i32 = arith.constant 0 : i32
    %c0_i32_0 = arith.constant 0 : i32
    %c0_i32_1 = arith.constant 0 : i32
    return %c0_i32, %c0_i32_0 : i32, i32
  }
  func.func @transform_5(%arg0: i32) -> (i32, i32, i32) {
    %c0_i32 = arith.constant 0 : i32
    %c0_i32_0 = arith.constant 0 : i32
    %c0_i32_1 = arith.constant 0 : i32
    %c0_i32_2 = arith.constant 0 : i32
    return %c0_i32, %c0_i32_0, %c0_i32_1 : i32, i32, i32
  }
  func.func @transform_6(%arg0: i32) -> (i32, i32) {
    %c0_i32 = arith.constant 0 : i32
    %c0_i32_0 = arith.constant 0 : i32
    %c0_i32_1 = arith.constant 0 : i32
    return %c0_i32, %c0_i32_0 : i32, i32
  }
  func.func @transform_7(%arg0: i32) -> (i32, i32) {
    %c0_i32 = arith.constant 0 : i32
    %c0_i32_0 = arith.constant 0 : i32
    %c0_i32_1 = arith.constant 0 : i32
    return %c0_i32, %c0_i32_0 : i32, i32
  }
  func.func @transform_8(%arg0: i32) -> (i32, i32) {
    %c0_i32 = arith.constant 0 : i32
    %c0_i32_0 = arith.constant 0 : i32
    %c0_i32_1 = arith.constant 0 : i32
    return %c0_i32, %c0_i32_0 : i32, i32
  }
  func.func @transform_9(%arg0: i32) -> (i32, i32) {
    %c0_i32 = arith.constant 0 : i32
    %c0_i32_0 = arith.constant 0 : i32
    %c0_i32_1 = arith.constant 0 : i32
    return %c0_i32, %c0_i32_0 : i32, i32
  }
  func.func @transform_10(%arg0: i32) -> (i32, i32) {
    %c0_i32 = arith.constant 0 : i32
    %c0_i32_0 = arith.constant 0 : i32
    %c0_i32_1 = arith.constant 0 : i32
    return %c0_i32, %c0_i32_0 : i32, i32
  }
  func.func @transform_11(%arg0: i32) -> (i32, i32) {
    %c0_i32 = arith.constant 0 : i32
    %c0_i32_0 = arith.constant 0 : i32
    %c0_i32_1 = arith.constant 0 : i32
    return %c0_i32, %c0_i32_0 : i32, i32
  }
  func.func @transform_12(%arg0: i32) -> (i32, i32) {
    %c0_i32 = arith.constant 0 : i32
    %c0_i32_0 = arith.constant 0 : i32
    %c0_i32_1 = arith.constant 0 : i32
    return %c0_i32, %c0_i32_0 : i32, i32
  }
  func.func @transform_13(%arg0: i32) -> (i32, i32, i32) {
    %c0_i32 = arith.constant 0 : i32
    %c0_i32_0 = arith.constant 0 : i32
    %c0_i32_1 = arith.constant 0 : i32
    return %arg0, %c0_i32, %c0_i32_0 : i32, i32, i32
  }
}

module attributes {stable_mosaic.version = 11 : i64} {
  func.func @_residual_block_kernel(%arg0: i32, %arg1: memref<1x8x32xf32, #tpu.memory_space<vmem>>, %arg2: memref<1x32xf32, #tpu.memory_space<vmem>>, %arg3: memref<1x32xf32, #tpu.memory_space<vmem>>, %arg4: memref<32x96xbf16, #tpu.memory_space<vmem>>, %arg5: memref<1x96xf32, #tpu.memory_space<vmem>>, %arg6: memref<4x8x32xbf16, #tpu.memory_space<vmem>>, %arg7: memref<1x32xf32, #tpu.memory_space<vmem>>, %arg8: memref<1x32xf32, #tpu.memory_space<vmem>>, %arg9: memref<1x32xf32, #tpu.memory_space<vmem>>, %arg10: memref<32x128xbf16, #tpu.memory_space<vmem>>, %arg11: memref<1x128xf32, #tpu.memory_space<vmem>>, %arg12: memref<128x32xbf16, #tpu.memory_space<vmem>>, %arg13: memref<1x32xf32, #tpu.memory_space<vmem>>, %arg14: memref<1x8x32xf32, #tpu.memory_space<vmem>>) attributes {dimension_semantics = [#tpu.dimension_semantics<parallel>], iteration_bounds = array<i64: 2>, scalar_prefetch = 0 : i64, scratch_operands = 0 : i64, tpu.core_type = #tpu.core_type<tc>, window_params = [{transform_indices = @transform_0, window_bounds = array<i64: 1, 8, 32>}, {pipeline_mode = #tpu.pipeline_mode<synchronous>, transform_indices = @transform_1, window_bounds = array<i64: 1, 32>}, {pipeline_mode = #tpu.pipeline_mode<synchronous>, transform_indices = @transform_2, window_bounds = array<i64: 1, 32>}, {pipeline_mode = #tpu.pipeline_mode<synchronous>, transform_indices = @transform_3, window_bounds = array<i64: 32, 96>}, {pipeline_mode = #tpu.pipeline_mode<synchronous>, transform_indices = @transform_4, window_bounds = array<i64: 1, 96>}, {pipeline_mode = #tpu.pipeline_mode<synchronous>, transform_indices = @transform_5, window_bounds = array<i64: 4, 8, 32>}, {pipeline_mode = #tpu.pipeline_mode<synchronous>, transform_indices = @transform_6, window_bounds = array<i64: 1, 32>}, {pipeline_mode = #tpu.pipeline_mode<synchronous>, transform_indices = @transform_7, window_bounds = array<i64: 1, 32>}, {pipeline_mode = #tpu.pipeline_mode<synchronous>, transform_indices = @transform_8, window_bounds = array<i64: 1, 32>}, {pipeline_mode = #tpu.pipeline_mode<synchronous>, transform_indices = @transform_9, window_bounds = array<i64: 32, 128>}, {pipeline_mode = #tpu.pipeline_mode<synchronous>, transform_indices = @transform_10, window_bounds = array<i64: 1, 128>}, {pipeline_mode = #tpu.pipeline_mode<synchronous>, transform_indices = @transform_11, window_bounds = array<i64: 128, 32>}, {pipeline_mode = #tpu.pipeline_mode<synchronous>, transform_indices = @transform_12, window_bounds = array<i64: 1, 32>}, {transform_indices = @transform_13, window_bounds = array<i64: 1, 8, 32>}]} {
    %c0 = arith.constant 0 : index
    %c0_0 = arith.constant 0 : index
    %c0_1 = arith.constant 0 : index
    %0 = vector.load %arg1[%c0, %c0_0, %c0_1] : memref<1x8x32xf32, #tpu.memory_space<vmem>>, vector<1x8x32xf32>
    %1 = vector.shape_cast %0 : vector<1x8x32xf32> to vector<8x32xf32>
    %c0_2 = arith.constant 0 : index
    %c0_3 = arith.constant 0 : index
    %2 = vector.load %arg2[%c0_2, %c0_3] : memref<1x32xf32, #tpu.memory_space<vmem>>, vector<1x32xf32>
    %c0_4 = arith.constant 0 : index
    %c0_5 = arith.constant 0 : index
    %3 = vector.load %arg3[%c0_4, %c0_5] : memref<1x32xf32, #tpu.memory_space<vmem>>, vector<1x32xf32>
    %cst = arith.constant dense<0.000000e+00> : vector<8xf32>
    %4 = vector.multi_reduction <add>, %1, %cst [1] : vector<8x32xf32> to vector<8xf32>
    %5 = vector.shape_cast %4 : vector<8xf32> to vector<8x1xf32>
    %cst_6 = arith.constant 3.200000e+01 : f32
    %6 = vector.broadcast %cst_6 : f32 to vector<8x1xf32>
    %7 = arith.divf %5, %6 : vector<8x1xf32>
    %8 = vector.broadcast %7 : vector<8x1xf32> to vector<8x32xf32>
    %9 = arith.subf %1, %8 : vector<8x32xf32>
    %10 = arith.mulf %9, %9 : vector<8x32xf32>
    %cst_7 = arith.constant dense<0.000000e+00> : vector<8xf32>
    %11 = vector.multi_reduction <add>, %10, %cst_7 [1] : vector<8x32xf32> to vector<8xf32>
    %12 = vector.shape_cast %11 : vector<8xf32> to vector<8x1xf32>
    %cst_8 = arith.constant 3.200000e+01 : f32
    %13 = vector.broadcast %cst_8 : f32 to vector<8x1xf32>
    %14 = arith.divf %12, %13 : vector<8x1xf32>
    %cst_9 = arith.constant 9.99999974E-6 : f32
    %15 = vector.broadcast %cst_9 : f32 to vector<8x1xf32>
    %16 = arith.addf %14, %15 : vector<8x1xf32>
    %17 = math.rsqrt %16 : vector<8x1xf32>
    %18 = vector.broadcast %17 : vector<8x1xf32> to vector<8x32xf32>
    %19 = arith.mulf %9, %18 : vector<8x32xf32>
    %20 = vector.broadcast %2 : vector<1x32xf32> to vector<8x32xf32>
    %21 = arith.mulf %19, %20 : vector<8x32xf32>
    %22 = vector.broadcast %3 : vector<1x32xf32> to vector<8x32xf32>
    %23 = arith.addf %21, %22 : vector<8x32xf32>
    %24 = arith.truncf %23 : vector<8x32xf32> to vector<8x32xbf16>
    %c0_10 = arith.constant 0 : index
    %c0_11 = arith.constant 0 : index
    %25 = vector.load %arg4[%c0_10, %c0_11] : memref<32x96xbf16, #tpu.memory_space<vmem>>, vector<32x96xbf16>
    %cst_12 = arith.constant dense<0.000000e+00> : vector<8x96xf32>
    %26 = tpu.matmul %24, %25, %cst_12 {dimension_numbers = #tpu.dot_dimension_numbers<[1], [0], [0], [1], [0, 0, 1, 1], [], []>} : vector<8x32xbf16>, vector<32x96xbf16>, vector<8x96xf32> -> vector<8x96xf32>
    %c0_13 = arith.constant 0 : index
    %c0_14 = arith.constant 0 : index
    %27 = vector.load %arg5[%c0_13, %c0_14] : memref<1x96xf32, #tpu.memory_space<vmem>>, vector<1x96xf32>
    %28 = vector.broadcast %27 : vector<1x96xf32> to vector<8x96xf32>
    %29 = arith.addf %26, %28 : vector<8x96xf32>
    %30 = arith.truncf %29 : vector<8x96xf32> to vector<8x96xbf16>
    %cst_15 = arith.constant 0.000000e+00 : f32
    %31 = vector.broadcast %cst_15 : f32 to vector<8x32xf32>
    %32 = vector.extract_strided_slice %30 {offsets = [0, 0], sizes = [8, 8], strides = [1, 1]} : vector<8x96xbf16> to vector<8x8xbf16>
    %33 = vector.extract_strided_slice %30 {offsets = [0, 32], sizes = [8, 8], strides = [1, 1]} : vector<8x96xbf16> to vector<8x8xbf16>
    %34 = vector.extract_strided_slice %30 {offsets = [0, 64], sizes = [8, 8], strides = [1, 1]} : vector<8x96xbf16> to vector<8x8xbf16>
    %cst_16 = arith.constant dense<0.000000e+00> : vector<8x8xf32>
    %35 = tpu.matmul %32, %33, %cst_16 {dimension_numbers = #tpu.dot_dimension_numbers<[1], [1], [0], [0], [0, 0, 1, 0], [], []>} : vector<8x8xbf16>, vector<8x8xbf16>, vector<8x8xf32> -> vector<8x8xf32>
    %cst_17 = arith.constant dense<0xFF800000> : vector<8xf32>
    %36 = vector.multi_reduction <maximumf>, %35, %cst_17 [1] : vector<8x8xf32> to vector<8xf32>
    %37 = vector.shape_cast %36 : vector<8xf32> to vector<8x1xf32>
    %38 = vector.broadcast %37 : vector<8x1xf32> to vector<8x8xf32>
    %39 = arith.subf %35, %38 : vector<8x8xf32>
    %40 = math.exp %39 : vector<8x8xf32>
    %cst_18 = arith.constant dense<0.000000e+00> : vector<8xf32>
    %41 = vector.multi_reduction <add>, %40, %cst_18 [1] : vector<8x8xf32> to vector<8xf32>
    %42 = vector.shape_cast %41 : vector<8xf32> to vector<8x1xf32>
    %43 = tpu.reciprocal %42 {approx = true} : vector<8x1xf32> -> vector<8x1xf32>
    %44 = vector.broadcast %43 : vector<8x1xf32> to vector<8x8xf32>
    %45 = arith.mulf %40, %44 : vector<8x8xf32>
    %46 = arith.truncf %45 : vector<8x8xf32> to vector<8x8xbf16>
    %cst_19 = arith.constant dense<0.000000e+00> : vector<8x8xf32>
    %47 = tpu.matmul %46, %34, %cst_19 {dimension_numbers = #tpu.dot_dimension_numbers<[1], [0], [0], [1], [0, 0, 1, 1], [], []>} : vector<8x8xbf16>, vector<8x8xbf16>, vector<8x8xf32> -> vector<8x8xf32>
    %48 = arith.truncf %47 : vector<8x8xf32> to vector<8x8xbf16>
    %c0_20 = arith.constant 0 : index
    %c0_21 = arith.constant 0 : index
    %c0_22 = arith.constant 0 : index
    %49 = vector.load %arg6[%c0_20, %c0_21, %c0_22] : memref<4x8x32xbf16, #tpu.memory_space<vmem>>, vector<1x8x32xbf16>
    %50 = vector.shape_cast %49 : vector<1x8x32xbf16> to vector<8x32xbf16>
    %cst_23 = arith.constant dense<0.000000e+00> : vector<8x32xf32>
    %51 = tpu.matmul %48, %50, %cst_23 {dimension_numbers = #tpu.dot_dimension_numbers<[1], [0], [0], [1], [0, 0, 1, 1], [], []>} : vector<8x8xbf16>, vector<8x32xbf16>, vector<8x32xf32> -> vector<8x32xf32>
    %52 = arith.addf %31, %51 : vector<8x32xf32>
    %53 = vector.extract_strided_slice %30 {offsets = [0, 8], sizes = [8, 8], strides = [1, 1]} : vector<8x96xbf16> to vector<8x8xbf16>
    %54 = vector.extract_strided_slice %30 {offsets = [0, 40], sizes = [8, 8], strides = [1, 1]} : vector<8x96xbf16> to vector<8x8xbf16>
    %55 = vector.extract_strided_slice %30 {offsets = [0, 72], sizes = [8, 8], strides = [1, 1]} : vector<8x96xbf16> to vector<8x8xbf16>
    %cst_24 = arith.constant dense<0.000000e+00> : vector<8x8xf32>
    %56 = tpu.matmul %53, %54, %cst_24 {dimension_numbers = #tpu.dot_dimension_numbers<[1], [1], [0], [0], [0, 0, 1, 0], [], []>} : vector<8x8xbf16>, vector<8x8xbf16>, vector<8x8xf32> -> vector<8x8xf32>
    %cst_25 = arith.constant dense<0xFF800000> : vector<8xf32>
    %57 = vector.multi_reduction <maximumf>, %56, %cst_25 [1] : vector<8x8xf32> to vector<8xf32>
    %58 = vector.shape_cast %57 : vector<8xf32> to vector<8x1xf32>
    %59 = vector.broadcast %58 : vector<8x1xf32> to vector<8x8xf32>
    %60 = arith.subf %56, %59 : vector<8x8xf32>
    %61 = math.exp %60 : vector<8x8xf32>
    %cst_26 = arith.constant dense<0.000000e+00> : vector<8xf32>
    %62 = vector.multi_reduction <add>, %61, %cst_26 [1] : vector<8x8xf32> to vector<8xf32>
    %63 = vector.shape_cast %62 : vector<8xf32> to vector<8x1xf32>
    %64 = tpu.reciprocal %63 {approx = true} : vector<8x1xf32> -> vector<8x1xf32>
    %65 = vector.broadcast %64 : vector<8x1xf32> to vector<8x8xf32>
    %66 = arith.mulf %61, %65 : vector<8x8xf32>
    %67 = arith.truncf %66 : vector<8x8xf32> to vector<8x8xbf16>
    %cst_27 = arith.constant dense<0.000000e+00> : vector<8x8xf32>
    %68 = tpu.matmul %67, %55, %cst_27 {dimension_numbers = #tpu.dot_dimension_numbers<[1], [0], [0], [1], [0, 0, 1, 1], [], []>} : vector<8x8xbf16>, vector<8x8xbf16>, vector<8x8xf32> -> vector<8x8xf32>
    %69 = arith.truncf %68 : vector<8x8xf32> to vector<8x8xbf16>
    %c1 = arith.constant 1 : index
    %c0_28 = arith.constant 0 : index
    %c0_29 = arith.constant 0 : index
    %70 = vector.load %arg6[%c1, %c0_28, %c0_29] : memref<4x8x32xbf16, #tpu.memory_space<vmem>>, vector<1x8x32xbf16>
    %71 = vector.shape_cast %70 : vector<1x8x32xbf16> to vector<8x32xbf16>
    %cst_30 = arith.constant dense<0.000000e+00> : vector<8x32xf32>
    %72 = tpu.matmul %69, %71, %cst_30 {dimension_numbers = #tpu.dot_dimension_numbers<[1], [0], [0], [1], [0, 0, 1, 1], [], []>} : vector<8x8xbf16>, vector<8x32xbf16>, vector<8x32xf32> -> vector<8x32xf32>
    %73 = arith.addf %52, %72 : vector<8x32xf32>
    %74 = vector.extract_strided_slice %30 {offsets = [0, 16], sizes = [8, 8], strides = [1, 1]} : vector<8x96xbf16> to vector<8x8xbf16>
    %75 = vector.extract_strided_slice %30 {offsets = [0, 48], sizes = [8, 8], strides = [1, 1]} : vector<8x96xbf16> to vector<8x8xbf16>
    %76 = vector.extract_strided_slice %30 {offsets = [0, 80], sizes = [8, 8], strides = [1, 1]} : vector<8x96xbf16> to vector<8x8xbf16>
    %cst_31 = arith.constant dense<0.000000e+00> : vector<8x8xf32>
    %77 = tpu.matmul %74, %75, %cst_31 {dimension_numbers = #tpu.dot_dimension_numbers<[1], [1], [0], [0], [0, 0, 1, 0], [], []>} : vector<8x8xbf16>, vector<8x8xbf16>, vector<8x8xf32> -> vector<8x8xf32>
    %cst_32 = arith.constant dense<0xFF800000> : vector<8xf32>
    %78 = vector.multi_reduction <maximumf>, %77, %cst_32 [1] : vector<8x8xf32> to vector<8xf32>
    %79 = vector.shape_cast %78 : vector<8xf32> to vector<8x1xf32>
    %80 = vector.broadcast %79 : vector<8x1xf32> to vector<8x8xf32>
    %81 = arith.subf %77, %80 : vector<8x8xf32>
    %82 = math.exp %81 : vector<8x8xf32>
    %cst_33 = arith.constant dense<0.000000e+00> : vector<8xf32>
    %83 = vector.multi_reduction <add>, %82, %cst_33 [1] : vector<8x8xf32> to vector<8xf32>
    %84 = vector.shape_cast %83 : vector<8xf32> to vector<8x1xf32>
    %85 = tpu.reciprocal %84 {approx = true} : vector<8x1xf32> -> vector<8x1xf32>
    %86 = vector.broadcast %85 : vector<8x1xf32> to vector<8x8xf32>
    %87 = arith.mulf %82, %86 : vector<8x8xf32>
    %88 = arith.truncf %87 : vector<8x8xf32> to vector<8x8xbf16>
    %cst_34 = arith.constant dense<0.000000e+00> : vector<8x8xf32>
    %89 = tpu.matmul %88, %76, %cst_34 {dimension_numbers = #tpu.dot_dimension_numbers<[1], [0], [0], [1], [0, 0, 1, 1], [], []>} : vector<8x8xbf16>, vector<8x8xbf16>, vector<8x8xf32> -> vector<8x8xf32>
    %90 = arith.truncf %89 : vector<8x8xf32> to vector<8x8xbf16>
    %c2 = arith.constant 2 : index
    %c0_35 = arith.constant 0 : index
    %c0_36 = arith.constant 0 : index
    %91 = vector.load %arg6[%c2, %c0_35, %c0_36] : memref<4x8x32xbf16, #tpu.memory_space<vmem>>, vector<1x8x32xbf16>
    %92 = vector.shape_cast %91 : vector<1x8x32xbf16> to vector<8x32xbf16>
    %cst_37 = arith.constant dense<0.000000e+00> : vector<8x32xf32>
    %93 = tpu.matmul %90, %92, %cst_37 {dimension_numbers = #tpu.dot_dimension_numbers<[1], [0], [0], [1], [0, 0, 1, 1], [], []>} : vector<8x8xbf16>, vector<8x32xbf16>, vector<8x32xf32> -> vector<8x32xf32>
    %94 = arith.addf %73, %93 : vector<8x32xf32>
    %95 = vector.extract_strided_slice %30 {offsets = [0, 24], sizes = [8, 8], strides = [1, 1]} : vector<8x96xbf16> to vector<8x8xbf16>
    %96 = vector.extract_strided_slice %30 {offsets = [0, 56], sizes = [8, 8], strides = [1, 1]} : vector<8x96xbf16> to vector<8x8xbf16>
    %97 = vector.extract_strided_slice %30 {offsets = [0, 88], sizes = [8, 8], strides = [1, 1]} : vector<8x96xbf16> to vector<8x8xbf16>
    %cst_38 = arith.constant dense<0.000000e+00> : vector<8x8xf32>
    %98 = tpu.matmul %95, %96, %cst_38 {dimension_numbers = #tpu.dot_dimension_numbers<[1], [1], [0], [0], [0, 0, 1, 0], [], []>} : vector<8x8xbf16>, vector<8x8xbf16>, vector<8x8xf32> -> vector<8x8xf32>
    %cst_39 = arith.constant dense<0xFF800000> : vector<8xf32>
    %99 = vector.multi_reduction <maximumf>, %98, %cst_39 [1] : vector<8x8xf32> to vector<8xf32>
    %100 = vector.shape_cast %99 : vector<8xf32> to vector<8x1xf32>
    %101 = vector.broadcast %100 : vector<8x1xf32> to vector<8x8xf32>
    %102 = arith.subf %98, %101 : vector<8x8xf32>
    %103 = math.exp %102 : vector<8x8xf32>
    %cst_40 = arith.constant dense<0.000000e+00> : vector<8xf32>
    %104 = vector.multi_reduction <add>, %103, %cst_40 [1] : vector<8x8xf32> to vector<8xf32>
    %105 = vector.shape_cast %104 : vector<8xf32> to vector<8x1xf32>
    %106 = tpu.reciprocal %105 {approx = true} : vector<8x1xf32> -> vector<8x1xf32>
    %107 = vector.broadcast %106 : vector<8x1xf32> to vector<8x8xf32>
    %108 = arith.mulf %103, %107 : vector<8x8xf32>
    %109 = arith.truncf %108 : vector<8x8xf32> to vector<8x8xbf16>
    %cst_41 = arith.constant dense<0.000000e+00> : vector<8x8xf32>
    %110 = tpu.matmul %109, %97, %cst_41 {dimension_numbers = #tpu.dot_dimension_numbers<[1], [0], [0], [1], [0, 0, 1, 1], [], []>} : vector<8x8xbf16>, vector<8x8xbf16>, vector<8x8xf32> -> vector<8x8xf32>
    %111 = arith.truncf %110 : vector<8x8xf32> to vector<8x8xbf16>
    %c3 = arith.constant 3 : index
    %c0_42 = arith.constant 0 : index
    %c0_43 = arith.constant 0 : index
    %112 = vector.load %arg6[%c3, %c0_42, %c0_43] : memref<4x8x32xbf16, #tpu.memory_space<vmem>>, vector<1x8x32xbf16>
    %113 = vector.shape_cast %112 : vector<1x8x32xbf16> to vector<8x32xbf16>
    %cst_44 = arith.constant dense<0.000000e+00> : vector<8x32xf32>
    %114 = tpu.matmul %111, %113, %cst_44 {dimension_numbers = #tpu.dot_dimension_numbers<[1], [0], [0], [1], [0, 0, 1, 1], [], []>} : vector<8x8xbf16>, vector<8x32xbf16>, vector<8x32xf32> -> vector<8x32xf32>
    %115 = arith.addf %94, %114 : vector<8x32xf32>
    %c0_45 = arith.constant 0 : index
    %c0_46 = arith.constant 0 : index
    %116 = vector.load %arg7[%c0_45, %c0_46] : memref<1x32xf32, #tpu.memory_space<vmem>>, vector<1x32xf32>
    %117 = vector.broadcast %116 : vector<1x32xf32> to vector<8x32xf32>
    %118 = arith.addf %115, %117 : vector<8x32xf32>
    %119 = arith.addf %1, %118 : vector<8x32xf32>
    %c0_47 = arith.constant 0 : index
    %c0_48 = arith.constant 0 : index
    %120 = vector.load %arg8[%c0_47, %c0_48] : memref<1x32xf32, #tpu.memory_space<vmem>>, vector<1x32xf32>
    %c0_49 = arith.constant 0 : index
    %c0_50 = arith.constant 0 : index
    %121 = vector.load %arg9[%c0_49, %c0_50] : memref<1x32xf32, #tpu.memory_space<vmem>>, vector<1x32xf32>
    %cst_51 = arith.constant dense<0.000000e+00> : vector<8xf32>
    %122 = vector.multi_reduction <add>, %119, %cst_51 [1] : vector<8x32xf32> to vector<8xf32>
    %123 = vector.shape_cast %122 : vector<8xf32> to vector<8x1xf32>
    %cst_52 = arith.constant 3.200000e+01 : f32
    %124 = vector.broadcast %cst_52 : f32 to vector<8x1xf32>
    %125 = arith.divf %123, %124 : vector<8x1xf32>
    %126 = vector.broadcast %125 : vector<8x1xf32> to vector<8x32xf32>
    %127 = arith.subf %119, %126 : vector<8x32xf32>
    %128 = arith.mulf %127, %127 : vector<8x32xf32>
    %cst_53 = arith.constant dense<0.000000e+00> : vector<8xf32>
    %129 = vector.multi_reduction <add>, %128, %cst_53 [1] : vector<8x32xf32> to vector<8xf32>
    %130 = vector.shape_cast %129 : vector<8xf32> to vector<8x1xf32>
    %cst_54 = arith.constant 3.200000e+01 : f32
    %131 = vector.broadcast %cst_54 : f32 to vector<8x1xf32>
    %132 = arith.divf %130, %131 : vector<8x1xf32>
    %cst_55 = arith.constant 9.99999974E-6 : f32
    %133 = vector.broadcast %cst_55 : f32 to vector<8x1xf32>
    %134 = arith.addf %132, %133 : vector<8x1xf32>
    %135 = math.rsqrt %134 : vector<8x1xf32>
    %136 = vector.broadcast %135 : vector<8x1xf32> to vector<8x32xf32>
    %137 = arith.mulf %127, %136 : vector<8x32xf32>
    %138 = vector.broadcast %120 : vector<1x32xf32> to vector<8x32xf32>
    %139 = arith.mulf %137, %138 : vector<8x32xf32>
    %140 = vector.broadcast %121 : vector<1x32xf32> to vector<8x32xf32>
    %141 = arith.addf %139, %140 : vector<8x32xf32>
    %142 = arith.truncf %141 : vector<8x32xf32> to vector<8x32xbf16>
    %c0_56 = arith.constant 0 : index
    %c0_57 = arith.constant 0 : index
    %143 = vector.load %arg10[%c0_56, %c0_57] : memref<32x128xbf16, #tpu.memory_space<vmem>>, vector<32x128xbf16>
    %cst_58 = arith.constant dense<0.000000e+00> : vector<8x128xf32>
    %144 = tpu.matmul %142, %143, %cst_58 {dimension_numbers = #tpu.dot_dimension_numbers<[1], [0], [0], [1], [0, 0, 1, 1], [], []>} : vector<8x32xbf16>, vector<32x128xbf16>, vector<8x128xf32> -> vector<8x128xf32>
    %c0_59 = arith.constant 0 : index
    %c0_60 = arith.constant 0 : index
    %145 = vector.load %arg11[%c0_59, %c0_60] : memref<1x128xf32, #tpu.memory_space<vmem>>, vector<1x128xf32>
    %146 = vector.broadcast %145 : vector<1x128xf32> to vector<8x128xf32>
    %147 = arith.addf %144, %146 : vector<8x128xf32>
    %cst_61 = arith.constant 1.702000e+00 : f32
    %148 = vector.broadcast %cst_61 : f32 to vector<8x128xf32>
    %149 = arith.mulf %148, %147 : vector<8x128xf32>
    %150 = arith.negf %149 : vector<8x128xf32>
    %151 = math.exp %150 : vector<8x128xf32>
    %cst_62 = arith.constant 1.000000e+00 : f32
    %152 = vector.broadcast %cst_62 : f32 to vector<8x128xf32>
    %153 = arith.addf %152, %151 : vector<8x128xf32>
    %154 = arith.divf %152, %153 : vector<8x128xf32>
    %155 = arith.mulf %147, %154 : vector<8x128xf32>
    %156 = arith.truncf %155 : vector<8x128xf32> to vector<8x128xbf16>
    %c0_63 = arith.constant 0 : index
    %c0_64 = arith.constant 0 : index
    %157 = vector.load %arg12[%c0_63, %c0_64] : memref<128x32xbf16, #tpu.memory_space<vmem>>, vector<128x32xbf16>
    %cst_65 = arith.constant dense<0.000000e+00> : vector<8x32xf32>
    %158 = tpu.matmul %156, %157, %cst_65 {dimension_numbers = #tpu.dot_dimension_numbers<[1], [0], [0], [1], [0, 0, 1, 1], [], []>} : vector<8x128xbf16>, vector<128x32xbf16>, vector<8x32xf32> -> vector<8x32xf32>
    %c0_66 = arith.constant 0 : index
    %c0_67 = arith.constant 0 : index
    %159 = vector.load %arg13[%c0_66, %c0_67] : memref<1x32xf32, #tpu.memory_space<vmem>>, vector<1x32xf32>
    %160 = vector.broadcast %159 : vector<1x32xf32> to vector<8x32xf32>
    %161 = arith.addf %158, %160 : vector<8x32xf32>
    %162 = arith.addf %119, %161 : vector<8x32xf32>
    %c0_68 = arith.constant 0 : index
    %c0_69 = arith.constant 0 : index
    %c0_70 = arith.constant 0 : index
    %163 = vector.load %arg14[%c0_68, %c0_69, %c0_70] : memref<1x8x32xf32, #tpu.memory_space<vmem>>, vector<1x8x32xf32>
    %164 = vector.shape_cast %163 : vector<1x8x32xf32> to vector<8x32xf32>
    %165 = vector.shape_cast %162 : vector<8x32xf32> to vector<1x8x32xf32>
    tpu.vector_store %arg14[%c0_68, %c0_69, %c0_70], %165 {strides = array<i32>} : memref<1x8x32xf32, #tpu.memory_space<vmem>>, vector<1x8x32xf32>,
    return
  }
  func.func @transform_0(%arg0: i32) -> (i32, i32, i32) {
    %c0_i32 = arith.constant 0 : i32
    %c0_i32_0 = arith.constant 0 : i32
    %c0_i32_1 = arith.constant 0 : i32
    return %arg0, %c0_i32, %c0_i32_0 : i32, i32, i32
  }
  func.func @transform_1(%arg0: i32) -> (i32, i32) {
    %c0_i32 = arith.constant 0 : i32
    %c0_i32_0 = arith.constant 0 : i32
    %c0_i32_1 = arith.constant 0 : i32
    return %c0_i32, %c0_i32_0 : i32, i32
  }
  func.func @transform_2(%arg0: i32) -> (i32, i32) {
    %c0_i32 = arith.constant 0 : i32
    %c0_i32_0 = arith.constant 0 : i32
    %c0_i32_1 = arith.constant 0 : i32
    return %c0_i32, %c0_i32_0 : i32, i32
  }
  func.func @transform_3(%arg0: i32) -> (i32, i32) {
    %c0_i32 = arith.constant 0 : i32
    %c0_i32_0 = arith.constant 0 : i32
    %c0_i32_1 = arith.constant 0 : i32
    return %c0_i32, %c0_i32_0 : i32, i32
  }
  func.func @transform_4(%arg0: i32) -> (i32, i32) {
    %c0_i32 = arith.constant 0 : i32
    %c0_i32_0 = arith.constant 0 : i32
    %c0_i32_1 = arith.constant 0 : i32
    return %c0_i32, %c0_i32_0 : i32, i32
  }
  func.func @transform_5(%arg0: i32) -> (i32, i32, i32) {
    %c0_i32 = arith.constant 0 : i32
    %c0_i32_0 = arith.constant 0 : i32
    %c0_i32_1 = arith.constant 0 : i32
    %c0_i32_2 = arith.constant 0 : i32
    return %c0_i32, %c0_i32_0, %c0_i32_1 : i32, i32, i32
  }
  func.func @transform_6(%arg0: i32) -> (i32, i32) {
    %c0_i32 = arith.constant 0 : i32
    %c0_i32_0 = arith.constant 0 : i32
    %c0_i32_1 = arith.constant 0 : i32
    return %c0_i32, %c0_i32_0 : i32, i32
  }
  func.func @transform_7(%arg0: i32) -> (i32, i32) {
    %c0_i32 = arith.constant 0 : i32
    %c0_i32_0 = arith.constant 0 : i32
    %c0_i32_1 = arith.constant 0 : i32
    return %c0_i32, %c0_i32_0 : i32, i32
  }
  func.func @transform_8(%arg0: i32) -> (i32, i32) {
    %c0_i32 = arith.constant 0 : i32
    %c0_i32_0 = arith.constant 0 : i32
    %c0_i32_1 = arith.constant 0 : i32
    return %c0_i32, %c0_i32_0 : i32, i32
  }
  func.func @transform_9(%arg0: i32) -> (i32, i32) {
    %c0_i32 = arith.constant 0 : i32
    %c0_i32_0 = arith.constant 0 : i32
    %c0_i32_1 = arith.constant 0 : i32
    return %c0_i32, %c0_i32_0 : i32, i32
  }
  func.func @transform_10(%arg0: i32) -> (i32, i32) {
    %c0_i32 = arith.constant 0 : i32
    %c0_i32_0 = arith.constant 0 : i32
    %c0_i32_1 = arith.constant 0 : i32
    return %c0_i32, %c0_i32_0 : i32, i32
  }
  func.func @transform_11(%arg0: i32) -> (i32, i32) {
    %c0_i32 = arith.constant 0 : i32
    %c0_i32_0 = arith.constant 0 : i32
    %c0_i32_1 = arith.constant 0 : i32
    return %c0_i32, %c0_i32_0 : i32, i32
  }
  func.func @transform_12(%arg0: i32) -> (i32, i32) {
    %c0_i32 = arith.constant 0 : i32
    %c0_i32_0 = arith.constant 0 : i32
    %c0_i32_1 = arith.constant 0 : i32
    return %c0_i32, %c0_i32_0 : i32, i32
  }
  func.func @transform_13(%arg0: i32) -> (i32, i32, i32) {
    %c0_i32 = arith.constant 0 : i32
    %c0_i32_0 = arith.constant 0 : i32
    %c0_i32_1 = arith.constant 0 : i32
    return %arg0, %c0_i32, %c0_i32_0 : i32, i32, i32
  }
}

</mosaic_0001>

<llo_original>
// kernel: tpu_custom_call.1
$region0: #{tpu_custom_call.1}
  #allocation0 [shape = 'u32[]', space=smem, size = 0x4, offset = 0x4, fixed_abs, tag = 'smem constant byte address 0x4 - core index']
  #allocation1 [shape = 'u32[144,128]{1,0:T(1,128)}', space=vmem, size = 0x12000, scoped, tag = 'internal scratch']
  %s0 = inlined_call_operand.vmem [shape: f32[2,8,32], index: 0, kind: input, shape index: {}]
  %s1 = inlined_call_operand.vmem [shape: f32[1,32], index: 1, kind: input, shape index: {}]
  %s2 = inlined_call_operand.vmem [shape: f32[1,32], index: 2, kind: input, shape index: {}]
  %s3 = inlined_call_operand.vmem [shape: bf16[32,96], index: 3, kind: input, shape index: {}]
  %s4 = inlined_call_operand.vmem [shape: f32[1,96], index: 4, kind: input, shape index: {}]
  %s5 = inlined_call_operand.vmem [shape: bf16[4,8,32], index: 5, kind: input, shape index: {}]
  %s6 = inlined_call_operand.vmem [shape: f32[1,32], index: 6, kind: input, shape index: {}]
  %s7 = inlined_call_operand.vmem [shape: f32[1,32], index: 7, kind: input, shape index: {}]
  %s8 = inlined_call_operand.vmem [shape: f32[1,32], index: 8, kind: input, shape index: {}]
  %s9 = inlined_call_operand.vmem [shape: bf16[32,128], index: 9, kind: input, shape index: {}]
  %s10 = inlined_call_operand.vmem [shape: f32[1,128], index: 10, kind: input, shape index: {}]
  %s11 = inlined_call_operand.vmem [shape: bf16[128,32], index: 11, kind: input, shape index: {}]
  %s12 = inlined_call_operand.vmem [shape: f32[1,32], index: 12, kind: input, shape index: {}]
  %s13 = inlined_call_operand.hbm [shape: f32[2,8,32], index: 13, kind: output, shape index: {}]
  %s14 = sld [smem:[#allocation0]]
  $region85: #{tpu_custom_call.1} parent=0
    _
  %s16 = ssub.s32 1, %s14
  %s17 = scalar_select 0, %s16, %s14
  $region1: #{tpu_custom_call.1} parent=0
    #allocation2 [shape = 'u8[8192]{0}', space=vmem, size = 0x2000, scoped, tag = 'output window, operand 0']
    #allocation3 [shape = 's32[2]{0}', space=sflag, size = 0x8, scoped, tag = 'scoped memory for tpu_custom_call.1']
    %18 = vsyncpa [#allocation3], 0
    %s19 = scalar_lea.sflag [#allocation3], 1
    %20 = vsyncpa %s19, 0
    loop: start=0, step=1, limit=4
    $region2: #{tpu_custom_call.1} parent=1 // loop_pre_header
      _
    $region3: #{tpu_custom_call.1} parent=1 // loop_header
      %s22 = sphi 0, %s26
      %p23 = scmp.ge.s32.totalorder %s22, 4
      %s32 = sphi 0, %s34
      %s35 = sphi 0, %s32
      %s36 = sphi 0, %s35
      %s52 = sphi 0, %s36
      %s56 = sphi 0, %s56
      %s58 = sphi 0, %s56
      %s59 = sphi 0, %s58
      %s73 = sphi 0, %s59
      %s77 = sphi 0, %s77
      %s79 = sphi 0, %s77
      %s80 = sphi 0, %s79
      %s94 = sphi 0, %s80
      %s98 = sphi 0, %s98
      %s100 = sphi 0, %s98
      %s101 = sphi 0, %s100
      %s115 = sphi 0, %s101
      %s119 = sphi 0, %s119
      %s121 = sphi 0, %s119
      %s122 = sphi 0, %s121
      %s136 = sphi 0, %s122
      %s140 = sphi 0, %s140
      %s142 = sphi 0, %s140
      %s143 = sphi 0, %s142
      %s157 = sphi 0, %s143
      %s161 = sphi 0, %s161
      %s163 = sphi 0, %s161
      %s164 = sphi 0, %s163
      %s178 = sphi 0, %s164
      %s182 = sphi 0, %s182
      %s184 = sphi 0, %s182
      %s185 = sphi 0, %s184
      %s199 = sphi 0, %s185
      %s203 = sphi 0, %s203
      %s205 = sphi 0, %s203
      %s206 = sphi 0, %s205
      %s220 = sphi 0, %s206
      %s224 = sphi 0, %s224
      %s226 = sphi 0, %s224
      %s227 = sphi 0, %s226
      %s241 = sphi 0, %s227
      %s245 = sphi 0, %s245
      %s247 = sphi 0, %s245
      %s248 = sphi 0, %s247
      %s262 = sphi 0, %s248
      %s266 = sphi 0, %s266
      %s268 = sphi 0, %s266
      %s269 = sphi 0, %s268
      %s283 = sphi 0, %s269
      %s287 = sphi 0, %s287
      %s289 = sphi 0, %s287
      %s290 = sphi 0, %s289
      %s304 = sphi 0, %s290
      %s310 = sphi 0, %s312
      %s313 = sphi 0, %s310
      %s314 = sphi 0, %s313
      %s330 = sphi 0, %s314
    $region4: #{tpu_custom_call.1} parent=1 // loop_header_branch
      %25 = sbr.rel (%p23) target = $region8
    $region5: #{tpu_custom_call.1} parent=1 // loop_body
      %s27 = ssub.s32 %s22, 1
      %s28 = ssub.s32 %s22, 2
      %s29 = sadd.s32 %s22, 1
      %s30 = ssub.s32 %s22, %s29
      %p31 = scmp.eq.s32.totalorder %s30, 0
      %s33 = sadd.s32 %s32, 1
      %s34 = scalar_select %p31, %s32, %s33
      %p37 = pneg %p31
      %p38 = scmp.eq.s32.totalorder %s22, 1
      %p39 = por %p37, %p38
      %p40 = scmp.ne.s32.totalorder %s32, %s35
      %p41 = scmp.eq.s32.totalorder %s22, 0
      %p42 = por %p40, %p41
      %p43 = scmp.ne.s32.totalorder %s32, %s35
      %p44 = scmp.eq.s32.totalorder %s27, 1
      %p45 = por %p43, %p44
      %p46 = scmp.ne.s32.totalorder %s35, %s36
      %p47 = scmp.eq.s32.totalorder %s27, 0
      %p48 = por %p46, %p47
      %p49 = scmp.ne.s32.totalorder %s35, %s36
      %p50 = scmp.eq.s32.totalorder %s28, 1
      %p51 = por %p49, %p50
      %p53 = scmp.ne.s32.totalorder %s36, %s52
      %p54 = scmp.eq.s32.totalorder %s28, 0
      %p55 = por %p53, %p54
      %s57 = sadd.s32 %s56, 1
      %p60 = scmp.eq.s32.totalorder %s22, 1
      %p61 = scmp.ne.s32.totalorder %s56, %s58
      %p62 = scmp.eq.s32.totalorder %s22, 0
      %p63 = por %p61, %p62
      %p64 = scmp.ne.s32.totalorder %s56, %s58
      %p65 = scmp.eq.s32.totalorder %s27, 1
      %p66 = por %p64, %p65
      %p67 = scmp.ne.s32.totalorder %s58, %s59
      %p68 = scmp.eq.s32.totalorder %s27, 0
      %p69 = por %p67, %p68
      %p70 = scmp.ne.s32.totalorder %s58, %s59
      %p71 = scmp.eq.s32.totalorder %s28, 1
      %p72 = por %p70, %p71
      %p74 = scmp.ne.s32.totalorder %s59, %s73
      %p75 = scmp.eq.s32.totalorder %s28, 0
      %p76 = por %p74, %p75
      %s78 = sadd.s32 %s77, 1
      %p81 = scmp.eq.s32.totalorder %s22, 1
      %p82 = scmp.ne.s32.totalorder %s77, %s79
      %p83 = scmp.eq.s32.totalorder %s22, 0
      %p84 = por %p82, %p83
      %p85 = scmp.ne.s32.totalorder %s77, %s79
      %p86 = scmp.eq.s32.totalorder %s27, 1
      %p87 = por %p85, %p86
      %p88 = scmp.ne.s32.totalorder %s79, %s80
      %p89 = scmp.eq.s32.totalorder %s27, 0
      %p90 = por %p88, %p89
      %p91 = scmp.ne.s32.totalorder %s79, %s80
      %p92 = scmp.eq.s32.totalorder %s28, 1
      %p93 = por %p91, %p92
      %p95 = scmp.ne.s32.totalorder %s80, %s94
      %p96 = scmp.eq.s32.totalorder %s28, 0
      %p97 = por %p95, %p96
      %s99 = sadd.s32 %s98, 1
      %p102 = scmp.eq.s32.totalorder %s22, 1
      %p103 = scmp.ne.s32.totalorder %s98, %s100
      %p104 = scmp.eq.s32.totalorder %s22, 0
      %p105 = por %p103, %p104
      %p106 = scmp.ne.s32.totalorder %s98, %s100
      %p107 = scmp.eq.s32.totalorder %s27, 1
      %p108 = por %p106, %p107
      %p109 = scmp.ne.s32.totalorder %s100, %s101
      %p110 = scmp.eq.s32.totalorder %s27, 0
      %p111 = por %p109, %p110
      %p112 = scmp.ne.s32.totalorder %s100, %s101
      %p113 = scmp.eq.s32.totalorder %s28, 1
      %p114 = por %p112, %p113
      %p116 = scmp.ne.s32.totalorder %s101, %s115
      %p117 = scmp.eq.s32.totalorder %s28, 0
      %p118 = por %p116, %p117
      %s120 = sadd.s32 %s119, 1
      %p123 = scmp.eq.s32.totalorder %s22, 1
      %p124 = scmp.ne.s32.totalorder %s119, %s121
      %p125 = scmp.eq.s32.totalorder %s22, 0
      %p126 = por %p124, %p125
      %p127 = scmp.ne.s32.totalorder %s119, %s121
      %p128 = scmp.eq.s32.totalorder %s27, 1
      %p129 = por %p127, %p128
      %p130 = scmp.ne.s32.totalorder %s121, %s122
      %p131 = scmp.eq.s32.totalorder %s27, 0
      %p132 = por %p130, %p131
      %p133 = scmp.ne.s32.totalorder %s121, %s122
      %p134 = scmp.eq.s32.totalorder %s28, 1
      %p135 = por %p133, %p134
      %p137 = scmp.ne.s32.totalorder %s122, %s136
      %p138 = scmp.eq.s32.totalorder %s28, 0
      %p139 = por %p137, %p138
      %s141 = sadd.s32 %s140, 1
      %p144 = scmp.eq.s32.totalorder %s22, 1
      %p145 = scmp.ne.s32.totalorder %s140, %s142
      %p146 = scmp.eq.s32.totalorder %s22, 0
      %p147 = por %p145, %p146
      %p148 = scmp.ne.s32.totalorder %s140, %s142
      %p149 = scmp.eq.s32.totalorder %s27, 1
      %p150 = por %p148, %p149
      %p151 = scmp.ne.s32.totalorder %s142, %s143
      %p152 = scmp.eq.s32.totalorder %s27, 0
      %p153 = por %p151, %p152
      %p154 = scmp.ne.s32.totalorder %s142, %s143
      %p155 = scmp.eq.s32.totalorder %s28, 1
      %p156 = por %p154, %p155
      %p158 = scmp.ne.s32.totalorder %s143, %s157
      %p159 = scmp.eq.s32.totalorder %s28, 0
      %p160 = por %p158, %p159
      %s162 = sadd.s32 %s161, 1
      %p165 = scmp.eq.s32.totalorder %s22, 1
      %p166 = scmp.ne.s32.totalorder %s161, %s163
      %p167 = scmp.eq.s32.totalorder %s22, 0
      %p168 = por %p166, %p167
      %p169 = scmp.ne.s32.totalorder %s161, %s163
      %p170 = scmp.eq.s32.totalorder %s27, 1
      %p171 = por %p169, %p170
      %p172 = scmp.ne.s32.totalorder %s163, %s164
      %p173 = scmp.eq.s32.totalorder %s27, 0
      %p174 = por %p172, %p173
      %p175 = scmp.ne.s32.totalorder %s163, %s164
      %p176 = scmp.eq.s32.totalorder %s28, 1
      %p177 = por %p175, %p176
      %p179 = scmp.ne.s32.totalorder %s164, %s178
      %p180 = scmp.eq.s32.totalorder %s28, 0
      %p181 = por %p179, %p180
      %s183 = sadd.s32 %s182, 1
      %p186 = scmp.eq.s32.totalorder %s22, 1
      %p187 = scmp.ne.s32.totalorder %s182, %s184
      %p188 = scmp.eq.s32.totalorder %s22, 0
      %p189 = por %p187, %p188
      %p190 = scmp.ne.s32.totalorder %s182, %s184
      %p191 = scmp.eq.s32.totalorder %s27, 1
      %p192 = por %p190, %p191
      %p193 = scmp.ne.s32.totalorder %s184, %s185
      %p194 = scmp.eq.s32.totalorder %s27, 0
      %p195 = por %p193, %p194
      %p196 = scmp.ne.s32.totalorder %s184, %s185
      %p197 = scmp.eq.s32.totalorder %s28, 1
      %p198 = por %p196, %p197
      %p200 = scmp.ne.s32.totalorder %s185, %s199
      %p201 = scmp.eq.s32.totalorder %s28, 0
      %p202 = por %p200, %p201
      %s204 = sadd.s32 %s203, 1
      %p207 = scmp.eq.s32.totalorder %s22, 1
      %p208 = scmp.ne.s32.totalorder %s203, %s205
      %p209 = scmp.eq.s32.totalorder %s22, 0
      %p210 = por %p208, %p209
      %p211 = scmp.ne.s32.totalorder %s203, %s205
      %p212 = scmp.eq.s32.totalorder %s27, 1
      %p213 = por %p211, %p212
      %p214 = scmp.ne.s32.totalorder %s205, %s206
      %p215 = scmp.eq.s32.totalorder %s27, 0
      %p216 = por %p214, %p215
      %p217 = scmp.ne.s32.totalorder %s205, %s206
      %p218 = scmp.eq.s32.totalorder %s28, 1
      %p219 = por %p217, %p218
      %p221 = scmp.ne.s32.totalorder %s206, %s220
      %p222 = scmp.eq.s32.totalorder %s28, 0
      %p223 = por %p221, %p222
      %s225 = sadd.s32 %s224, 1
      %p228 = scmp.eq.s32.totalorder %s22, 1
      %p229 = scmp.ne.s32.totalorder %s224, %s226
      %p230 = scmp.eq.s32.totalorder %s22, 0
      %p231 = por %p229, %p230
      %p232 = scmp.ne.s32.totalorder %s224, %s226
      %p233 = scmp.eq.s32.totalorder %s27, 1
      %p234 = por %p232, %p233
      %p235 = scmp.ne.s32.totalorder %s226, %s227
      %p236 = scmp.eq.s32.totalorder %s27, 0
      %p237 = por %p235, %p236
      %p238 = scmp.ne.s32.totalorder %s226, %s227
      %p239 = scmp.eq.s32.totalorder %s28, 1
      %p240 = por %p238, %p239
      %p242 = scmp.ne.s32.totalorder %s227, %s241
      %p243 = scmp.eq.s32.totalorder %s28, 0
      %p244 = por %p242, %p243
      %s246 = sadd.s32 %s245, 1
      %p249 = scmp.eq.s32.totalorder %s22, 1
      %p250 = scmp.ne.s32.totalorder %s245, %s247
      %p251 = scmp.eq.s32.totalorder %s22, 0
      %p252 = por %p250, %p251
      %p253 = scmp.ne.s32.totalorder %s245, %s247
      %p254 = scmp.eq.s32.totalorder %s27, 1
      %p255 = por %p253, %p254
      %p256 = scmp.ne.s32.totalorder %s247, %s248
      %p257 = scmp.eq.s32.totalorder %s27, 0
      %p258 = por %p256, %p257
      %p259 = scmp.ne.s32.totalorder %s247, %s248
      %p260 = scmp.eq.s32.totalorder %s28, 1
      %p261 = por %p259, %p260
      %p263 = scmp.ne.s32.totalorder %s248, %s262
      %p264 = scmp.eq.s32.totalorder %s28, 0
      %p265 = por %p263, %p264
      %s267 = sadd.s32 %s266, 1
      %p270 = scmp.eq.s32.totalorder %s22, 1
      %p271 = scmp.ne.s32.totalorder %s266, %s268
      %p272 = scmp.eq.s32.totalorder %s22, 0
      %p273 = por %p271, %p272
      %p274 = scmp.ne.s32.totalorder %s266, %s268
      %p275 = scmp.eq.s32.totalorder %s27, 1
      %p276 = por %p274, %p275
      %p277 = scmp.ne.s32.totalorder %s268, %s269
      %p278 = scmp.eq.s32.totalorder %s27, 0
      %p279 = por %p277, %p278
      %p280 = scmp.ne.s32.totalorder %s268, %s269
      %p281 = scmp.eq.s32.totalorder %s28, 1
      %p282 = por %p280, %p281
      %p284 = scmp.ne.s32.totalorder %s269, %s283
      %p285 = scmp.eq.s32.totalorder %s28, 0
      %p286 = por %p284, %p285
      %s288 = sadd.s32 %s287, 1
      %p291 = scmp.eq.s32.totalorder %s22, 1
      %p292 = scmp.ne.s32.totalorder %s287, %s289
      %p293 = scmp.eq.s32.totalorder %s22, 0
      %p294 = por %p292, %p293
      %p295 = scmp.ne.s32.totalorder %s287, %s289
      %p296 = scmp.eq.s32.totalorder %s27, 1
      %p297 = por %p295, %p296
      %p298 = scmp.ne.s32.totalorder %s289, %s290
      %p299 = scmp.eq.s32.totalorder %s27, 0
      %p300 = por %p298, %p299
      %p301 = scmp.ne.s32.totalorder %s289, %s290
      %p302 = scmp.eq.s32.totalorder %s28, 1
      %p303 = por %p301, %p302
      %p305 = scmp.ne.s32.totalorder %s290, %s304
      %p306 = scmp.eq.s32.totalorder %s28, 0
      %p307 = por %p305, %p306
      %s308 = ssub.s32 %s22, %s29
      %p309 = scmp.eq.s32.totalorder %s308, 0
      %s311 = sadd.s32 %s310, 1
      %s312 = scalar_select %p309, %s310, %s311
      %p315 = pneg %p309
      %p316 = scmp.eq.s32.totalorder %s22, 1
      %p317 = por %p315, %p316
      %p318 = scmp.ne.s32.totalorder %s310, %s313
      %p319 = scmp.eq.s32.totalorder %s22, 0
      %p320 = por %p318, %p319
      %p321 = scmp.ne.s32.totalorder %s310, %s313
      %p322 = scmp.eq.s32.totalorder %s27, 1
      %p323 = por %p321, %p322
      %p324 = scmp.ne.s32.totalorder %s313, %s314
      %p325 = scmp.eq.s32.totalorder %s27, 0
      %p326 = por %p324, %p325
      %p327 = scmp.ne.s32.totalorder %s313, %s314
      %p328 = scmp.eq.s32.totalorder %s28, 1
      %p329 = por %p327, %p328
      %p331 = scmp.ne.s32.totalorder %s314, %s330
      %p332 = scmp.eq.s32.totalorder %s28, 0
      %p333 = por %p331, %p332
      %p334 = scmp.le.s32.totalorder 1, %s22
      %p335 = scmp.lt.s32.totalorder %s22, 3
      %p336 = pnand %p334, %p335
      %p337 = pneg %p336
      // Predicated region
      $region9: #{tpu_custom_call.1} parent=5 // pred_check
        _
      $region10: #{tpu_custom_call.1} parent=5 // pred_check_branch
        %339 = sbr.rel (%p336) target = $region12
      $region11: #{tpu_custom_call.1} parent=5 // pred_region
        %s340 = ssub.s32 %s22, 1
        // Predicated region
        $region13: #{tpu_custom_call.1} parent=11 // pred_check
          %p341 = pneg %p69
        $region14: #{tpu_custom_call.1} parent=11 // pred_check_branch
          %343 = sbr.rel (%p341) target = $region16
        $region15: #{tpu_custom_call.1} parent=11 // pred_region
          _
        $region16: #{tpu_custom_call.1} parent=11 // pred_fallthru
          _
        // Predicated region
        $region17: #{tpu_custom_call.1} parent=11 // pred_check
          %p344 = pneg %p90
        $region18: #{tpu_custom_call.1} parent=11 // pred_check_branch
          %346 = sbr.rel (%p344) target = $region20
        $region19: #{tpu_custom_call.1} parent=11 // pred_region
          _
        $region20: #{tpu_custom_call.1} parent=11 // pred_fallthru
          _
        // Predicated region
        $region21: #{tpu_custom_call.1} parent=11 // pred_check
          %p347 = pneg %p111
        $region22: #{tpu_custom_call.1} parent=11 // pred_check_branch
          %349 = sbr.rel (%p347) target = $region24
        $region23: #{tpu_custom_call.1} parent=11 // pred_region
          _
        $region24: #{tpu_custom_call.1} parent=11 // pred_fallthru
          _
        // Predicated region
        $region25: #{tpu_custom_call.1} parent=11 // pred_check
          %p350 = pneg %p132
        $region26: #{tpu_custom_call.1} parent=11 // pred_check_branch
          %352 = sbr.rel (%p350) target = $region28
        $region27: #{tpu_custom_call.1} parent=11 // pred_region
          _
        $region28: #{tpu_custom_call.1} parent=11 // pred_fallthru
          _
        // Predicated region
        $region29: #{tpu_custom_call.1} parent=11 // pred_check
          %p353 = pneg %p153
        $region30: #{tpu_custom_call.1} parent=11 // pred_check_branch
          %355 = sbr.rel (%p353) target = $region32
        $region31: #{tpu_custom_call.1} parent=11 // pred_region
          _
        $region32: #{tpu_custom_call.1} parent=11 // pred_fallthru
          _
        // Predicated region
        $region33: #{tpu_custom_call.1} parent=11 // pred_check
          %p356 = pneg %p174
        $region34: #{tpu_custom_call.1} parent=11 // pred_check_branch
          %358 = sbr.rel (%p356) target = $region36
        $region35: #{tpu_custom_call.1} parent=11 // pred_region
          _
        $region36: #{tpu_custom_call.1} parent=11 // pred_fallthru
          _
        // Predicated region
        $region37: #{tpu_custom_call.1} parent=11 // pred_check
          %p359 = pneg %p195
        $region38: #{tpu_custom_call.1} parent=11 // pred_check_branch
          %361 = sbr.rel (%p359) target = $region40
        $region39: #{tpu_custom_call.1} parent=11 // pred_region
          _
        $region40: #{tpu_custom_call.1} parent=11 // pred_fallthru
          _
        // Predicated region
        $region41: #{tpu_custom_call.1} parent=11 // pred_check
          %p362 = pneg %p216
        $region42: #{tpu_custom_call.1} parent=11 // pred_check_branch
          %364 = sbr.rel (%p362) target = $region44
        $region43: #{tpu_custom_call.1} parent=11 // pred_region
          _
        $region44: #{tpu_custom_call.1} parent=11 // pred_fallthru
          _
        // Predicated region
        $region45: #{tpu_custom_call.1} parent=11 // pred_check
          %p365 = pneg %p237
        $region46: #{tpu_custom_call.1} parent=11 // pred_check_branch
          %367 = sbr.rel (%p365) target = $region48
        $region47: #{tpu_custom_call.1} parent=11 // pred_region
          _
        $region48: #{tpu_custom_call.1} parent=11 // pred_fallthru
          _
        // Predicated region
        $region49: #{tpu_custom_call.1} parent=11 // pred_check
          %p368 = pneg %p258
        $region50: #{tpu_custom_call.1} parent=11 // pred_check_branch
          %370 = sbr.rel (%p368) target = $region52
        $region51: #{tpu_custom_call.1} parent=11 // pred_region
          _
        $region52: #{tpu_custom_call.1} parent=11 // pred_fallthru
          _
        // Predicated region
        $region53: #{tpu_custom_call.1} parent=11 // pred_check
          %p371 = pneg %p279
        $region54: #{tpu_custom_call.1} parent=11 // pred_check_branch
          %373 = sbr.rel (%p371) target = $region56
        $region55: #{tpu_custom_call.1} parent=11 // pred_region
          _
        $region56: #{tpu_custom_call.1} parent=11 // pred_fallthru
          _
        // Predicated region
        $region57: #{tpu_custom_call.1} parent=11 // pred_check
          %p374 = pneg %p300
        $region58: #{tpu_custom_call.1} parent=11 // pred_check_branch
          %376 = sbr.rel (%p374) target = $region60
        $region59: #{tpu_custom_call.1} parent=11 // pred_region
          _
        $region60: #{tpu_custom_call.1} parent=11 // pred_fallthru
          _
      $region12: #{tpu_custom_call.1} parent=5 // pred_fallthru
        _
      %p377 = scmp.lt.s32.totalorder %s22, 2
      // Predicated region
      $region61: #{tpu_custom_call.1} parent=5 // pred_check
        %p378 = pneg %p377
      $region62: #{tpu_custom_call.1} parent=5 // pred_check_branch
        %380 = sbr.rel (%p378) target = $region64
      $region63: #{tpu_custom_call.1} parent=5 // pred_region
        // Predicated region
        $region65: #{tpu_custom_call.1} parent=63 // pred_check
          %p381 = pneg %p42
        $region66: #{tpu_custom_call.1} parent=63 // pred_check_branch
          %383 = sbr.rel (%p381) target = $region68
        $region67: #{tpu_custom_call.1} parent=63 // pred_region
          %p384 = scmp.lt.s32.totalorder %s22, 1
          %s385 = scalar_select %p384, %s22, 1
          %s386 = smul.addr %s385, 8
          %s387 = scalar_lea.vmem %s0, %s386
        $region68: #{tpu_custom_call.1} parent=63 // pred_fallthru
          _
      $region64: #{tpu_custom_call.1} parent=5 // pred_fallthru
        _
      %p388 = scmp.le.s32.totalorder 1, %s22
      %p389 = scmp.lt.s32.totalorder %s22, 3
      %p390 = pnand %p388, %p389
      %p391 = pneg %p390
      // Predicated region
      $region69: #{tpu_custom_call.1} parent=5 // pred_check
        _
      $region70: #{tpu_custom_call.1} parent=5 // pred_check_branch
        %393 = sbr.rel (%p390) target = $region72
      $region71: #{tpu_custom_call.1} parent=5 // pred_region
        %s394 = ssub.s32 %s22, 1
        %p395 = scmp.lt.s32.totalorder %s27, 1
        %s396 = scalar_select %p395, %s27, 1
        %s397 = smul.addr %s396, 8
        %s398 = scalar_lea.vmem %s0, %s397
        %p399 = pneg %p48
        %p400 = pneg %p45
        %p401 = pneg %p69
        %p402 = pneg %p66
        %p403 = pneg %p90
        %p404 = pneg %p87
        %p405 = pneg %p111
        %p406 = pneg %p108
        %p407 = pneg %p132
        %p408 = pneg %p129
        %p409 = pneg %p153
        %p410 = pneg %p150
        %p411 = pneg %p174
        %p412 = pneg %p171
        %p413 = pneg %p195
        %p414 = pneg %p192
        %p415 = pneg %p216
        %p416 = pneg %p213
        %p417 = pneg %p237
        %p418 = pneg %p234
        %p419 = pneg %p258
        %p420 = pneg %p255
        %p421 = pneg %p279
        %p422 = pneg %p276
        %p423 = pneg %p300
        %p424 = pneg %p297
        %p425 = pneg %p326
        %p426 = pneg %p323
        %s427 = sand.u32 %s313, 1
        %s428 = scalar_lea.sflag [#allocation3], %s427
        %s429 = sand.u32 %s313, 1
        %s430 = smul.addr %s429, 8
        %s431 = scalar_lea.vmem [#allocation2], %s430
        %p432 = scmp.lt.s32.totalorder %s27, 1
        %s433 = scalar_select %p432, %s27, 1
        %s434 = smul.addr %s433, 8
        %s435 = scalar_lea.vmem %s0, %s434
        %v437 = vld [vmem:[%s435] sm:$0xff]
        %v438 = vld [vmem:[%s1] sm:$0x1]
        %v439 = vld [vmem:[%s2] sm:$0x1]
        %vm440 = vcmask 261120
        %v441 = vsel %vm440, %v437, 0.0
        %442 = vadd.xlane.f32.xlu0 %v441
        %v443 = vpop.xlane.xlu0 %442
        %v444 = vrcp.pop 32.0
        %v445 = vmul.f32 %v443, %v444
        %v446 = vsub.f32 %v437, %v445
        %v447 = vmul.f32 %v446, %v446
        %v448 = vsel %vm440, %v447, 0.0
        %449 = vadd.xlane.f32.xlu0 %v448
        %v450 = vpop.xlane.xlu0 %449
        %v451 = vmul.f32 %v450, %v444
        %v452 = vadd.f32 %v451, 1e-05
        %v453 = vrsqrt.pop %v452
        %v454 = vmul.f32 %v446, %v453
        %v456 = vlaneseq
        %v457 = vshrl.u32 %v456, 7
        %v458 = vsub.s32 0, %v457
        %v459 = vrot.slane %v438, %v458
        %v461 = vmul.f32 %v454, %v459
        %v463 = vlaneseq
        %v464 = vshrl.u32 %v463, 7
        %v465 = vsub.s32 0, %v464
        %v466 = vrot.slane %v439, %v465
        %v468 = vadd.f32 %v461, %v466
        %v469 = vpack.c.bf16 %v468, %v468
        %v470 = vld [vmem:[%s3] sm:$0xf]
        %v471 = vld [vmem:[%s3 + $0x4] sm:$0xf]
        %v472 = vld [vmem:[%s3 + $0x8] sm:$0xf]
        %v473 = vld [vmem:[%s3 + $0xc] sm:$0xf]
        %v474 = vld [vmem:[%s4] sm:$0x1]
        %v476 = vlaneseq
        %v477 = vshrl.u32 %v476, 7
        %v478 = vsub.s32 0, %v477
        %v479 = vrot.slane %v474, %v478
        %v485 = vunpack.c.l.b16 %v470
        %v486 = vunpack.c.l.b16 %v471
        %v487 = vunpack.c.l.b16 %v472
        %v488 = vunpack.c.l.b16 %v473
        %v489 = vpack.c.b16 %v486, %v485
        %v490 = vpack.c.b16 %v488, %v487
        %v494 = vsel %vm440, %v469, 0
        %496 = vmatprep.subr.bf16.mxu0 0
        %497 = vmatpush1.bf16.msra.mxu0 %v489
        %498 = vmatprep.subr.bf16.mxu0 0
        %499 = vmatpush1.bf16.msra.mxu0 %v490
        %500 = vmatprep.subr.bf16.mxu0 0
        %501 = vmatpush1.bf16.msra.mxu0 0
        %502 = vmatprep.subr.bf16.mxu0 0
        %503 = vmatpush1.bf16.msra.mxu0 0
        %504 = vmatprep.subr.bf16.mxu0 0
        %505 = vmatpush1.bf16.msra.mxu0 0
        %506 = vmatprep.subr.bf16.mxu0 0
        %507 = vmatpush1.bf16.msra.mxu0 0
        %508 = vmatprep.subr.bf16.mxu0 0
        %509 = vmatpush1.bf16.msra.mxu0 0
        %510 = vmatprep.subr.bf16.mxu0 0
        %511 = vmatpush1.bf16.msra.mxu0 0
        %512 = vmatprep.subr.bf16.mxu0 0
        %513 = vmatpush1.bf16.msra.mxu0 0
        %514 = vmatprep.subr.bf16.mxu0 0
        %515 = vmatpush1.bf16.msra.mxu0 0
        %516 = vmatprep.subr.bf16.mxu0 0
        %517 = vmatpush1.bf16.msra.mxu0 0
        %518 = vmatprep.subr.bf16.mxu0 0
        %519 = vmatpush1.bf16.msra.mxu0 0
        %520 = vmatprep.subr.bf16.mxu0 0
        %521 = vmatpush1.bf16.msra.mxu0 0
        %522 = vmatprep.subr.bf16.mxu0 0
        %523 = vmatpush1.bf16.msra.mxu0 0
        %524 = vmatprep.subr.bf16.mxu0 0
        %525 = vmatpush1.bf16.msra.mxu0 0
        %526 = vmatprep.subr.bf16.mxu0 0
        %527 = vmatpush1.bf16.msra.mxu0 0
        %528 = vmatprep.mubr.bf16.mxu0 0
        %529 = vmatmul.mubr.bf16.gmra.mrb[0].mxu0 %v494
        %v530 = vpop.f32.mrb[0].mxu0
        %v531 = vadd.f32 %v479, %v530
        %v532 = vpop.f32.mrb[0].mxu0
        %v533 = vpop.f32.mrb[0].mxu0
        %v534 = vpop.f32.mrb[0].mxu0
        %535 = vdwg.mxu0
        %v536 = vpack.c.bf16 %v531, %v531
        %538 = vrot.lane.b32.xlu0 %v536, 96
        %v539 = vpop.permute.xlu0 %538
        %vm540 = vcmask 64512
        %v542 = vsel %vm540, %v536, 0
        %v545 = vsel %vm540, %v539, 0
        %547 = vmatprep.subr.bf16.mxu0 0
        %548 = vmatpush1.bf16.xpose.msra.mxu0 %v545
        %549 = vmatprep.subr.bf16.mxu0 0
        %550 = vmatpush1.bf16.xpose.msra.mxu0 0
        %551 = vmatprep.subr.bf16.mxu0 0
        %552 = vmatpush1.bf16.xpose.msra.mxu0 0
        %553 = vmatprep.subr.bf16.mxu0 0
        %554 = vmatpush1.bf16.xpose.msra.mxu0 0
        %555 = vmatprep.subr.bf16.mxu0 0
        %556 = vmatpush1.bf16.xpose.msra.mxu0 0
        %557 = vmatprep.subr.bf16.mxu0 0
        %558 = vmatpush1.bf16.xpose.msra.mxu0 0
        %559 = vmatprep.subr.bf16.mxu0 0
        %560 = vmatpush1.bf16.xpose.msra.mxu0 0
        %561 = vmatprep.subr.bf16.mxu0 0
        %562 = vmatpush1.bf16.xpose.msra.mxu0 0
        %563 = vmatprep.subr.bf16.mxu0 0
        %564 = vmatpush1.bf16.xpose.msra.mxu0 0
        %565 = vmatprep.subr.bf16.mxu0 0
        %566 = vmatpush1.bf16.xpose.msra.mxu0 0
        %567 = vmatprep.subr.bf16.mxu0 0
        %568 = vmatpush1.bf16.xpose.msra.mxu0 0
        %569 = vmatprep.subr.bf16.mxu0 0
        %570 = vmatpush1.bf16.xpose.msra.mxu0 0
        %571 = vmatprep.subr.bf16.mxu0 0
        %572 = vmatpush1.bf16.xpose.msra.mxu0 0
        %573 = vmatprep.subr.bf16.mxu0 0
        %574 = vmatpush1.bf16.xpose.msra.mxu0 0
        %575 = vmatprep.subr.bf16.mxu0 0
        %576 = vmatpush1.bf16.xpose.msra.mxu0 0
        %577 = vmatprep.subr.bf16.mxu0 0
        %578 = vmatpush1.bf16.xpose.msra.mxu0 0
        %579 = vmatprep.mubr.bf16.mxu0 0
        %580 = vmatmul.mubr.bf16.gmra.mrb[0].mxu0 %v542
        %v581 = vpop.f32.mrb[0].mxu0
        %v582 = vadd.f32 0.0, %v581
        %v583 = vpop.f32.mrb[0].mxu0
        %v584 = vpop.f32.mrb[0].mxu0
        %v585 = vpop.f32.mrb[0].mxu0
        %586 = vdwg.mxu0
        %v587 = vsel %vm540, %v582, -inf
        %588 = vmax.xlane.f32.xlu0 %v587
        %v589 = vpop.xlane.xlu0 %588
        %v590 = vsub.f32 %v582, %v589
        %v591 = vmul.f32 %v590, 1.442695
        %v592 = vpow.pop %v591
        %v593 = vsel %vm540, %v592, 0.0
        %594 = vadd.xlane.f32.xlu0 %v593
        %v595 = vpop.xlane.xlu0 %594
        %v596 = vrcp.pop %v595
        %v597 = vmul.f32 %v592, %v596
        %v598 = vpack.c.bf16 %v597, %v597
        %599 = vrot.lane.b32.xlu0 %v536, 64
        %v600 = vpop.permute.xlu0 %599
        %v602 = vsel %vm540, %v598, 0
        %vm604 = vcmask 1043456
        %v606 = vsel %vm604, %v600, 0
        %608 = vmatprep.subr.bf16.mxu0 0
        %609 = vmatpush1.bf16.msra.mxu0 %v606
        %610 = vmatprep.subr.bf16.mxu0 0
        %611 = vmatpush1.bf16.msra.mxu0 0
        %612 = vmatprep.subr.bf16.mxu0 0
        %613 = vmatpush1.bf16.msra.mxu0 0
        %614 = vmatprep.subr.bf16.mxu0 0
        %615 = vmatpush1.bf16.msra.mxu0 0
        %616 = vmatprep.subr.bf16.mxu0 0
        %617 = vmatpush1.bf16.msra.mxu0 0
        %618 = vmatprep.subr.bf16.mxu0 0
        %619 = vmatpush1.bf16.msra.mxu0 0
        %620 = vmatprep.subr.bf16.mxu0 0
        %621 = vmatpush1.bf16.msra.mxu0 0
        %622 = vmatprep.subr.bf16.mxu0 0
        %623 = vmatpush1.bf16.msra.mxu0 0
        %624 = vmatprep.subr.bf16.mxu0 0
        %625 = vmatpush1.bf16.msra.mxu0 0
        %626 = vmatprep.subr.bf16.mxu0 0
        %627 = vmatpush1.bf16.msra.mxu0 0
        %628 = vmatprep.subr.bf16.mxu0 0
        %629 = vmatpush1.bf16.msra.mxu0 0
        %630 = vmatprep.subr.bf16.mxu0 0
        %631 = vmatpush1.bf16.msra.mxu0 0
        %632 = vmatprep.subr.bf16.mxu0 0
        %633 = vmatpush1.bf16.msra.mxu0 0
        %634 = vmatprep.subr.bf16.mxu0 0
        %635 = vmatpush1.bf16.msra.mxu0 0
        %636 = vmatprep.subr.bf16.mxu0 0
        %637 = vmatpush1.bf16.msra.mxu0 0
        %638 = vmatprep.subr.bf16.mxu0 0
        %639 = vmatpush1.bf16.msra.mxu0 0
        %640 = vmatprep.mubr.bf16.mxu0 0
        %641 = vmatmul.mubr.bf16.gmra.mrb[0].mxu0 %v602
        %v642 = vpop.f32.mrb[0].mxu0
        %v643 = vadd.f32 0.0, %v642
        %v644 = vpop.f32.mrb[0].mxu0
        %v645 = vpop.f32.mrb[0].mxu0
        %v646 = vpop.f32.mrb[0].mxu0
        %647 = vdwg.mxu0
        %v648 = vpack.c.bf16 %v643, %v643
        %v649 = vld [vmem:[%s5] sm:$0xf]
        %650 = vrot.lane.b32.xlu0 %v536, 120
        %v651 = vpop.permute.xlu0 %650
        %652 = vrot.lane.b32.xlu0 %v536, 88
        %v653 = vpop.permute.xlu0 %652
        %v655 = vsel %vm540, %v651, 0
        %v658 = vsel %vm540, %v653, 0
        %660 = vmatprep.subr.bf16.mxu0 0
        %661 = vmatpush1.bf16.xpose.msra.mxu0 %v658
        %662 = vmatprep.subr.bf16.mxu0 0
        %663 = vmatpush1.bf16.xpose.msra.mxu0 0
        %664 = vmatprep.subr.bf16.mxu0 0
        %665 = vmatpush1.bf16.xpose.msra.mxu0 0
        %666 = vmatprep.subr.bf16.mxu0 0
        %667 = vmatpush1.bf16.xpose.msra.mxu0 0
        %668 = vmatprep.subr.bf16.mxu0 0
        %669 = vmatpush1.bf16.xpose.msra.mxu0 0
        %670 = vmatprep.subr.bf16.mxu0 0
        %671 = vmatpush1.bf16.xpose.msra.mxu0 0
        %672 = vmatprep.subr.bf16.mxu0 0
        %673 = vmatpush1.bf16.xpose.msra.mxu0 0
        %674 = vmatprep.subr.bf16.mxu0 0
        %675 = vmatpush1.bf16.xpose.msra.mxu0 0
        %676 = vmatprep.subr.bf16.mxu0 0
        %677 = vmatpush1.bf16.xpose.msra.mxu0 0
        %678 = vmatprep.subr.bf16.mxu0 0
        %679 = vmatpush1.bf16.xpose.msra.mxu0 0
        %680 = vmatprep.subr.bf16.mxu0 0
        %681 = vmatpush1.bf16.xpose.msra.mxu0 0
        %682 = vmatprep.subr.bf16.mxu0 0
        %683 = vmatpush1.bf16.xpose.msra.mxu0 0
        %684 = vmatprep.subr.bf16.mxu0 0
        %685 = vmatpush1.bf16.xpose.msra.mxu0 0
        %686 = vmatprep.subr.bf16.mxu0 0
        %687 = vmatpush1.bf16.xpose.msra.mxu0 0
        %688 = vmatprep.subr.bf16.mxu0 0
        %689 = vmatpush1.bf16.xpose.msra.mxu0 0
        %690 = vmatprep.subr.bf16.mxu0 0
        %691 = vmatpush1.bf16.xpose.msra.mxu0 0
        %692 = vmatprep.mubr.bf16.mxu0 0
        %693 = vmatmul.mubr.bf16.gmra.mrb[0].mxu0 %v655
        %v694 = vpop.f32.mrb[0].mxu0
        %v695 = vadd.f32 0.0, %v694
        %v696 = vpop.f32.mrb[0].mxu0
        %v697 = vpop.f32.mrb[0].mxu0
        %v698 = vpop.f32.mrb[0].mxu0
        %699 = vdwg.mxu0
        %v700 = vsel %vm540, %v695, -inf
        %701 = vmax.xlane.f32.xlu0 %v700
        %v702 = vpop.xlane.xlu0 %701
        %v703 = vsub.f32 %v695, %v702
        %v704 = vmul.f32 %v703, 1.442695
        %v705 = vpow.pop %v704
        %v706 = vsel %vm540, %v705, 0.0
        %707 = vadd.xlane.f32.xlu0 %v706
        %v708 = vpop.xlane.xlu0 %707
        %v709 = vrcp.pop %v708
        %v710 = vmul.f32 %v705, %v709
        %v711 = vpack.c.bf16 %v710, %v710
        %712 = vrot.lane.b32.xlu0 %v536, 56
        %v713 = vpop.permute.xlu0 %712
        %v715 = vsel %vm540, %v711, 0
        %v718 = vsel %vm604, %v713, 0
        %720 = vmatprep.subr.bf16.mxu0 0
        %721 = vmatpush1.bf16.msra.mxu0 %v718
        %722 = vmatprep.subr.bf16.mxu0 0
        %723 = vmatpush1.bf16.msra.mxu0 0
        %724 = vmatprep.subr.bf16.mxu0 0
        %725 = vmatpush1.bf16.msra.mxu0 0
        %726 = vmatprep.subr.bf16.mxu0 0
        %727 = vmatpush1.bf16.msra.mxu0 0
        %728 = vmatprep.subr.bf16.mxu0 0
        %729 = vmatpush1.bf16.msra.mxu0 0
        %730 = vmatprep.subr.bf16.mxu0 0
        %731 = vmatpush1.bf16.msra.mxu0 0
        %732 = vmatprep.subr.bf16.mxu0 0
        %733 = vmatpush1.bf16.msra.mxu0 0
        %734 = vmatprep.subr.bf16.mxu0 0
        %735 = vmatpush1.bf16.msra.mxu0 0
        %736 = vmatprep.subr.bf16.mxu0 0
        %737 = vmatpush1.bf16.msra.mxu0 0
        %738 = vmatprep.subr.bf16.mxu0 0
        %739 = vmatpush1.bf16.msra.mxu0 0
        %740 = vmatprep.subr.bf16.mxu0 0
        %741 = vmatpush1.bf16.msra.mxu0 0
        %742 = vmatprep.subr.bf16.mxu0 0
        %743 = vmatpush1.bf16.msra.mxu0 0
        %744 = vmatprep.subr.bf16.mxu0 0
        %745 = vmatpush1.bf16.msra.mxu0 0
        %746 = vmatprep.subr.bf16.mxu0 0
        %747 = vmatpush1.bf16.msra.mxu0 0
        %748 = vmatprep.subr.bf16.mxu0 0
        %749 = vmatpush1.bf16.msra.mxu0 0
        %750 = vmatprep.subr.bf16.mxu0 0
        %751 = vmatpush1.bf16.msra.mxu0 0
        %752 = vmatprep.mubr.bf16.mxu0 0
        %753 = vmatmul.mubr.bf16.gmra.mrb[0].mxu0 %v715
        %v754 = vpop.f32.mrb[0].mxu0
        %v755 = vadd.f32 0.0, %v754
        %v756 = vpop.f32.mrb[0].mxu0
        %v757 = vpop.f32.mrb[0].mxu0
        %v758 = vpop.f32.mrb[0].mxu0
        %759 = vdwg.mxu0
        %v760 = vpack.c.bf16 %v755, %v755
        %s761 = scalar_lea.vmem %s5, 4
        %v762 = vld [vmem:[%s761] sm:$0xf]
        %v764 = vsel %vm540, %v760, 0
        %v767 = vsel %vm604, %v762, 0
        %769 = vmatprep.subr.bf16.mxu0 0
        %770 = vmatpush1.bf16.msra.mxu0 %v767
        %771 = vmatprep.subr.bf16.mxu0 0
        %772 = vmatpush1.bf16.msra.mxu0 0
        %773 = vmatprep.subr.bf16.mxu0 0
        %774 = vmatpush1.bf16.msra.mxu0 0
        %775 = vmatprep.subr.bf16.mxu0 0
        %776 = vmatpush1.bf16.msra.mxu0 0
        %777 = vmatprep.subr.bf16.mxu0 0
        %778 = vmatpush1.bf16.msra.mxu0 0
        %779 = vmatprep.subr.bf16.mxu0 0
        %780 = vmatpush1.bf16.msra.mxu0 0
        %781 = vmatprep.subr.bf16.mxu0 0
        %782 = vmatpush1.bf16.msra.mxu0 0
        %783 = vmatprep.subr.bf16.mxu0 0
        %784 = vmatpush1.bf16.msra.mxu0 0
        %785 = vmatprep.subr.bf16.mxu0 0
        %786 = vmatpush1.bf16.msra.mxu0 0
        %787 = vmatprep.subr.bf16.mxu0 0
        %788 = vmatpush1.bf16.msra.mxu0 0
        %789 = vmatprep.subr.bf16.mxu0 0
        %790 = vmatpush1.bf16.msra.mxu0 0
        %791 = vmatprep.subr.bf16.mxu0 0
        %792 = vmatpush1.bf16.msra.mxu0 0
        %793 = vmatprep.subr.bf16.mxu0 0
        %794 = vmatpush1.bf16.msra.mxu0 0
        %795 = vmatprep.subr.bf16.mxu0 0
        %796 = vmatpush1.bf16.msra.mxu0 0
        %797 = vmatprep.subr.bf16.mxu0 0
        %798 = vmatpush1.bf16.msra.mxu0 0
        %799 = vmatprep.subr.bf16.mxu0 0
        %800 = vmatpush1.bf16.msra.mxu0 0
        %801 = vmatprep.mubr.bf16.mxu0 0
        %802 = vmatmul.mubr.bf16.gmra.mrb[0].mxu0 %v764
        %v803 = vpop.f32.mrb[0].mxu0
        %v804 = vadd.f32 0.0, %v803
        %v805 = vpop.f32.mrb[0].mxu0
        %v806 = vpop.f32.mrb[0].mxu0
        %v807 = vpop.f32.mrb[0].mxu0
        %808 = vdwg.mxu0
        %v810 = vsel %vm540, %v648, 0
        %v813 = vsel %vm604, %v649, 0
        %815 = vmatprep.subr.bf16.mxu0 0
        %816 = vmatpush1.bf16.msra.mxu0 %v813
        %817 = vmatprep.subr.bf16.mxu0 0
        %818 = vmatpush1.bf16.msra.mxu0 0
        %819 = vmatprep.subr.bf16.mxu0 0
        %820 = vmatpush1.bf16.msra.mxu0 0
        %821 = vmatprep.subr.bf16.mxu0 0
        %822 = vmatpush1.bf16.msra.mxu0 0
        %823 = vmatprep.subr.bf16.mxu0 0
        %824 = vmatpush1.bf16.msra.mxu0 0
        %825 = vmatprep.subr.bf16.mxu0 0
        %826 = vmatpush1.bf16.msra.mxu0 0
        %827 = vmatprep.subr.bf16.mxu0 0
        %828 = vmatpush1.bf16.msra.mxu0 0
        %829 = vmatprep.subr.bf16.mxu0 0
        %830 = vmatpush1.bf16.msra.mxu0 0
        %831 = vmatprep.subr.bf16.mxu0 0
        %832 = vmatpush1.bf16.msra.mxu0 0
        %833 = vmatprep.subr.bf16.mxu0 0
        %834 = vmatpush1.bf16.msra.mxu0 0
        %835 = vmatprep.subr.bf16.mxu0 0
        %836 = vmatpush1.bf16.msra.mxu0 0
        %837 = vmatprep.subr.bf16.mxu0 0
        %838 = vmatpush1.bf16.msra.mxu0 0
        %839 = vmatprep.subr.bf16.mxu0 0
        %840 = vmatpush1.bf16.msra.mxu0 0
        %841 = vmatprep.subr.bf16.mxu0 0
        %842 = vmatpush1.bf16.msra.mxu0 0
        %843 = vmatprep.subr.bf16.mxu0 0
        %844 = vmatpush1.bf16.msra.mxu0 0
        %845 = vmatprep.subr.bf16.mxu0 0
        %846 = vmatpush1.bf16.msra.mxu0 0
        %847 = vmatprep.mubr.bf16.mxu0 0
        %848 = vmatmul.mubr.bf16.gmra.mrb[0].mxu0 %v810
        %v849 = vpop.f32.mrb[0].mxu0
        %v850 = vadd.f32 %v804, %v849
        %v851 = vpop.f32.mrb[0].mxu0
        %v852 = vpop.f32.mrb[0].mxu0
        %v853 = vpop.f32.mrb[0].mxu0
        %854 = vdwg.mxu0
        %855 = vrot.lane.b32.xlu0 %v536, 112
        %v856 = vpop.permute.xlu0 %855
        %857 = vrot.lane.b32.xlu0 %v536, 80
        %v858 = vpop.permute.xlu0 %857
        %v860 = vsel %vm540, %v856, 0
        %v863 = vsel %vm540, %v858, 0
        %865 = vmatprep.subr.bf16.mxu0 0
        %866 = vmatpush1.bf16.xpose.msra.mxu0 %v863
        %867 = vmatprep.subr.bf16.mxu0 0
        %868 = vmatpush1.bf16.xpose.msra.mxu0 0
        %869 = vmatprep.subr.bf16.mxu0 0
        %870 = vmatpush1.bf16.xpose.msra.mxu0 0
        %871 = vmatprep.subr.bf16.mxu0 0
        %872 = vmatpush1.bf16.xpose.msra.mxu0 0
        %873 = vmatprep.subr.bf16.mxu0 0
        %874 = vmatpush1.bf16.xpose.msra.mxu0 0
        %875 = vmatprep.subr.bf16.mxu0 0
        %876 = vmatpush1.bf16.xpose.msra.mxu0 0
        %877 = vmatprep.subr.bf16.mxu0 0
        %878 = vmatpush1.bf16.xpose.msra.mxu0 0
        %879 = vmatprep.subr.bf16.mxu0 0
        %880 = vmatpush1.bf16.xpose.msra.mxu0 0
        %881 = vmatprep.subr.bf16.mxu0 0
        %882 = vmatpush1.bf16.xpose.msra.mxu0 0
        %883 = vmatprep.subr.bf16.mxu0 0
        %884 = vmatpush1.bf16.xpose.msra.mxu0 0
        %885 = vmatprep.subr.bf16.mxu0 0
        %886 = vmatpush1.bf16.xpose.msra.mxu0 0
        %887 = vmatprep.subr.bf16.mxu0 0
        %888 = vmatpush1.bf16.xpose.msra.mxu0 0
        %889 = vmatprep.subr.bf16.mxu0 0
        %890 = vmatpush1.bf16.xpose.msra.mxu0 0
        %891 = vmatprep.subr.bf16.mxu0 0
        %892 = vmatpush1.bf16.xpose.msra.mxu0 0
        %893 = vmatprep.subr.bf16.mxu0 0
        %894 = vmatpush1.bf16.xpose.msra.mxu0 0
        %895 = vmatprep.subr.bf16.mxu0 0
        %896 = vmatpush1.bf16.xpose.msra.mxu0 0
        %897 = vmatprep.mubr.bf16.mxu0 0
        %898 = vmatmul.mubr.bf16.gmra.mrb[0].mxu0 %v860
        %v899 = vpop.f32.mrb[0].mxu0
        %v900 = vadd.f32 0.0, %v899
        %v901 = vpop.f32.mrb[0].mxu0
        %v902 = vpop.f32.mrb[0].mxu0
        %v903 = vpop.f32.mrb[0].mxu0
        %904 = vdwg.mxu0
        %v905 = vsel %vm540, %v900, -inf
        %906 = vmax.xlane.f32.xlu0 %v905
        %v907 = vpop.xlane.xlu0 %906
        %v908 = vsub.f32 %v900, %v907
        %v909 = vmul.f32 %v908, 1.442695
        %v910 = vpow.pop %v909
        %v911 = vsel %vm540, %v910, 0.0
        %912 = vadd.xlane.f32.xlu0 %v911
        %v913 = vpop.xlane.xlu0 %912
        %v914 = vrcp.pop %v913
        %v915 = vmul.f32 %v910, %v914
        %v916 = vpack.c.bf16 %v915, %v915
        %917 = vrot.lane.b32.xlu0 %v536, 48
        %v918 = vpop.permute.xlu0 %917
        %v920 = vsel %vm540, %v916, 0
        %v923 = vsel %vm604, %v918, 0
        %925 = vmatprep.subr.bf16.mxu0 0
        %926 = vmatpush1.bf16.msra.mxu0 %v923
        %927 = vmatprep.subr.bf16.mxu0 0
        %928 = vmatpush1.bf16.msra.mxu0 0
        %929 = vmatprep.subr.bf16.mxu0 0
        %930 = vmatpush1.bf16.msra.mxu0 0
        %931 = vmatprep.subr.bf16.mxu0 0
        %932 = vmatpush1.bf16.msra.mxu0 0
        %933 = vmatprep.subr.bf16.mxu0 0
        %934 = vmatpush1.bf16.msra.mxu0 0
        %935 = vmatprep.subr.bf16.mxu0 0
        %936 = vmatpush1.bf16.msra.mxu0 0
        %937 = vmatprep.subr.bf16.mxu0 0
        %938 = vmatpush1.bf16.msra.mxu0 0
        %939 = vmatprep.subr.bf16.mxu0 0
        %940 = vmatpush1.bf16.msra.mxu0 0
        %941 = vmatprep.subr.bf16.mxu0 0
        %942 = vmatpush1.bf16.msra.mxu0 0
        %943 = vmatprep.subr.bf16.mxu0 0
        %944 = vmatpush1.bf16.msra.mxu0 0
        %945 = vmatprep.subr.bf16.mxu0 0
        %946 = vmatpush1.bf16.msra.mxu0 0
        %947 = vmatprep.subr.bf16.mxu0 0
        %948 = vmatpush1.bf16.msra.mxu0 0
        %949 = vmatprep.subr.bf16.mxu0 0
        %950 = vmatpush1.bf16.msra.mxu0 0
        %951 = vmatprep.subr.bf16.mxu0 0
        %952 = vmatpush1.bf16.msra.mxu0 0
        %953 = vmatprep.subr.bf16.mxu0 0
        %954 = vmatpush1.bf16.msra.mxu0 0
        %955 = vmatprep.subr.bf16.mxu0 0
        %956 = vmatpush1.bf16.msra.mxu0 0
        %957 = vmatprep.mubr.bf16.mxu0 0
        %958 = vmatmul.mubr.bf16.gmra.mrb[0].mxu0 %v920
        %v959 = vpop.f32.mrb[0].mxu0
        %v960 = vadd.f32 0.0, %v959
        %v961 = vpop.f32.mrb[0].mxu0
        %v962 = vpop.f32.mrb[0].mxu0
        %v963 = vpop.f32.mrb[0].mxu0
        %964 = vdwg.mxu0
        %v965 = vpack.c.bf16 %v960, %v960
        %s966 = scalar_lea.vmem %s5, 8
        %v967 = vld [vmem:[%s966] sm:$0xf]
        %v969 = vsel %vm540, %v965, 0
        %v972 = vsel %vm604, %v967, 0
        %974 = vmatprep.subr.bf16.mxu0 0
        %975 = vmatpush1.bf16.msra.mxu0 %v972
        %976 = vmatprep.subr.bf16.mxu0 0
        %977 = vmatpush1.bf16.msra.mxu0 0
        %978 = vmatprep.subr.bf16.mxu0 0
        %979 = vmatpush1.bf16.msra.mxu0 0
        %980 = vmatprep.subr.bf16.mxu0 0
        %981 = vmatpush1.bf16.msra.mxu0 0
        %982 = vmatprep.subr.bf16.mxu0 0
        %983 = vmatpush1.bf16.msra.mxu0 0
        %984 = vmatprep.subr.bf16.mxu0 0
        %985 = vmatpush1.bf16.msra.mxu0 0
        %986 = vmatprep.subr.bf16.mxu0 0
        %987 = vmatpush1.bf16.msra.mxu0 0
        %988 = vmatprep.subr.bf16.mxu0 0
        %989 = vmatpush1.bf16.msra.mxu0 0
        %990 = vmatprep.subr.bf16.mxu0 0
        %991 = vmatpush1.bf16.msra.mxu0 0
        %992 = vmatprep.subr.bf16.mxu0 0
        %993 = vmatpush1.bf16.msra.mxu0 0
        %994 = vmatprep.subr.bf16.mxu0 0
        %995 = vmatpush1.bf16.msra.mxu0 0
        %996 = vmatprep.subr.bf16.mxu0 0
        %997 = vmatpush1.bf16.msra.mxu0 0
        %998 = vmatprep.subr.bf16.mxu0 0
        %999 = vmatpush1.bf16.msra.mxu0 0
        %1000 = vmatprep.subr.bf16.mxu0 0
        %1001 = vmatpush1.bf16.msra.mxu0 0
        %1002 = vmatprep.subr.bf16.mxu0 0
        %1003 = vmatpush1.bf16.msra.mxu0 0
        %1004 = vmatprep.subr.bf16.mxu0 0
        %1005 = vmatpush1.bf16.msra.mxu0 0
        %1006 = vmatprep.mubr.bf16.mxu0 0
        %1007 = vmatmul.mubr.bf16.gmra.mrb[0].mxu0 %v969
        %v1008 = vpop.f32.mrb[0].mxu0
        %v1009 = vadd.f32 0.0, %v1008
        %v1010 = vpop.f32.mrb[0].mxu0
        %v1011 = vpop.f32.mrb[0].mxu0
        %v1012 = vpop.f32.mrb[0].mxu0
        %1013 = vdwg.mxu0
        %v1014 = vadd.f32 %v850, %v1009
        %1015 = vrot.lane.b32.xlu0 %v536, 104
        %v1016 = vpop.permute.xlu0 %1015
        %1017 = vrot.lane.b32.xlu0 %v536, 72
        %v1018 = vpop.permute.xlu0 %1017
        %v1020 = vsel %vm540, %v1016, 0
        %v1023 = vsel %vm540, %v1018, 0
        %1025 = vmatprep.subr.bf16.mxu0 0
        %1026 = vmatpush1.bf16.xpose.msra.mxu0 %v1023
        %1027 = vmatprep.subr.bf16.mxu0 0
        %1028 = vmatpush1.bf16.xpose.msra.mxu0 0
        %1029 = vmatprep.subr.bf16.mxu0 0
        %1030 = vmatpush1.bf16.xpose.msra.mxu0 0
        %1031 = vmatprep.subr.bf16.mxu0 0
        %1032 = vmatpush1.bf16.xpose.msra.mxu0 0
        %1033 = vmatprep.subr.bf16.mxu0 0
        %1034 = vmatpush1.bf16.xpose.msra.mxu0 0
        %1035 = vmatprep.subr.bf16.mxu0 0
        %1036 = vmatpush1.bf16.xpose.msra.mxu0 0
        %1037 = vmatprep.subr.bf16.mxu0 0
        %1038 = vmatpush1.bf16.xpose.msra.mxu0 0
        %1039 = vmatprep.subr.bf16.mxu0 0
        %1040 = vmatpush1.bf16.xpose.msra.mxu0 0
        %1041 = vmatprep.subr.bf16.mxu0 0
        %1042 = vmatpush1.bf16.xpose.msra.mxu0 0
        %1043 = vmatprep.subr.bf16.mxu0 0
        %1044 = vmatpush1.bf16.xpose.msra.mxu0 0
        %1045 = vmatprep.subr.bf16.mxu0 0
        %1046 = vmatpush1.bf16.xpose.msra.mxu0 0
        %1047 = vmatprep.subr.bf16.mxu0 0
        %1048 = vmatpush1.bf16.xpose.msra.mxu0 0
        %1049 = vmatprep.subr.bf16.mxu0 0
        %1050 = vmatpush1.bf16.xpose.msra.mxu0 0
        %1051 = vmatprep.subr.bf16.mxu0 0
        %1052 = vmatpush1.bf16.xpose.msra.mxu0 0
        %1053 = vmatprep.subr.bf16.mxu0 0
        %1054 = vmatpush1.bf16.xpose.msra.mxu0 0
        %1055 = vmatprep.subr.bf16.mxu0 0
        %1056 = vmatpush1.bf16.xpose.msra.mxu0 0
        %1057 = vmatprep.mubr.bf16.mxu0 0
        %1058 = vmatmul.mubr.bf16.gmra.mrb[0].mxu0 %v1020
        %v1059 = vpop.f32.mrb[0].mxu0
        %v1060 = vadd.f32 0.0, %v1059
        %v1061 = vpop.f32.mrb[0].mxu0
        %v1062 = vpop.f32.mrb[0].mxu0
        %v1063 = vpop.f32.mrb[0].mxu0
        %1064 = vdwg.mxu0
        %v1065 = vsel %vm540, %v1060, -inf
        %1066 = vmax.xlane.f32.xlu0 %v1065
        %v1067 = vpop.xlane.xlu0 %1066
        %v1068 = vsub.f32 %v1060, %v1067
        %v1069 = vmul.f32 %v1068, 1.442695
        %v1070 = vpow.pop %v1069
        %v1071 = vsel %vm540, %v1070, 0.0
        %1072 = vadd.xlane.f32.xlu0 %v1071
        %v1073 = vpop.xlane.xlu0 %1072
        %v1074 = vrcp.pop %v1073
        %v1075 = vmul.f32 %v1070, %v1074
        %v1076 = vpack.c.bf16 %v1075, %v1075
        %1077 = vrot.lane.b32.xlu0 %v536, 40
        %v1078 = vpop.permute.xlu0 %1077
        %v1080 = vsel %vm540, %v1076, 0
        %v1083 = vsel %vm604, %v1078, 0
        %1085 = vmatprep.subr.bf16.mxu0 0
        %1086 = vmatpush1.bf16.msra.mxu0 %v1083
        %1087 = vmatprep.subr.bf16.mxu0 0
        %1088 = vmatpush1.bf16.msra.mxu0 0
        %1089 = vmatprep.subr.bf16.mxu0 0
        %1090 = vmatpush1.bf16.msra.mxu0 0
        %1091 = vmatprep.subr.bf16.mxu0 0
        %1092 = vmatpush1.bf16.msra.mxu0 0
        %1093 = vmatprep.subr.bf16.mxu0 0
        %1094 = vmatpush1.bf16.msra.mxu0 0
        %1095 = vmatprep.subr.bf16.mxu0 0
        %1096 = vmatpush1.bf16.msra.mxu0 0
        %1097 = vmatprep.subr.bf16.mxu0 0
        %1098 = vmatpush1.bf16.msra.mxu0 0
        %1099 = vmatprep.subr.bf16.mxu0 0
        %1100 = vmatpush1.bf16.msra.mxu0 0
        %1101 = vmatprep.subr.bf16.mxu0 0
        %1102 = vmatpush1.bf16.msra.mxu0 0
        %1103 = vmatprep.subr.bf16.mxu0 0
        %1104 = vmatpush1.bf16.msra.mxu0 0
        %1105 = vmatprep.subr.bf16.mxu0 0
        %1106 = vmatpush1.bf16.msra.mxu0 0
        %1107 = vmatprep.subr.bf16.mxu0 0
        %1108 = vmatpush1.bf16.msra.mxu0 0
        %1109 = vmatprep.subr.bf16.mxu0 0
        %1110 = vmatpush1.bf16.msra.mxu0 0
        %1111 = vmatprep.subr.bf16.mxu0 0
        %1112 = vmatpush1.bf16.msra.mxu0 0
        %1113 = vmatprep.subr.bf16.mxu0 0
        %1114 = vmatpush1.bf16.msra.mxu0 0
        %1115 = vmatprep.subr.bf16.mxu0 0
        %1116 = vmatpush1.bf16.msra.mxu0 0
        %1117 = vmatprep.mubr.bf16.mxu0 0
        %1118 = vmatmul.mubr.bf16.gmra.mrb[0].mxu0 %v1080
        %v1119 = vpop.f32.mrb[0].mxu0
        %v1120 = vadd.f32 0.0, %v1119
        %v1121 = vpop.f32.mrb[0].mxu0
        %v1122 = vpop.f32.mrb[0].mxu0
        %v1123 = vpop.f32.mrb[0].mxu0
        %1124 = vdwg.mxu0
        %v1125 = vpack.c.bf16 %v1120, %v1120
        %s1126 = scalar_lea.vmem %s5, 12
        %v1127 = vld [vmem:[%s1126] sm:$0xf]
        %v1129 = vsel %vm540, %v1125, 0
        %v1132 = vsel %vm604, %v1127, 0
        %1134 = vmatprep.subr.bf16.mxu0 0
        %1135 = vmatpush1.bf16.msra.mxu0 %v1132
        %1136 = vmatprep.subr.bf16.mxu0 0
        %1137 = vmatpush1.bf16.msra.mxu0 0
        %1138 = vmatprep.subr.bf16.mxu0 0
        %1139 = vmatpush1.bf16.msra.mxu0 0
        %1140 = vmatprep.subr.bf16.mxu0 0
        %1141 = vmatpush1.bf16.msra.mxu0 0
        %1142 = vmatprep.subr.bf16.mxu0 0
        %1143 = vmatpush1.bf16.msra.mxu0 0
        %1144 = vmatprep.subr.bf16.mxu0 0
        %1145 = vmatpush1.bf16.msra.mxu0 0
        %1146 = vmatprep.subr.bf16.mxu0 0
        %1147 = vmatpush1.bf16.msra.mxu0 0
        %1148 = vmatprep.subr.bf16.mxu0 0
        %1149 = vmatpush1.bf16.msra.mxu0 0
        %1150 = vmatprep.subr.bf16.mxu0 0
        %1151 = vmatpush1.bf16.msra.mxu0 0
        %1152 = vmatprep.subr.bf16.mxu0 0
        %1153 = vmatpush1.bf16.msra.mxu0 0
        %1154 = vmatprep.subr.bf16.mxu0 0
        %1155 = vmatpush1.bf16.msra.mxu0 0
        %1156 = vmatprep.subr.bf16.mxu0 0
        %1157 = vmatpush1.bf16.msra.mxu0 0
        %1158 = vmatprep.subr.bf16.mxu0 0
        %1159 = vmatpush1.bf16.msra.mxu0 0
        %1160 = vmatprep.subr.bf16.mxu0 0
        %1161 = vmatpush1.bf16.msra.mxu0 0
        %1162 = vmatprep.subr.bf16.mxu0 0
        %1163 = vmatpush1.bf16.msra.mxu0 0
        %1164 = vmatprep.subr.bf16.mxu0 0
        %1165 = vmatpush1.bf16.msra.mxu0 0
        %1166 = vmatprep.mubr.bf16.mxu0 0
        %1167 = vmatmul.mubr.bf16.gmra.mrb[0].mxu0 %v1129
        %v1168 = vpop.f32.mrb[0].mxu0
        %v1169 = vadd.f32 0.0, %v1168
        %v1170 = vpop.f32.mrb[0].mxu0
        %v1171 = vpop.f32.mrb[0].mxu0
        %v1172 = vpop.f32.mrb[0].mxu0
        %1173 = vdwg.mxu0
        %v1174 = vadd.f32 %v1014, %v1169
        %v1175 = vld [vmem:[%s6] sm:$0x1]
        %v1177 = vlaneseq
        %v1178 = vshrl.u32 %v1177, 7
        %v1179 = vsub.s32 0, %v1178
        %v1180 = vrot.slane %v1175, %v1179
        %v1182 = vadd.f32 %v1174, %v1180
        %v1183 = vadd.f32 %v437, %v1182
        %v1184 = vld [vmem:[%s7] sm:$0x1]
        %v1185 = vld [vmem:[%s8] sm:$0x1]
        %v1186 = vsel %vm440, %v1183, 0.0
        %1187 = vadd.xlane.f32.xlu0 %v1186
        %v1188 = vpop.xlane.xlu0 %1187
        %v1189 = vmul.f32 %v1188, %v444
        %v1190 = vsub.f32 %v1183, %v1189
        %v1191 = vmul.f32 %v1190, %v1190
        %v1192 = vsel %vm440, %v1191, 0.0
        %1193 = vadd.xlane.f32.xlu0 %v1192
        %v1194 = vpop.xlane.xlu0 %1193
        %v1195 = vmul.f32 %v1194, %v444
        %v1196 = vadd.f32 %v1195, 1e-05
        %v1197 = vrsqrt.pop %v1196
        %v1198 = vmul.f32 %v1190, %v1197
        %v1200 = vlaneseq
        %v1201 = vshrl.u32 %v1200, 7
        %v1202 = vsub.s32 0, %v1201
        %v1203 = vrot.slane %v1184, %v1202
        %v1205 = vmul.f32 %v1198, %v1203
        %v1207 = vlaneseq
        %v1208 = vshrl.u32 %v1207, 7
        %v1209 = vsub.s32 0, %v1208
        %v1210 = vrot.slane %v1185, %v1209
        %v1212 = vadd.f32 %v1205, %v1210
        %v1213 = vpack.c.bf16 %v1212, %v1212
        %v1214 = vld [vmem:[%s9] sm:$0xf]
        %v1215 = vld [vmem:[%s9 + $0x4] sm:$0xf]
        %v1216 = vld [vmem:[%s9 + $0x8] sm:$0xf]
        %v1217 = vld [vmem:[%s9 + $0xc] sm:$0xf]
        %v1218 = vld [vmem:[%s10] sm:$0x1]
        %v1220 = vlaneseq
        %v1221 = vshrl.u32 %v1220, 7
        %v1222 = vsub.s32 0, %v1221
        %v1223 = vrot.slane %v1218, %v1222
        %v1229 = vunpack.c.l.b16 %v1214
        %v1230 = vunpack.c.l.b16 %v1215
        %v1231 = vunpack.c.l.b16 %v1216
        %v1232 = vunpack.c.l.b16 %v1217
        %v1233 = vpack.c.b16 %v1230, %v1229
        %v1234 = vpack.c.b16 %v1232, %v1231
        %v1238 = vsel %vm440, %v1213, 0
        %1240 = vmatprep.subr.bf16.mxu0 0
        %1241 = vmatpush1.bf16.msra.mxu0 %v1233
        %1242 = vmatprep.subr.bf16.mxu0 0
        %1243 = vmatpush1.bf16.msra.mxu0 %v1234
        %1244 = vmatprep.subr.bf16.mxu0 0
        %1245 = vmatpush1.bf16.msra.mxu0 0
        %1246 = vmatprep.subr.bf16.mxu0 0
        %1247 = vmatpush1.bf16.msra.mxu0 0
        %1248 = vmatprep.subr.bf16.mxu0 0
        %1249 = vmatpush1.bf16.msra.mxu0 0
        %1250 = vmatprep.subr.bf16.mxu0 0
        %1251 = vmatpush1.bf16.msra.mxu0 0
        %1252 = vmatprep.subr.bf16.mxu0 0
        %1253 = vmatpush1.bf16.msra.mxu0 0
        %1254 = vmatprep.subr.bf16.mxu0 0
        %1255 = vmatpush1.bf16.msra.mxu0 0
        %1256 = vmatprep.subr.bf16.mxu0 0
        %1257 = vmatpush1.bf16.msra.mxu0 0
        %1258 = vmatprep.subr.bf16.mxu0 0
        %1259 = vmatpush1.bf16.msra.mxu0 0
        %1260 = vmatprep.subr.bf16.mxu0 0
        %1261 = vmatpush1.bf16.msra.mxu0 0
        %1262 = vmatprep.subr.bf16.mxu0 0
        %1263 = vmatpush1.bf16.msra.mxu0 0
        %1264 = vmatprep.subr.bf16.mxu0 0
        %1265 = vmatpush1.bf16.msra.mxu0 0
        %1266 = vmatprep.subr.bf16.mxu0 0
        %1267 = vmatpush1.bf16.msra.mxu0 0
        %1268 = vmatprep.subr.bf16.mxu0 0
        %1269 = vmatpush1.bf16.msra.mxu0 0
        %1270 = vmatprep.subr.bf16.mxu0 0
        %1271 = vmatpush1.bf16.msra.mxu0 0
        %1272 = vmatprep.mubr.bf16.mxu0 0
        %1273 = vmatmul.mubr.bf16.gmra.mrb[0].mxu0 %v1238
        %v1274 = vpop.f32.mrb[0].mxu0
        %v1275 = vadd.f32 %v1223, %v1274
        %v1276 = vpop.f32.mrb[0].mxu0
        %v1277 = vpop.f32.mrb[0].mxu0
        %v1278 = vpop.f32.mrb[0].mxu0
        %1279 = vdwg.mxu0
        %v1280 = vmul.f32 %v1275, 1.702
        %v1281 = vxor.u32 %v1280, 2147483648
        %v1282 = vmul.f32 %v1281, 1.442695
        %v1283 = vpow.pop %v1282
        %v1284 = vadd.f32 %v1283, 1.0
        %v1285 = vrcp.pop %v1284
        %v1286 = vmul.f32 1.0, %v1285
        %v1287 = vmul.f32 %v1275, %v1286
        %v1288 = vpack.c.bf16 %v1287, %v1287
        %v1289 = vld [vmem:[%s11] sm:$0xf]
        %v1290 = vld [vmem:[%s11 + $0x4] sm:$0xf]
        %v1291 = vld [vmem:[%s11 + $0x8] sm:$0xf]
        %v1292 = vld [vmem:[%s11 + $0xc] sm:$0xf]
        %v1293 = vld [vmem:[%s11 + $0x10] sm:$0xf]
        %v1294 = vld [vmem:[%s11 + $0x14] sm:$0xf]
        %v1295 = vld [vmem:[%s11 + $0x18] sm:$0xf]
        %v1296 = vld [vmem:[%s11 + $0x1c] sm:$0xf]
        %v1297 = vld [vmem:[%s11 + $0x20] sm:$0xf]
        %v1298 = vld [vmem:[%s11 + $0x24] sm:$0xf]
        %v1299 = vld [vmem:[%s11 + $0x28] sm:$0xf]
        %v1300 = vld [vmem:[%s11 + $0x2c] sm:$0xf]
        %v1301 = vld [vmem:[%s11 + $0x30] sm:$0xf]
        %v1302 = vld [vmem:[%s11 + $0x34] sm:$0xf]
        %v1303 = vld [vmem:[%s11 + $0x38] sm:$0xf]
        %v1304 = vld [vmem:[%s11 + $0x3c] sm:$0xf]
        %v1305 = vld [vmem:[%s12] sm:$0x1]
        %v1307 = vlaneseq
        %v1308 = vshrl.u32 %v1307, 7
        %v1309 = vsub.s32 0, %v1308
        %v1310 = vrot.slane %v1305, %v1309
        %v1328 = vunpack.c.l.b16 %v1289
        %v1329 = vunpack.c.l.b16 %v1290
        %v1330 = vunpack.c.l.b16 %v1291
        %v1331 = vunpack.c.l.b16 %v1292
        %v1332 = vunpack.c.l.b16 %v1293
        %v1333 = vunpack.c.l.b16 %v1294
        %v1334 = vunpack.c.l.b16 %v1295
        %v1335 = vunpack.c.l.b16 %v1296
        %v1336 = vunpack.c.l.b16 %v1297
        %v1337 = vunpack.c.l.b16 %v1298
        %v1338 = vunpack.c.l.b16 %v1299
        %v1339 = vunpack.c.l.b16 %v1300
        %v1340 = vunpack.c.l.b16 %v1301
        %v1341 = vunpack.c.l.b16 %v1302
        %v1342 = vunpack.c.l.b16 %v1303
        %v1343 = vunpack.c.l.b16 %v1304
        %v1344 = vpack.c.b16 %v1329, %v1328
        %v1345 = vpack.c.b16 %v1331, %v1330
        %v1346 = vpack.c.b16 %v1333, %v1332
        %v1347 = vpack.c.b16 %v1335, %v1334
        %v1348 = vpack.c.b16 %v1337, %v1336
        %v1349 = vpack.c.b16 %v1339, %v1338
        %v1350 = vpack.c.b16 %v1341, %v1340
        %v1351 = vpack.c.b16 %v1343, %v1342
        %1360 = vmatprep.subr.bf16.mxu0 0
        %1361 = vmatpush1.bf16.msra.mxu0 %v1344
        %1362 = vmatprep.subr.bf16.mxu0 0
        %1363 = vmatpush1.bf16.msra.mxu0 %v1345
        %1364 = vmatprep.subr.bf16.mxu0 0
        %1365 = vmatpush1.bf16.msra.mxu0 %v1346
        %1366 = vmatprep.subr.bf16.mxu0 0
        %1367 = vmatpush1.bf16.msra.mxu0 %v1347
        %1368 = vmatprep.subr.bf16.mxu0 0
        %1369 = vmatpush1.bf16.msra.mxu0 %v1348
        %1370 = vmatprep.subr.bf16.mxu0 0
        %1371 = vmatpush1.bf16.msra.mxu0 %v1349
        %1372 = vmatprep.subr.bf16.mxu0 0
        %1373 = vmatpush1.bf16.msra.mxu0 %v1350
        %1374 = vmatprep.subr.bf16.mxu0 0
        %1375 = vmatpush1.bf16.msra.mxu0 %v1351
        %1376 = vmatprep.subr.bf16.mxu0 0
        %1377 = vmatpush1.bf16.msra.mxu0 0
        %1378 = vmatprep.subr.bf16.mxu0 0
        %1379 = vmatpush1.bf16.msra.mxu0 0
        %1380 = vmatprep.subr.bf16.mxu0 0
        %1381 = vmatpush1.bf16.msra.mxu0 0
        %1382 = vmatprep.subr.bf16.mxu0 0
        %1383 = vmatpush1.bf16.msra.mxu0 0
        %1384 = vmatprep.subr.bf16.mxu0 0
        %1385 = vmatpush1.bf16.msra.mxu0 0
        %1386 = vmatprep.subr.bf16.mxu0 0
        %1387 = vmatpush1.bf16.msra.mxu0 0
        %1388 = vmatprep.subr.bf16.mxu0 0
        %1389 = vmatpush1.bf16.msra.mxu0 0
        %1390 = vmatprep.subr.bf16.mxu0 0
        %1391 = vmatpush1.bf16.msra.mxu0 0
        %1392 = vmatprep.mubr.bf16.mxu0 0
        %1393 = vmatmul.mubr.bf16.gmra.mrb[0].mxu0 %v1288
        %v1394 = vpop.f32.mrb[0].mxu0
        %v1395 = vadd.f32 %v1310, %v1394
        %v1396 = vpop.f32.mrb[0].mxu0
        %v1397 = vpop.f32.mrb[0].mxu0
        %v1398 = vpop.f32.mrb[0].mxu0
        %1399 = vdwg.mxu0
        %v1400 = vadd.f32 %v1183, %v1395
        %1401 = vst.msk [vmem:[%s431] sm:$0xff] %vm440, %v1400
        %s1402 = sand.u32 %s313, 1
        %s1403 = scalar_lea.sflag [#allocation3], %s1402
        %s1404 = sand.u32 %s313, 1
        %s1405 = smul.addr %s1404, 8
        %s1406 = scalar_lea.vmem [#allocation2], %s1405
        // Predicated region
        $region73: #{tpu_custom_call.1} parent=71 // pred_check
          %p1407 = pneg %p323
        $region74: #{tpu_custom_call.1} parent=71 // pred_check_branch
          %1409 = sbr.rel (%p1407) target = $region76
        $region75: #{tpu_custom_call.1} parent=71 // pred_region
          %s1411 = ssub.s32 128, 128
          %1412 = vsyncadd %s1403, %s1411
          %s1413 = smul.addr %s27, 128
          %s1414 = scalar_lea.hbm %s13, %s1413
          %s1416 = sshll.u32 %s1406, 4
          %s1417 = int_to_ptr.vmem [resolvable:$true] %s1416
          %1419 = dma.vmem_to_hbm [thread:$0]  %s1417, 128, %s1414, %s1403
        $region76: #{tpu_custom_call.1} parent=71 // pred_fallthru
          _
      $region72: #{tpu_custom_call.1} parent=5 // pred_fallthru
        _
      %p1420 = scmp.le.s32.totalorder 2, %s22
      // Predicated region
      $region77: #{tpu_custom_call.1} parent=5 // pred_check
        %p1421 = pneg %p1420
      $region78: #{tpu_custom_call.1} parent=5 // pred_check_branch
        %1423 = sbr.rel (%p1421) target = $region80
      $region79: #{tpu_custom_call.1} parent=5 // pred_region
        %s1424 = ssub.s32 %s22, 2
        // Predicated region
        $region81: #{tpu_custom_call.1} parent=79 // pred_check
          %p1425 = pneg %p329
        $region82: #{tpu_custom_call.1} parent=79 // pred_check_branch
          %1427 = sbr.rel (%p1425) target = $region84
        $region83: #{tpu_custom_call.1} parent=79 // pred_region
          %s1428 = sand.u32 %s314, 1
          %s1429 = scalar_lea.sflag [#allocation3], %s1428
          %s1430 = sand.u32 %s314, 1
          %s1431 = smul.addr %s1430, 8
          %s1432 = scalar_lea.vmem [#allocation2], %s1431
          %1433 = dma.done %s1429, 128
        $region84: #{tpu_custom_call.1} parent=79 // pred_fallthru
          _
      $region80: #{tpu_custom_call.1} parent=5 // pred_fallthru
        _
    $region6: #{tpu_custom_call.1} parent=1 // loop_footer
      %s26 = sadd.s32 1, %s22
    $region7: #{tpu_custom_call.1} parent=1 // loop_footer_branch
      %21 = sbr.rel target = $region3
    $region8: #{tpu_custom_call.1} parent=1 // loop_exit
      _
    %1434 = vsyncpa [#allocation3], 1
    %s1435 = scalar_lea.sflag [#allocation3], 1
    %1436 = vsyncpa %s1435, 1

// kernel: tpu_custom_call.1
$region0: #{tpu_custom_call.1}
  #allocation0 [shape = 'u32[]', space=smem, size = 0x4, offset = 0x4, fixed_abs, tag = 'smem constant byte address 0x4 - core index']
  #allocation1 [shape = 'u32[144,128]{1,0:T(1,128)}', space=vmem, size = 0x12000, scoped, tag = 'internal scratch']
  %s0 = inlined_call_operand.vmem [shape: f32[2,8,32], index: 0, kind: input, shape index: {}]
  %s1 = inlined_call_operand.vmem [shape: f32[1,32], index: 1, kind: input, shape index: {}]
  %s2 = inlined_call_operand.vmem [shape: f32[1,32], index: 2, kind: input, shape index: {}]
  %s3 = inlined_call_operand.vmem [shape: bf16[32,96], index: 3, kind: input, shape index: {}]
  %s4 = inlined_call_operand.vmem [shape: f32[1,96], index: 4, kind: input, shape index: {}]
  %s5 = inlined_call_operand.vmem [shape: bf16[4,8,32], index: 5, kind: input, shape index: {}]
  %s6 = inlined_call_operand.vmem [shape: f32[1,32], index: 6, kind: input, shape index: {}]
  %s7 = inlined_call_operand.vmem [shape: f32[1,32], index: 7, kind: input, shape index: {}]
  %s8 = inlined_call_operand.vmem [shape: f32[1,32], index: 8, kind: input, shape index: {}]
  %s9 = inlined_call_operand.vmem [shape: bf16[32,128], index: 9, kind: input, shape index: {}]
  %s10 = inlined_call_operand.vmem [shape: f32[1,128], index: 10, kind: input, shape index: {}]
  %s11 = inlined_call_operand.vmem [shape: bf16[128,32], index: 11, kind: input, shape index: {}]
  %s12 = inlined_call_operand.vmem [shape: f32[1,32], index: 12, kind: input, shape index: {}]
  %s13 = inlined_call_operand.hbm [shape: f32[2,8,32], index: 13, kind: output, shape index: {}]
  %s14 = sld [smem:[#allocation0]]
  $region85: #{tpu_custom_call.1} parent=0
    _
  %s16 = ssub.s32 1, %s14
  %s17 = scalar_select 0, %s16, %s14
  $region1: #{tpu_custom_call.1} parent=0
    #allocation2 [shape = 'u8[8192]{0}', space=vmem, size = 0x2000, scoped, tag = 'output window, operand 0']
    #allocation3 [shape = 's32[2]{0}', space=sflag, size = 0x8, scoped, tag = 'scoped memory for tpu_custom_call.1']
    %18 = vsyncpa [#allocation3], 0
    %s19 = scalar_lea.sflag [#allocation3], 1
    %20 = vsyncpa %s19, 0
    loop: start=0, step=1, limit=4
    $region2: #{tpu_custom_call.1} parent=1 // loop_pre_header
      _
    $region3: #{tpu_custom_call.1} parent=1 // loop_header
      %s22 = sphi 0, %s26
      %p23 = scmp.ge.s32.totalorder %s22, 4
      %s32 = sphi 0, %s34
      %s35 = sphi 0, %s32
      %s36 = sphi 0, %s35
      %s52 = sphi 0, %s36
      %s56 = sphi 0, %s56
      %s58 = sphi 0, %s56
      %s59 = sphi 0, %s58
      %s73 = sphi 0, %s59
      %s77 = sphi 0, %s77
      %s79 = sphi 0, %s77
      %s80 = sphi 0, %s79
      %s94 = sphi 0, %s80
      %s98 = sphi 0, %s98
      %s100 = sphi 0, %s98
      %s101 = sphi 0, %s100
      %s115 = sphi 0, %s101
      %s119 = sphi 0, %s119
      %s121 = sphi 0, %s119
      %s122 = sphi 0, %s121
      %s136 = sphi 0, %s122
      %s140 = sphi 0, %s140
      %s142 = sphi 0, %s140
      %s143 = sphi 0, %s142
      %s157 = sphi 0, %s143
      %s161 = sphi 0, %s161
      %s163 = sphi 0, %s161
      %s164 = sphi 0, %s163
      %s178 = sphi 0, %s164
      %s182 = sphi 0, %s182
      %s184 = sphi 0, %s182
      %s185 = sphi 0, %s184
      %s199 = sphi 0, %s185
      %s203 = sphi 0, %s203
      %s205 = sphi 0, %s203
      %s206 = sphi 0, %s205
      %s220 = sphi 0, %s206
      %s224 = sphi 0, %s224
      %s226 = sphi 0, %s224
      %s227 = sphi 0, %s226
      %s241 = sphi 0, %s227
      %s245 = sphi 0, %s245
      %s247 = sphi 0, %s245
      %s248 = sphi 0, %s247
      %s262 = sphi 0, %s248
      %s266 = sphi 0, %s266
      %s268 = sphi 0, %s266
      %s269 = sphi 0, %s268
      %s283 = sphi 0, %s269
      %s287 = sphi 0, %s287
      %s289 = sphi 0, %s287
      %s290 = sphi 0, %s289
      %s304 = sphi 0, %s290
      %s310 = sphi 0, %s312
      %s313 = sphi 0, %s310
      %s314 = sphi 0, %s313
      %s330 = sphi 0, %s314
    $region4: #{tpu_custom_call.1} parent=1 // loop_header_branch
      %25 = sbr.rel (%p23) target = $region8
    $region5: #{tpu_custom_call.1} parent=1 // loop_body
      %s27 = ssub.s32 %s22, 1
      %s28 = ssub.s32 %s22, 2
      %s29 = sadd.s32 %s22, 1
      %s30 = ssub.s32 %s22, %s29
      %p31 = scmp.eq.s32.totalorder %s30, 0
      %s33 = sadd.s32 %s32, 1
      %s34 = scalar_select %p31, %s32, %s33
      %p37 = pneg %p31
      %p38 = scmp.eq.s32.totalorder %s22, 1
      %p39 = por %p37, %p38
      %p40 = scmp.ne.s32.totalorder %s32, %s35
      %p41 = scmp.eq.s32.totalorder %s22, 0
      %p42 = por %p40, %p41
      %p43 = scmp.ne.s32.totalorder %s32, %s35
      %p44 = scmp.eq.s32.totalorder %s27, 1
      %p45 = por %p43, %p44
      %p46 = scmp.ne.s32.totalorder %s35, %s36
      %p47 = scmp.eq.s32.totalorder %s27, 0
      %p48 = por %p46, %p47
      %p49 = scmp.ne.s32.totalorder %s35, %s36
      %p50 = scmp.eq.s32.totalorder %s28, 1
      %p51 = por %p49, %p50
      %p53 = scmp.ne.s32.totalorder %s36, %s52
      %p54 = scmp.eq.s32.totalorder %s28, 0
      %p55 = por %p53, %p54
      %s57 = sadd.s32 %s56, 1
      %p60 = scmp.eq.s32.totalorder %s22, 1
      %p61 = scmp.ne.s32.totalorder %s56, %s58
      %p62 = scmp.eq.s32.totalorder %s22, 0
      %p63 = por %p61, %p62
      %p64 = scmp.ne.s32.totalorder %s56, %s58
      %p65 = scmp.eq.s32.totalorder %s27, 1
      %p66 = por %p64, %p65
      %p67 = scmp.ne.s32.totalorder %s58, %s59
      %p68 = scmp.eq.s32.totalorder %s27, 0
      %p69 = por %p67, %p68
      %p70 = scmp.ne.s32.totalorder %s58, %s59
      %p71 = scmp.eq.s32.totalorder %s28, 1
      %p72 = por %p70, %p71
      %p74 = scmp.ne.s32.totalorder %s59, %s73
      %p75 = scmp.eq.s32.totalorder %s28, 0
      %p76 = por %p74, %p75
      %s78 = sadd.s32 %s77, 1
      %p81 = scmp.eq.s32.totalorder %s22, 1
      %p82 = scmp.ne.s32.totalorder %s77, %s79
      %p83 = scmp.eq.s32.totalorder %s22, 0
      %p84 = por %p82, %p83
      %p85 = scmp.ne.s32.totalorder %s77, %s79
      %p86 = scmp.eq.s32.totalorder %s27, 1
      %p87 = por %p85, %p86
      %p88 = scmp.ne.s32.totalorder %s79, %s80
      %p89 = scmp.eq.s32.totalorder %s27, 0
      %p90 = por %p88, %p89
      %p91 = scmp.ne.s32.totalorder %s79, %s80
      %p92 = scmp.eq.s32.totalorder %s28, 1
      %p93 = por %p91, %p92
      %p95 = scmp.ne.s32.totalorder %s80, %s94
      %p96 = scmp.eq.s32.totalorder %s28, 0
      %p97 = por %p95, %p96
      %s99 = sadd.s32 %s98, 1
      %p102 = scmp.eq.s32.totalorder %s22, 1
      %p103 = scmp.ne.s32.totalorder %s98, %s100
      %p104 = scmp.eq.s32.totalorder %s22, 0
      %p105 = por %p103, %p104
      %p106 = scmp.ne.s32.totalorder %s98, %s100
      %p107 = scmp.eq.s32.totalorder %s27, 1
      %p108 = por %p106, %p107
      %p109 = scmp.ne.s32.totalorder %s100, %s101
      %p110 = scmp.eq.s32.totalorder %s27, 0
      %p111 = por %p109, %p110
      %p112 = scmp.ne.s32.totalorder %s100, %s101
      %p113 = scmp.eq.s32.totalorder %s28, 1
      %p114 = por %p112, %p113
      %p116 = scmp.ne.s32.totalorder %s101, %s115
      %p117 = scmp.eq.s32.totalorder %s28, 0
      %p118 = por %p116, %p117
      %s120 = sadd.s32 %s119, 1
      %p123 = scmp.eq.s32.totalorder %s22, 1
      %p124 = scmp.ne.s32.totalorder %s119, %s121
      %p125 = scmp.eq.s32.totalorder %s22, 0
      %p126 = por %p124, %p125
      %p127 = scmp.ne.s32.totalorder %s119, %s121
      %p128 = scmp.eq.s32.totalorder %s27, 1
      %p129 = por %p127, %p128
      %p130 = scmp.ne.s32.totalorder %s121, %s122
      %p131 = scmp.eq.s32.totalorder %s27, 0
      %p132 = por %p130, %p131
      %p133 = scmp.ne.s32.totalorder %s121, %s122
      %p134 = scmp.eq.s32.totalorder %s28, 1
      %p135 = por %p133, %p134
      %p137 = scmp.ne.s32.totalorder %s122, %s136
      %p138 = scmp.eq.s32.totalorder %s28, 0
      %p139 = por %p137, %p138
      %s141 = sadd.s32 %s140, 1
      %p144 = scmp.eq.s32.totalorder %s22, 1
      %p145 = scmp.ne.s32.totalorder %s140, %s142
      %p146 = scmp.eq.s32.totalorder %s22, 0
      %p147 = por %p145, %p146
      %p148 = scmp.ne.s32.totalorder %s140, %s142
      %p149 = scmp.eq.s32.totalorder %s27, 1
      %p150 = por %p148, %p149
      %p151 = scmp.ne.s32.totalorder %s142, %s143
      %p152 = scmp.eq.s32.totalorder %s27, 0
      %p153 = por %p151, %p152
      %p154 = scmp.ne.s32.totalorder %s142, %s143
      %p155 = scmp.eq.s32.totalorder %s28, 1
      %p156 = por %p154, %p155
      %p158 = scmp.ne.s32.totalorder %s143, %s157
      %p159 = scmp.eq.s32.totalorder %s28, 0
      %p160 = por %p158, %p159
      %s162 = sadd.s32 %s161, 1
      %p165 = scmp.eq.s32.totalorder %s22, 1
      %p166 = scmp.ne.s32.totalorder %s161, %s163
      %p167 = scmp.eq.s32.totalorder %s22, 0
      %p168 = por %p166, %p167
      %p169 = scmp.ne.s32.totalorder %s161, %s163
      %p170 = scmp.eq.s32.totalorder %s27, 1
      %p171 = por %p169, %p170
      %p172 = scmp.ne.s32.totalorder %s163, %s164
      %p173 = scmp.eq.s32.totalorder %s27, 0
      %p174 = por %p172, %p173
      %p175 = scmp.ne.s32.totalorder %s163, %s164
      %p176 = scmp.eq.s32.totalorder %s28, 1
      %p177 = por %p175, %p176
      %p179 = scmp.ne.s32.totalorder %s164, %s178
      %p180 = scmp.eq.s32.totalorder %s28, 0
      %p181 = por %p179, %p180
      %s183 = sadd.s32 %s182, 1
      %p186 = scmp.eq.s32.totalorder %s22, 1
      %p187 = scmp.ne.s32.totalorder %s182, %s184
      %p188 = scmp.eq.s32.totalorder %s22, 0
      %p189 = por %p187, %p188
      %p190 = scmp.ne.s32.totalorder %s182, %s184
      %p191 = scmp.eq.s32.totalorder %s27, 1
      %p192 = por %p190, %p191
      %p193 = scmp.ne.s32.totalorder %s184, %s185
      %p194 = scmp.eq.s32.totalorder %s27, 0
      %p195 = por %p193, %p194
      %p196 = scmp.ne.s32.totalorder %s184, %s185
      %p197 = scmp.eq.s32.totalorder %s28, 1
      %p198 = por %p196, %p197
      %p200 = scmp.ne.s32.totalorder %s185, %s199
      %p201 = scmp.eq.s32.totalorder %s28, 0
      %p202 = por %p200, %p201
      %s204 = sadd.s32 %s203, 1
      %p207 = scmp.eq.s32.totalorder %s22, 1
      %p208 = scmp.ne.s32.totalorder %s203, %s205
      %p209 = scmp.eq.s32.totalorder %s22, 0
      %p210 = por %p208, %p209
      %p211 = scmp.ne.s32.totalorder %s203, %s205
      %p212 = scmp.eq.s32.totalorder %s27, 1
      %p213 = por %p211, %p212
      %p214 = scmp.ne.s32.totalorder %s205, %s206
      %p215 = scmp.eq.s32.totalorder %s27, 0
      %p216 = por %p214, %p215
      %p217 = scmp.ne.s32.totalorder %s205, %s206
      %p218 = scmp.eq.s32.totalorder %s28, 1
      %p219 = por %p217, %p218
      %p221 = scmp.ne.s32.totalorder %s206, %s220
      %p222 = scmp.eq.s32.totalorder %s28, 0
      %p223 = por %p221, %p222
      %s225 = sadd.s32 %s224, 1
      %p228 = scmp.eq.s32.totalorder %s22, 1
      %p229 = scmp.ne.s32.totalorder %s224, %s226
      %p230 = scmp.eq.s32.totalorder %s22, 0
      %p231 = por %p229, %p230
      %p232 = scmp.ne.s32.totalorder %s224, %s226
      %p233 = scmp.eq.s32.totalorder %s27, 1
      %p234 = por %p232, %p233
      %p235 = scmp.ne.s32.totalorder %s226, %s227
      %p236 = scmp.eq.s32.totalorder %s27, 0
      %p237 = por %p235, %p236
      %p238 = scmp.ne.s32.totalorder %s226, %s227
      %p239 = scmp.eq.s32.totalorder %s28, 1
      %p240 = por %p238, %p239
      %p242 = scmp.ne.s32.totalorder %s227, %s241
      %p243 = scmp.eq.s32.totalorder %s28, 0
      %p244 = por %p242, %p243
      %s246 = sadd.s32 %s245, 1
      %p249 = scmp.eq.s32.totalorder %s22, 1
      %p250 = scmp.ne.s32.totalorder %s245, %s247
      %p251 = scmp.eq.s32.totalorder %s22, 0
      %p252 = por %p250, %p251
      %p253 = scmp.ne.s32.totalorder %s245, %s247
      %p254 = scmp.eq.s32.totalorder %s27, 1
      %p255 = por %p253, %p254
      %p256 = scmp.ne.s32.totalorder %s247, %s248
      %p257 = scmp.eq.s32.totalorder %s27, 0
      %p258 = por %p256, %p257
      %p259 = scmp.ne.s32.totalorder %s247, %s248
      %p260 = scmp.eq.s32.totalorder %s28, 1
      %p261 = por %p259, %p260
      %p263 = scmp.ne.s32.totalorder %s248, %s262
      %p264 = scmp.eq.s32.totalorder %s28, 0
      %p265 = por %p263, %p264
      %s267 = sadd.s32 %s266, 1
      %p270 = scmp.eq.s32.totalorder %s22, 1
      %p271 = scmp.ne.s32.totalorder %s266, %s268
      %p272 = scmp.eq.s32.totalorder %s22, 0
      %p273 = por %p271, %p272
      %p274 = scmp.ne.s32.totalorder %s266, %s268
      %p275 = scmp.eq.s32.totalorder %s27, 1
      %p276 = por %p274, %p275
      %p277 = scmp.ne.s32.totalorder %s268, %s269
      %p278 = scmp.eq.s32.totalorder %s27, 0
      %p279 = por %p277, %p278
      %p280 = scmp.ne.s32.totalorder %s268, %s269
      %p281 = scmp.eq.s32.totalorder %s28, 1
      %p282 = por %p280, %p281
      %p284 = scmp.ne.s32.totalorder %s269, %s283
      %p285 = scmp.eq.s32.totalorder %s28, 0
      %p286 = por %p284, %p285
      %s288 = sadd.s32 %s287, 1
      %p291 = scmp.eq.s32.totalorder %s22, 1
      %p292 = scmp.ne.s32.totalorder %s287, %s289
      %p293 = scmp.eq.s32.totalorder %s22, 0
      %p294 = por %p292, %p293
      %p295 = scmp.ne.s32.totalorder %s287, %s289
      %p296 = scmp.eq.s32.totalorder %s27, 1
      %p297 = por %p295, %p296
      %p298 = scmp.ne.s32.totalorder %s289, %s290
      %p299 = scmp.eq.s32.totalorder %s27, 0
      %p300 = por %p298, %p299
      %p301 = scmp.ne.s32.totalorder %s289, %s290
      %p302 = scmp.eq.s32.totalorder %s28, 1
      %p303 = por %p301, %p302
      %p305 = scmp.ne.s32.totalorder %s290, %s304
      %p306 = scmp.eq.s32.totalorder %s28, 0
      %p307 = por %p305, %p306
      %s308 = ssub.s32 %s22, %s29
      %p309 = scmp.eq.s32.totalorder %s308, 0
      %s311 = sadd.s32 %s310, 1
      %s312 = scalar_select %p309, %s310, %s311
      %p315 = pneg %p309
      %p316 = scmp.eq.s32.totalorder %s22, 1
      %p317 = por %p315, %p316
      %p318 = scmp.ne.s32.totalorder %s310, %s313
      %p319 = scmp.eq.s32.totalorder %s22, 0
      %p320 = por %p318, %p319
      %p321 = scmp.ne.s32.totalorder %s310, %s313
      %p322 = scmp.eq.s32.totalorder %s27, 1
      %p323 = por %p321, %p322
      %p324 = scmp.ne.s32.totalorder %s313, %s314
      %p325 = scmp.eq.s32.totalorder %s27, 0
      %p326 = por %p324, %p325
      %p327 = scmp.ne.s32.totalorder %s313, %s314
      %p328 = scmp.eq.s32.totalorder %s28, 1
      %p329 = por %p327, %p328
      %p331 = scmp.ne.s32.totalorder %s314, %s330
      %p332 = scmp.eq.s32.totalorder %s28, 0
      %p333 = por %p331, %p332
      %p334 = scmp.le.s32.totalorder 1, %s22
      %p335 = scmp.lt.s32.totalorder %s22, 3
      %p336 = pnand %p334, %p335
      %p337 = pneg %p336
      // Predicated region
      $region9: #{tpu_custom_call.1} parent=5 // pred_check
        _
      $region10: #{tpu_custom_call.1} parent=5 // pred_check_branch
        %339 = sbr.rel (%p336) target = $region12
      $region11: #{tpu_custom_call.1} parent=5 // pred_region
        %s340 = ssub.s32 %s22, 1
        // Predicated region
        $region13: #{tpu_custom_call.1} parent=11 // pred_check
          %p341 = pneg %p69
        $region14: #{tpu_custom_call.1} parent=11 // pred_check_branch
          %343 = sbr.rel (%p341) target = $region16
        $region15: #{tpu_custom_call.1} parent=11 // pred_region
          _
        $region16: #{tpu_custom_call.1} parent=11 // pred_fallthru
          _
        // Predicated region
        $region17: #{tpu_custom_call.1} parent=11 // pred_check
          %p344 = pneg %p90
        $region18: #{tpu_custom_call.1} parent=11 // pred_check_branch
          %346 = sbr.rel (%p344) target = $region20
        $region19: #{tpu_custom_call.1} parent=11 // pred_region
          _
        $region20: #{tpu_custom_call.1} parent=11 // pred_fallthru
          _
        // Predicated region
        $region21: #{tpu_custom_call.1} parent=11 // pred_check
          %p347 = pneg %p111
        $region22: #{tpu_custom_call.1} parent=11 // pred_check_branch
          %349 = sbr.rel (%p347) target = $region24
        $region23: #{tpu_custom_call.1} parent=11 // pred_region
          _
        $region24: #{tpu_custom_call.1} parent=11 // pred_fallthru
          _
        // Predicated region
        $region25: #{tpu_custom_call.1} parent=11 // pred_check
          %p350 = pneg %p132
        $region26: #{tpu_custom_call.1} parent=11 // pred_check_branch
          %352 = sbr.rel (%p350) target = $region28
        $region27: #{tpu_custom_call.1} parent=11 // pred_region
          _
        $region28: #{tpu_custom_call.1} parent=11 // pred_fallthru
          _
        // Predicated region
        $region29: #{tpu_custom_call.1} parent=11 // pred_check
          %p353 = pneg %p153
        $region30: #{tpu_custom_call.1} parent=11 // pred_check_branch
          %355 = sbr.rel (%p353) target = $region32
        $region31: #{tpu_custom_call.1} parent=11 // pred_region
          _
        $region32: #{tpu_custom_call.1} parent=11 // pred_fallthru
          _
        // Predicated region
        $region33: #{tpu_custom_call.1} parent=11 // pred_check
          %p356 = pneg %p174
        $region34: #{tpu_custom_call.1} parent=11 // pred_check_branch
          %358 = sbr.rel (%p356) target = $region36
        $region35: #{tpu_custom_call.1} parent=11 // pred_region
          _
        $region36: #{tpu_custom_call.1} parent=11 // pred_fallthru
          _
        // Predicated region
        $region37: #{tpu_custom_call.1} parent=11 // pred_check
          %p359 = pneg %p195
        $region38: #{tpu_custom_call.1} parent=11 // pred_check_branch
          %361 = sbr.rel (%p359) target = $region40
        $region39: #{tpu_custom_call.1} parent=11 // pred_region
          _
        $region40: #{tpu_custom_call.1} parent=11 // pred_fallthru
          _
        // Predicated region
        $region41: #{tpu_custom_call.1} parent=11 // pred_check
          %p362 = pneg %p216
        $region42: #{tpu_custom_call.1} parent=11 // pred_check_branch
          %364 = sbr.rel (%p362) target = $region44
        $region43: #{tpu_custom_call.1} parent=11 // pred_region
          _
        $region44: #{tpu_custom_call.1} parent=11 // pred_fallthru
          _
        // Predicated region
        $region45: #{tpu_custom_call.1} parent=11 // pred_check
          %p365 = pneg %p237
        $region46: #{tpu_custom_call.1} parent=11 // pred_check_branch
          %367 = sbr.rel (%p365) target = $region48
        $region47: #{tpu_custom_call.1} parent=11 // pred_region
          _
        $region48: #{tpu_custom_call.1} parent=11 // pred_fallthru
          _
        // Predicated region
        $region49: #{tpu_custom_call.1} parent=11 // pred_check
          %p368 = pneg %p258
        $region50: #{tpu_custom_call.1} parent=11 // pred_check_branch
          %370 = sbr.rel (%p368) target = $region52
        $region51: #{tpu_custom_call.1} parent=11 // pred_region
          _
        $region52: #{tpu_custom_call.1} parent=11 // pred_fallthru
          _
        // Predicated region
        $region53: #{tpu_custom_call.1} parent=11 // pred_check
          %p371 = pneg %p279
        $region54: #{tpu_custom_call.1} parent=11 // pred_check_branch
          %373 = sbr.rel (%p371) target = $region56
        $region55: #{tpu_custom_call.1} parent=11 // pred_region
          _
        $region56: #{tpu_custom_call.1} parent=11 // pred_fallthru
          _
        // Predicated region
        $region57: #{tpu_custom_call.1} parent=11 // pred_check
          %p374 = pneg %p300
        $region58: #{tpu_custom_call.1} parent=11 // pred_check_branch
          %376 = sbr.rel (%p374) target = $region60
        $region59: #{tpu_custom_call.1} parent=11 // pred_region
          _
        $region60: #{tpu_custom_call.1} parent=11 // pred_fallthru
          _
      $region12: #{tpu_custom_call.1} parent=5 // pred_fallthru
        _
      %p377 = scmp.lt.s32.totalorder %s22, 2
      // Predicated region
      $region61: #{tpu_custom_call.1} parent=5 // pred_check
        %p378 = pneg %p377
      $region62: #{tpu_custom_call.1} parent=5 // pred_check_branch
        %380 = sbr.rel (%p378) target = $region64
      $region63: #{tpu_custom_call.1} parent=5 // pred_region
        // Predicated region
        $region65: #{tpu_custom_call.1} parent=63 // pred_check
          %p381 = pneg %p42
        $region66: #{tpu_custom_call.1} parent=63 // pred_check_branch
          %383 = sbr.rel (%p381) target = $region68
        $region67: #{tpu_custom_call.1} parent=63 // pred_region
          %p384 = scmp.lt.s32.totalorder %s22, 1
          %s385 = scalar_select %p384, %s22, 1
          %s386 = smul.addr %s385, 8
          %s387 = scalar_lea.vmem %s0, %s386
        $region68: #{tpu_custom_call.1} parent=63 // pred_fallthru
          _
      $region64: #{tpu_custom_call.1} parent=5 // pred_fallthru
        _
      %p388 = scmp.le.s32.totalorder 1, %s22
      %p389 = scmp.lt.s32.totalorder %s22, 3
      %p390 = pnand %p388, %p389
      %p391 = pneg %p390
      // Predicated region
      $region69: #{tpu_custom_call.1} parent=5 // pred_check
        _
      $region70: #{tpu_custom_call.1} parent=5 // pred_check_branch
        %393 = sbr.rel (%p390) target = $region72
      $region71: #{tpu_custom_call.1} parent=5 // pred_region
        %s394 = ssub.s32 %s22, 1
        %p395 = scmp.lt.s32.totalorder %s27, 1
        %s396 = scalar_select %p395, %s27, 1
        %s397 = smul.addr %s396, 8
        %s398 = scalar_lea.vmem %s0, %s397
        %p399 = pneg %p48
        %p400 = pneg %p45
        %p401 = pneg %p69
        %p402 = pneg %p66
        %p403 = pneg %p90
        %p404 = pneg %p87
        %p405 = pneg %p111
        %p406 = pneg %p108
        %p407 = pneg %p132
        %p408 = pneg %p129
        %p409 = pneg %p153
        %p410 = pneg %p150
        %p411 = pneg %p174
        %p412 = pneg %p171
        %p413 = pneg %p195
        %p414 = pneg %p192
        %p415 = pneg %p216
        %p416 = pneg %p213
        %p417 = pneg %p237
        %p418 = pneg %p234
        %p419 = pneg %p258
        %p420 = pneg %p255
        %p421 = pneg %p279
        %p422 = pneg %p276
        %p423 = pneg %p300
        %p424 = pneg %p297
        %p425 = pneg %p326
        %p426 = pneg %p323
        %s427 = sand.u32 %s313, 1
        %s428 = scalar_lea.sflag [#allocation3], %s427
        %s429 = sand.u32 %s313, 1
        %s430 = smul.addr %s429, 8
        %s431 = scalar_lea.vmem [#allocation2], %s430
        %p432 = scmp.lt.s32.totalorder %s27, 1
        %s433 = scalar_select %p432, %s27, 1
        %s434 = smul.addr %s433, 8
        %s435 = scalar_lea.vmem %s0, %s434
        %v437 = vld [vmem:[%s435] sm:$0xff]
        %v438 = vld [vmem:[%s1] sm:$0x1]
        %v439 = vld [vmem:[%s2] sm:$0x1]
        %vm440 = vcmask 261120
        %v441 = vsel %vm440, %v437, 0.0
        %442 = vadd.xlane.f32.xlu0 %v441
        %v443 = vpop.xlane.xlu0 %442
        %v444 = vrcp.pop 32.0
        %v445 = vmul.f32 %v443, %v444
        %v446 = vsub.f32 %v437, %v445
        %v447 = vmul.f32 %v446, %v446
        %v448 = vsel %vm440, %v447, 0.0
        %449 = vadd.xlane.f32.xlu0 %v448
        %v450 = vpop.xlane.xlu0 %449
        %v451 = vmul.f32 %v450, %v444
        %v452 = vadd.f32 %v451, 1e-05
        %v453 = vrsqrt.pop %v452
        %v454 = vmul.f32 %v446, %v453
        %v456 = vlaneseq
        %v457 = vshrl.u32 %v456, 7
        %v458 = vsub.s32 0, %v457
        %v459 = vrot.slane %v438, %v458
        %v461 = vmul.f32 %v454, %v459
        %v463 = vlaneseq
        %v464 = vshrl.u32 %v463, 7
        %v465 = vsub.s32 0, %v464
        %v466 = vrot.slane %v439, %v465
        %v468 = vadd.f32 %v461, %v466
        %v469 = vpack.c.bf16 %v468, %v468
        %v470 = vld [vmem:[%s3] sm:$0xf]
        %v471 = vld [vmem:[%s3 + $0x4] sm:$0xf]
        %v472 = vld [vmem:[%s3 + $0x8] sm:$0xf]
        %v473 = vld [vmem:[%s3 + $0xc] sm:$0xf]
        %v474 = vld [vmem:[%s4] sm:$0x1]
        %v476 = vlaneseq
        %v477 = vshrl.u32 %v476, 7
        %v478 = vsub.s32 0, %v477
        %v479 = vrot.slane %v474, %v478
        %v485 = vunpack.c.l.b16 %v470
        %v486 = vunpack.c.l.b16 %v471
        %v487 = vunpack.c.l.b16 %v472
        %v488 = vunpack.c.l.b16 %v473
        %v489 = vpack.c.b16 %v486, %v485
        %v490 = vpack.c.b16 %v488, %v487
        %v494 = vsel %vm440, %v469, 0
        %496 = vmatprep.subr.bf16.mxu0 0
        %497 = vmatpush1.bf16.msra.mxu0 %v489
        %498 = vmatprep.subr.bf16.mxu0 0
        %499 = vmatpush1.bf16.msra.mxu0 %v490
        %500 = vmatprep.subr.bf16.mxu0 0
        %501 = vmatpush1.bf16.msra.mxu0 0
        %502 = vmatprep.subr.bf16.mxu0 0
        %503 = vmatpush1.bf16.msra.mxu0 0
        %504 = vmatprep.subr.bf16.mxu0 0
        %505 = vmatpush1.bf16.msra.mxu0 0
        %506 = vmatprep.subr.bf16.mxu0 0
        %507 = vmatpush1.bf16.msra.mxu0 0
        %508 = vmatprep.subr.bf16.mxu0 0
        %509 = vmatpush1.bf16.msra.mxu0 0
        %510 = vmatprep.subr.bf16.mxu0 0
        %511 = vmatpush1.bf16.msra.mxu0 0
        %512 = vmatprep.subr.bf16.mxu0 0
        %513 = vmatpush1.bf16.msra.mxu0 0
        %514 = vmatprep.subr.bf16.mxu0 0
        %515 = vmatpush1.bf16.msra.mxu0 0
        %516 = vmatprep.subr.bf16.mxu0 0
        %517 = vmatpush1.bf16.msra.mxu0 0
        %518 = vmatprep.subr.bf16.mxu0 0
        %519 = vmatpush1.bf16.msra.mxu0 0
        %520 = vmatprep.subr.bf16.mxu0 0
        %521 = vmatpush1.bf16.msra.mxu0 0
        %522 = vmatprep.subr.bf16.mxu0 0
        %523 = vmatpush1.bf16.msra.mxu0 0
        %524 = vmatprep.subr.bf16.mxu0 0
        %525 = vmatpush1.bf16.msra.mxu0 0
        %526 = vmatprep.subr.bf16.mxu0 0
        %527 = vmatpush1.bf16.msra.mxu0 0
        %528 = vmatprep.mubr.bf16.mxu0 0
        %529 = vmatmul.mubr.bf16.gmra.mrb[0].mxu0 %v494
        %v530 = vpop.f32.mrb[0].mxu0
        %v531 = vadd.f32 %v479, %v530
        %v532 = vpop.f32.mrb[0].mxu0
        %v533 = vpop.f32.mrb[0].mxu0
        %v534 = vpop.f32.mrb[0].mxu0
        %535 = vdwg.mxu0
        %v536 = vpack.c.bf16 %v531, %v531
        %538 = vrot.lane.b32.xlu0 %v536, 96
        %v539 = vpop.permute.xlu0 %538
        %vm540 = vcmask 64512
        %v542 = vsel %vm540, %v536, 0
        %v545 = vsel %vm540, %v539, 0
        %547 = vmatprep.subr.bf16.mxu0 0
        %548 = vmatpush1.bf16.xpose.msra.mxu0 %v545
        %549 = vmatprep.subr.bf16.mxu0 0
        %550 = vmatpush1.bf16.xpose.msra.mxu0 0
        %551 = vmatprep.subr.bf16.mxu0 0
        %552 = vmatpush1.bf16.xpose.msra.mxu0 0
        %553 = vmatprep.subr.bf16.mxu0 0
        %554 = vmatpush1.bf16.xpose.msra.mxu0 0
        %555 = vmatprep.subr.bf16.mxu0 0
        %556 = vmatpush1.bf16.xpose.msra.mxu0 0
        %557 = vmatprep.subr.bf16.mxu0 0
        %558 = vmatpush1.bf16.xpose.msra.mxu0 0
        %559 = vmatprep.subr.bf16.mxu0 0
        %560 = vmatpush1.bf16.xpose.msra.mxu0 0
        %561 = vmatprep.subr.bf16.mxu0 0
        %562 = vmatpush1.bf16.xpose.msra.mxu0 0
        %563 = vmatprep.subr.bf16.mxu0 0
        %564 = vmatpush1.bf16.xpose.msra.mxu0 0
        %565 = vmatprep.subr.bf16.mxu0 0
        %566 = vmatpush1.bf16.xpose.msra.mxu0 0
        %567 = vmatprep.subr.bf16.mxu0 0
        %568 = vmatpush1.bf16.xpose.msra.mxu0 0
        %569 = vmatprep.subr.bf16.mxu0 0
        %570 = vmatpush1.bf16.xpose.msra.mxu0 0
        %571 = vmatprep.subr.bf16.mxu0 0
        %572 = vmatpush1.bf16.xpose.msra.mxu0 0
        %573 = vmatprep.subr.bf16.mxu0 0
        %574 = vmatpush1.bf16.xpose.msra.mxu0 0
        %575 = vmatprep.subr.bf16.mxu0 0
        %576 = vmatpush1.bf16.xpose.msra.mxu0 0
        %577 = vmatprep.subr.bf16.mxu0 0
        %578 = vmatpush1.bf16.xpose.msra.mxu0 0
        %579 = vmatprep.mubr.bf16.mxu0 0
        %580 = vmatmul.mubr.bf16.gmra.mrb[0].mxu0 %v542
        %v581 = vpop.f32.mrb[0].mxu0
        %v582 = vadd.f32 0.0, %v581
        %v583 = vpop.f32.mrb[0].mxu0
        %v584 = vpop.f32.mrb[0].mxu0
        %v585 = vpop.f32.mrb[0].mxu0
        %586 = vdwg.mxu0
        %v587 = vsel %vm540, %v582, -inf
        %588 = vmax.xlane.f32.xlu0 %v587
        %v589 = vpop.xlane.xlu0 %588
        %v590 = vsub.f32 %v582, %v589
        %v591 = vmul.f32 %v590, 1.442695
        %v592 = vpow.pop %v591
        %v593 = vsel %vm540, %v592, 0.0
        %594 = vadd.xlane.f32.xlu0 %v593
        %v595 = vpop.xlane.xlu0 %594
        %v596 = vrcp.pop %v595
        %v597 = vmul.f32 %v592, %v596
        %v598 = vpack.c.bf16 %v597, %v597
        %599 = vrot.lane.b32.xlu0 %v536, 64
        %v600 = vpop.permute.xlu0 %599
        %v602 = vsel %vm540, %v598, 0
        %vm604 = vcmask 1043456
        %v606 = vsel %vm604, %v600, 0
        %608 = vmatprep.subr.bf16.mxu0 0
        %609 = vmatpush1.bf16.msra.mxu0 %v606
        %610 = vmatprep.subr.bf16.mxu0 0
        %611 = vmatpush1.bf16.msra.mxu0 0
        %612 = vmatprep.subr.bf16.mxu0 0
        %613 = vmatpush1.bf16.msra.mxu0 0
        %614 = vmatprep.subr.bf16.mxu0 0
        %615 = vmatpush1.bf16.msra.mxu0 0
        %616 = vmatprep.subr.bf16.mxu0 0
        %617 = vmatpush1.bf16.msra.mxu0 0
        %618 = vmatprep.subr.bf16.mxu0 0
        %619 = vmatpush1.bf16.msra.mxu0 0
        %620 = vmatprep.subr.bf16.mxu0 0
        %621 = vmatpush1.bf16.msra.mxu0 0
        %622 = vmatprep.subr.bf16.mxu0 0
        %623 = vmatpush1.bf16.msra.mxu0 0
        %624 = vmatprep.subr.bf16.mxu0 0
        %625 = vmatpush1.bf16.msra.mxu0 0
        %626 = vmatprep.subr.bf16.mxu0 0
        %627 = vmatpush1.bf16.msra.mxu0 0
        %628 = vmatprep.subr.bf16.mxu0 0
        %629 = vmatpush1.bf16.msra.mxu0 0
        %630 = vmatprep.subr.bf16.mxu0 0
        %631 = vmatpush1.bf16.msra.mxu0 0
        %632 = vmatprep.subr.bf16.mxu0 0
        %633 = vmatpush1.bf16.msra.mxu0 0
        %634 = vmatprep.subr.bf16.mxu0 0
        %635 = vmatpush1.bf16.msra.mxu0 0
        %636 = vmatprep.subr.bf16.mxu0 0
        %637 = vmatpush1.bf16.msra.mxu0 0
        %638 = vmatprep.subr.bf16.mxu0 0
        %639 = vmatpush1.bf16.msra.mxu0 0
        %640 = vmatprep.mubr.bf16.mxu0 0
        %641 = vmatmul.mubr.bf16.gmra.mrb[0].mxu0 %v602
        %v642 = vpop.f32.mrb[0].mxu0
        %v643 = vadd.f32 0.0, %v642
        %v644 = vpop.f32.mrb[0].mxu0
        %v645 = vpop.f32.mrb[0].mxu0
        %v646 = vpop.f32.mrb[0].mxu0
        %647 = vdwg.mxu0
        %v648 = vpack.c.bf16 %v643, %v643
        %v649 = vld [vmem:[%s5] sm:$0xf]
        %650 = vrot.lane.b32.xlu0 %v536, 120
        %v651 = vpop.permute.xlu0 %650
        %652 = vrot.lane.b32.xlu0 %v536, 88
        %v653 = vpop.permute.xlu0 %652
        %v655 = vsel %vm540, %v651, 0
        %v658 = vsel %vm540, %v653, 0
        %660 = vmatprep.subr.bf16.mxu0 0
        %661 = vmatpush1.bf16.xpose.msra.mxu0 %v658
        %662 = vmatprep.subr.bf16.mxu0 0
        %663 = vmatpush1.bf16.xpose.msra.mxu0 0
        %664 = vmatprep.subr.bf16.mxu0 0
        %665 = vmatpush1.bf16.xpose.msra.mxu0 0
        %666 = vmatprep.subr.bf16.mxu0 0
        %667 = vmatpush1.bf16.xpose.msra.mxu0 0
        %668 = vmatprep.subr.bf16.mxu0 0
        %669 = vmatpush1.bf16.xpose.msra.mxu0 0
        %670 = vmatprep.subr.bf16.mxu0 0
        %671 = vmatpush1.bf16.xpose.msra.mxu0 0
        %672 = vmatprep.subr.bf16.mxu0 0
        %673 = vmatpush1.bf16.xpose.msra.mxu0 0
        %674 = vmatprep.subr.bf16.mxu0 0
        %675 = vmatpush1.bf16.xpose.msra.mxu0 0
        %676 = vmatprep.subr.bf16.mxu0 0
        %677 = vmatpush1.bf16.xpose.msra.mxu0 0
        %678 = vmatprep.subr.bf16.mxu0 0
        %679 = vmatpush1.bf16.xpose.msra.mxu0 0
        %680 = vmatprep.subr.bf16.mxu0 0
        %681 = vmatpush1.bf16.xpose.msra.mxu0 0
        %682 = vmatprep.subr.bf16.mxu0 0
        %683 = vmatpush1.bf16.xpose.msra.mxu0 0
        %684 = vmatprep.subr.bf16.mxu0 0
        %685 = vmatpush1.bf16.xpose.msra.mxu0 0
        %686 = vmatprep.subr.bf16.mxu0 0
        %687 = vmatpush1.bf16.xpose.msra.mxu0 0
        %688 = vmatprep.subr.bf16.mxu0 0
        %689 = vmatpush1.bf16.xpose.msra.mxu0 0
        %690 = vmatprep.subr.bf16.mxu0 0
        %691 = vmatpush1.bf16.xpose.msra.mxu0 0
        %692 = vmatprep.mubr.bf16.mxu0 0
        %693 = vmatmul.mubr.bf16.gmra.mrb[0].mxu0 %v655
        %v694 = vpop.f32.mrb[0].mxu0
        %v695 = vadd.f32 0.0, %v694
        %v696 = vpop.f32.mrb[0].mxu0
        %v697 = vpop.f32.mrb[0].mxu0
        %v698 = vpop.f32.mrb[0].mxu0
        %699 = vdwg.mxu0
        %v700 = vsel %vm540, %v695, -inf
        %701 = vmax.xlane.f32.xlu0 %v700
        %v702 = vpop.xlane.xlu0 %701
        %v703 = vsub.f32 %v695, %v702
        %v704 = vmul.f32 %v703, 1.442695
        %v705 = vpow.pop %v704
        %v706 = vsel %vm540, %v705, 0.0
        %707 = vadd.xlane.f32.xlu0 %v706
        %v708 = vpop.xlane.xlu0 %707
        %v709 = vrcp.pop %v708
        %v710 = vmul.f32 %v705, %v709
        %v711 = vpack.c.bf16 %v710, %v710
        %712 = vrot.lane.b32.xlu0 %v536, 56
        %v713 = vpop.permute.xlu0 %712
        %v715 = vsel %vm540, %v711, 0
        %v718 = vsel %vm604, %v713, 0
        %720 = vmatprep.subr.bf16.mxu0 0
        %721 = vmatpush1.bf16.msra.mxu0 %v718
        %722 = vmatprep.subr.bf16.mxu0 0
        %723 = vmatpush1.bf16.msra.mxu0 0
        %724 = vmatprep.subr.bf16.mxu0 0
        %725 = vmatpush1.bf16.msra.mxu0 0
        %726 = vmatprep.subr.bf16.mxu0 0
        %727 = vmatpush1.bf16.msra.mxu0 0
        %728 = vmatprep.subr.bf16.mxu0 0
        %729 = vmatpush1.bf16.msra.mxu0 0
        %730 = vmatprep.subr.bf16.mxu0 0
        %731 = vmatpush1.bf16.msra.mxu0 0
        %732 = vmatprep.subr.bf16.mxu0 0
        %733 = vmatpush1.bf16.msra.mxu0 0
        %734 = vmatprep.subr.bf16.mxu0 0
        %735 = vmatpush1.bf16.msra.mxu0 0
        %736 = vmatprep.subr.bf16.mxu0 0
        %737 = vmatpush1.bf16.msra.mxu0 0
        %738 = vmatprep.subr.bf16.mxu0 0
        %739 = vmatpush1.bf16.msra.mxu0 0
        %740 = vmatprep.subr.bf16.mxu0 0
        %741 = vmatpush1.bf16.msra.mxu0 0
        %742 = vmatprep.subr.bf16.mxu0 0
        %743 = vmatpush1.bf16.msra.mxu0 0
        %744 = vmatprep.subr.bf16.mxu0 0
        %745 = vmatpush1.bf16.msra.mxu0 0
        %746 = vmatprep.subr.bf16.mxu0 0
        %747 = vmatpush1.bf16.msra.mxu0 0
        %748 = vmatprep.subr.bf16.mxu0 0
        %749 = vmatpush1.bf16.msra.mxu0 0
        %750 = vmatprep.subr.bf16.mxu0 0
        %751 = vmatpush1.bf16.msra.mxu0 0
        %752 = vmatprep.mubr.bf16.mxu0 0
        %753 = vmatmul.mubr.bf16.gmra.mrb[0].mxu0 %v715
        %v754 = vpop.f32.mrb[0].mxu0
        %v755 = vadd.f32 0.0, %v754
        %v756 = vpop.f32.mrb[0].mxu0
        %v757 = vpop.f32.mrb[0].mxu0
        %v758 = vpop.f32.mrb[0].mxu0
        %759 = vdwg.mxu0
        %v760 = vpack.c.bf16 %v755, %v755
        %s761 = scalar_lea.vmem %s5, 4
        %v762 = vld [vmem:[%s761] sm:$0xf]
        %v764 = vsel %vm540, %v760, 0
        %v767 = vsel %vm604, %v762, 0
        %769 = vmatprep.subr.bf16.mxu0 0
        %770 = vmatpush1.bf16.msra.mxu0 %v767
        %771 = vmatprep.subr.bf16.mxu0 0
        %772 = vmatpush1.bf16.msra.mxu0 0
        %773 = vmatprep.subr.bf16.mxu0 0
        %774 = vmatpush1.bf16.msra.mxu0 0
        %775 = vmatprep.subr.bf16.mxu0 0
        %776 = vmatpush1.bf16.msra.mxu0 0
        %777 = vmatprep.subr.bf16.mxu0 0
        %778 = vmatpush1.bf16.msra.mxu0 0
        %779 = vmatprep.subr.bf16.mxu0 0
        %780 = vmatpush1.bf16.msra.mxu0 0
        %781 = vmatprep.subr.bf16.mxu0 0
        %782 = vmatpush1.bf16.msra.mxu0 0
        %783 = vmatprep.subr.bf16.mxu0 0
        %784 = vmatpush1.bf16.msra.mxu0 0
        %785 = vmatprep.subr.bf16.mxu0 0
        %786 = vmatpush1.bf16.msra.mxu0 0
        %787 = vmatprep.subr.bf16.mxu0 0
        %788 = vmatpush1.bf16.msra.mxu0 0
        %789 = vmatprep.subr.bf16.mxu0 0
        %790 = vmatpush1.bf16.msra.mxu0 0
        %791 = vmatprep.subr.bf16.mxu0 0
        %792 = vmatpush1.bf16.msra.mxu0 0
        %793 = vmatprep.subr.bf16.mxu0 0
        %794 = vmatpush1.bf16.msra.mxu0 0
        %795 = vmatprep.subr.bf16.mxu0 0
        %796 = vmatpush1.bf16.msra.mxu0 0
        %797 = vmatprep.subr.bf16.mxu0 0
        %798 = vmatpush1.bf16.msra.mxu0 0
        %799 = vmatprep.subr.bf16.mxu0 0
        %800 = vmatpush1.bf16.msra.mxu0 0
        %801 = vmatprep.mubr.bf16.mxu0 0
        %802 = vmatmul.mubr.bf16.gmra.mrb[0].mxu0 %v764
        %v803 = vpop.f32.mrb[0].mxu0
        %v804 = vadd.f32 0.0, %v803
        %v805 = vpop.f32.mrb[0].mxu0
        %v806 = vpop.f32.mrb[0].mxu0
        %v807 = vpop.f32.mrb[0].mxu0
        %808 = vdwg.mxu0
        %v810 = vsel %vm540, %v648, 0
        %v813 = vsel %vm604, %v649, 0
        %815 = vmatprep.subr.bf16.mxu0 0
        %816 = vmatpush1.bf16.msra.mxu0 %v813
        %817 = vmatprep.subr.bf16.mxu0 0
        %818 = vmatpush1.bf16.msra.mxu0 0
        %819 = vmatprep.subr.bf16.mxu0 0
        %820 = vmatpush1.bf16.msra.mxu0 0
        %821 = vmatprep.subr.bf16.mxu0 0
        %822 = vmatpush1.bf16.msra.mxu0 0
        %823 = vmatprep.subr.bf16.mxu0 0
        %824 = vmatpush1.bf16.msra.mxu0 0
        %825 = vmatprep.subr.bf16.mxu0 0
        %826 = vmatpush1.bf16.msra.mxu0 0
        %827 = vmatprep.subr.bf16.mxu0 0
        %828 = vmatpush1.bf16.msra.mxu0 0
        %829 = vmatprep.subr.bf16.mxu0 0
        %830 = vmatpush1.bf16.msra.mxu0 0
        %831 = vmatprep.subr.bf16.mxu0 0
        %832 = vmatpush1.bf16.msra.mxu0 0
        %833 = vmatprep.subr.bf16.mxu0 0
        %834 = vmatpush1.bf16.msra.mxu0 0
        %835 = vmatprep.subr.bf16.mxu0 0
        %836 = vmatpush1.bf16.msra.mxu0 0
        %837 = vmatprep.subr.bf16.mxu0 0
        %838 = vmatpush1.bf16.msra.mxu0 0
        %839 = vmatprep.subr.bf16.mxu0 0
        %840 = vmatpush1.bf16.msra.mxu0 0
        %841 = vmatprep.subr.bf16.mxu0 0
        %842 = vmatpush1.bf16.msra.mxu0 0
        %843 = vmatprep.subr.bf16.mxu0 0
        %844 = vmatpush1.bf16.msra.mxu0 0
        %845 = vmatprep.subr.bf16.mxu0 0
        %846 = vmatpush1.bf16.msra.mxu0 0
        %847 = vmatprep.mubr.bf16.mxu0 0
        %848 = vmatmul.mubr.bf16.gmra.mrb[0].mxu0 %v810
        %v849 = vpop.f32.mrb[0].mxu0
        %v850 = vadd.f32 %v804, %v849
        %v851 = vpop.f32.mrb[0].mxu0
        %v852 = vpop.f32.mrb[0].mxu0
        %v853 = vpop.f32.mrb[0].mxu0
        %854 = vdwg.mxu0
        %855 = vrot.lane.b32.xlu0 %v536, 112
        %v856 = vpop.permute.xlu0 %855
        %857 = vrot.lane.b32.xlu0 %v536, 80
        %v858 = vpop.permute.xlu0 %857
        %v860 = vsel %vm540, %v856, 0
        %v863 = vsel %vm540, %v858, 0
        %865 = vmatprep.subr.bf16.mxu0 0
        %866 = vmatpush1.bf16.xpose.msra.mxu0 %v863
        %867 = vmatprep.subr.bf16.mxu0 0
        %868 = vmatpush1.bf16.xpose.msra.mxu0 0
        %869 = vmatprep.subr.bf16.mxu0 0
        %870 = vmatpush1.bf16.xpose.msra.mxu0 0
        %871 = vmatprep.subr.bf16.mxu0 0
        %872 = vmatpush1.bf16.xpose.msra.mxu0 0
        %873 = vmatprep.subr.bf16.mxu0 0
        %874 = vmatpush1.bf16.xpose.msra.mxu0 0
        %875 = vmatprep.subr.bf16.mxu0 0
        %876 = vmatpush1.bf16.xpose.msra.mxu0 0
        %877 = vmatprep.subr.bf16.mxu0 0
        %878 = vmatpush1.bf16.xpose.msra.mxu0 0
        %879 = vmatprep.subr.bf16.mxu0 0
        %880 = vmatpush1.bf16.xpose.msra.mxu0 0
        %881 = vmatprep.subr.bf16.mxu0 0
        %882 = vmatpush1.bf16.xpose.msra.mxu0 0
        %883 = vmatprep.subr.bf16.mxu0 0
        %884 = vmatpush1.bf16.xpose.msra.mxu0 0
        %885 = vmatprep.subr.bf16.mxu0 0
        %886 = vmatpush1.bf16.xpose.msra.mxu0 0
        %887 = vmatprep.subr.bf16.mxu0 0
        %888 = vmatpush1.bf16.xpose.msra.mxu0 0
        %889 = vmatprep.subr.bf16.mxu0 0
        %890 = vmatpush1.bf16.xpose.msra.mxu0 0
        %891 = vmatprep.subr.bf16.mxu0 0
        %892 = vmatpush1.bf16.xpose.msra.mxu0 0
        %893 = vmatprep.subr.bf16.mxu0 0
        %894 = vmatpush1.bf16.xpose.msra.mxu0 0
        %895 = vmatprep.subr.bf16.mxu0 0
        %896 = vmatpush1.bf16.xpose.msra.mxu0 0
        %897 = vmatprep.mubr.bf16.mxu0 0
        %898 = vmatmul.mubr.bf16.gmra.mrb[0].mxu0 %v860
        %v899 = vpop.f32.mrb[0].mxu0
        %v900 = vadd.f32 0.0, %v899
        %v901 = vpop.f32.mrb[0].mxu0
        %v902 = vpop.f32.mrb[0].mxu0
        %v903 = vpop.f32.mrb[0].mxu0
        %904 = vdwg.mxu0
        %v905 = vsel %vm540, %v900, -inf
        %906 = vmax.xlane.f32.xlu0 %v905
        %v907 = vpop.xlane.xlu0 %906
        %v908 = vsub.f32 %v900, %v907
        %v909 = vmul.f32 %v908, 1.442695
        %v910 = vpow.pop %v909
        %v911 = vsel %vm540, %v910, 0.0
        %912 = vadd.xlane.f32.xlu0 %v911
        %v913 = vpop.xlane.xlu0 %912
        %v914 = vrcp.pop %v913
        %v915 = vmul.f32 %v910, %v914
        %v916 = vpack.c.bf16 %v915, %v915
        %917 = vrot.lane.b32.xlu0 %v536, 48
        %v918 = vpop.permute.xlu0 %917
        %v920 = vsel %vm540, %v916, 0
        %v923 = vsel %vm604, %v918, 0
        %925 = vmatprep.subr.bf16.mxu0 0
        %926 = vmatpush1.bf16.msra.mxu0 %v923
        %927 = vmatprep.subr.bf16.mxu0 0
        %928 = vmatpush1.bf16.msra.mxu0 0
        %929 = vmatprep.subr.bf16.mxu0 0
        %930 = vmatpush1.bf16.msra.mxu0 0
        %931 = vmatprep.subr.bf16.mxu0 0
        %932 = vmatpush1.bf16.msra.mxu0 0
        %933 = vmatprep.subr.bf16.mxu0 0
        %934 = vmatpush1.bf16.msra.mxu0 0
        %935 = vmatprep.subr.bf16.mxu0 0
        %936 = vmatpush1.bf16.msra.mxu0 0
        %937 = vmatprep.subr.bf16.mxu0 0
        %938 = vmatpush1.bf16.msra.mxu0 0
        %939 = vmatprep.subr.bf16.mxu0 0
        %940 = vmatpush1.bf16.msra.mxu0 0
        %941 = vmatprep.subr.bf16.mxu0 0
        %942 = vmatpush1.bf16.msra.mxu0 0
        %943 = vmatprep.subr.bf16.mxu0 0
        %944 = vmatpush1.bf16.msra.mxu0 0
        %945 = vmatprep.subr.bf16.mxu0 0
        %946 = vmatpush1.bf16.msra.mxu0 0
        %947 = vmatprep.subr.bf16.mxu0 0
        %948 = vmatpush1.bf16.msra.mxu0 0
        %949 = vmatprep.subr.bf16.mxu0 0
        %950 = vmatpush1.bf16.msra.mxu0 0
        %951 = vmatprep.subr.bf16.mxu0 0
        %952 = vmatpush1.bf16.msra.mxu0 0
        %953 = vmatprep.subr.bf16.mxu0 0
        %954 = vmatpush1.bf16.msra.mxu0 0
        %955 = vmatprep.subr.bf16.mxu0 0
        %956 = vmatpush1.bf16.msra.mxu0 0
        %957 = vmatprep.mubr.bf16.mxu0 0
        %958 = vmatmul.mubr.bf16.gmra.mrb[0].mxu0 %v920
        %v959 = vpop.f32.mrb[0].mxu0
        %v960 = vadd.f32 0.0, %v959
        %v961 = vpop.f32.mrb[0].mxu0
        %v962 = vpop.f32.mrb[0].mxu0
        %v963 = vpop.f32.mrb[0].mxu0
        %964 = vdwg.mxu0
        %v965 = vpack.c.bf16 %v960, %v960
        %s966 = scalar_lea.vmem %s5, 8
        %v967 = vld [vmem:[%s966] sm:$0xf]
        %v969 = vsel %vm540, %v965, 0
        %v972 = vsel %vm604, %v967, 0
        %974 = vmatprep.subr.bf16.mxu0 0
        %975 = vmatpush1.bf16.msra.mxu0 %v972
        %976 = vmatprep.subr.bf16.mxu0 0
        %977 = vmatpush1.bf16.msra.mxu0 0
        %978 = vmatprep.subr.bf16.mxu0 0
        %979 = vmatpush1.bf16.msra.mxu0 0
        %980 = vmatprep.subr.bf16.mxu0 0
        %981 = vmatpush1.bf16.msra.mxu0 0
        %982 = vmatprep.subr.bf16.mxu0 0
        %983 = vmatpush1.bf16.msra.mxu0 0
        %984 = vmatprep.subr.bf16.mxu0 0
        %985 = vmatpush1.bf16.msra.mxu0 0
        %986 = vmatprep.subr.bf16.mxu0 0
        %987 = vmatpush1.bf16.msra.mxu0 0
        %988 = vmatprep.subr.bf16.mxu0 0
        %989 = vmatpush1.bf16.msra.mxu0 0
        %990 = vmatprep.subr.bf16.mxu0 0
        %991 = vmatpush1.bf16.msra.mxu0 0
        %992 = vmatprep.subr.bf16.mxu0 0
        %993 = vmatpush1.bf16.msra.mxu0 0
        %994 = vmatprep.subr.bf16.mxu0 0
        %995 = vmatpush1.bf16.msra.mxu0 0
        %996 = vmatprep.subr.bf16.mxu0 0
        %997 = vmatpush1.bf16.msra.mxu0 0
        %998 = vmatprep.subr.bf16.mxu0 0
        %999 = vmatpush1.bf16.msra.mxu0 0
        %1000 = vmatprep.subr.bf16.mxu0 0
        %1001 = vmatpush1.bf16.msra.mxu0 0
        %1002 = vmatprep.subr.bf16.mxu0 0
        %1003 = vmatpush1.bf16.msra.mxu0 0
        %1004 = vmatprep.subr.bf16.mxu0 0
        %1005 = vmatpush1.bf16.msra.mxu0 0
        %1006 = vmatprep.mubr.bf16.mxu0 0
        %1007 = vmatmul.mubr.bf16.gmra.mrb[0].mxu0 %v969
        %v1008 = vpop.f32.mrb[0].mxu0
        %v1009 = vadd.f32 0.0, %v1008
        %v1010 = vpop.f32.mrb[0].mxu0
        %v1011 = vpop.f32.mrb[0].mxu0
        %v1012 = vpop.f32.mrb[0].mxu0
        %1013 = vdwg.mxu0
        %v1014 = vadd.f32 %v850, %v1009
        %1015 = vrot.lane.b32.xlu0 %v536, 104
        %v1016 = vpop.permute.xlu0 %1015
        %1017 = vrot.lane.b32.xlu0 %v536, 72
        %v1018 = vpop.permute.xlu0 %1017
        %v1020 = vsel %vm540, %v1016, 0
        %v1023 = vsel %vm540, %v1018, 0
        %1025 = vmatprep.subr.bf16.mxu0 0
        %1026 = vmatpush1.bf16.xpose.msra.mxu0 %v1023
        %1027 = vmatprep.subr.bf16.mxu0 0
        %1028 = vmatpush1.bf16.xpose.msra.mxu0 0
        %1029 = vmatprep.subr.bf16.mxu0 0
        %1030 = vmatpush1.bf16.xpose.msra.mxu0 0
        %1031 = vmatprep.subr.bf16.mxu0 0
        %1032 = vmatpush1.bf16.xpose.msra.mxu0 0
        %1033 = vmatprep.subr.bf16.mxu0 0
        %1034 = vmatpush1.bf16.xpose.msra.mxu0 0
        %1035 = vmatprep.subr.bf16.mxu0 0
        %1036 = vmatpush1.bf16.xpose.msra.mxu0 0
        %1037 = vmatprep.subr.bf16.mxu0 0
        %1038 = vmatpush1.bf16.xpose.msra.mxu0 0
        %1039 = vmatprep.subr.bf16.mxu0 0
        %1040 = vmatpush1.bf16.xpose.msra.mxu0 0
        %1041 = vmatprep.subr.bf16.mxu0 0
        %1042 = vmatpush1.bf16.xpose.msra.mxu0 0
        %1043 = vmatprep.subr.bf16.mxu0 0
        %1044 = vmatpush1.bf16.xpose.msra.mxu0 0
        %1045 = vmatprep.subr.bf16.mxu0 0
        %1046 = vmatpush1.bf16.xpose.msra.mxu0 0
        %1047 = vmatprep.subr.bf16.mxu0 0
        %1048 = vmatpush1.bf16.xpose.msra.mxu0 0
        %1049 = vmatprep.subr.bf16.mxu0 0
        %1050 = vmatpush1.bf16.xpose.msra.mxu0 0
        %1051 = vmatprep.subr.bf16.mxu0 0
        %1052 = vmatpush1.bf16.xpose.msra.mxu0 0
        %1053 = vmatprep.subr.bf16.mxu0 0
        %1054 = vmatpush1.bf16.xpose.msra.mxu0 0
        %1055 = vmatprep.subr.bf16.mxu0 0
        %1056 = vmatpush1.bf16.xpose.msra.mxu0 0
        %1057 = vmatprep.mubr.bf16.mxu0 0
        %1058 = vmatmul.mubr.bf16.gmra.mrb[0].mxu0 %v1020
        %v1059 = vpop.f32.mrb[0].mxu0
        %v1060 = vadd.f32 0.0, %v1059
        %v1061 = vpop.f32.mrb[0].mxu0
        %v1062 = vpop.f32.mrb[0].mxu0
        %v1063 = vpop.f32.mrb[0].mxu0
        %1064 = vdwg.mxu0
        %v1065 = vsel %vm540, %v1060, -inf
        %1066 = vmax.xlane.f32.xlu0 %v1065
        %v1067 = vpop.xlane.xlu0 %1066
        %v1068 = vsub.f32 %v1060, %v1067
        %v1069 = vmul.f32 %v1068, 1.442695
        %v1070 = vpow.pop %v1069
        %v1071 = vsel %vm540, %v1070, 0.0
        %1072 = vadd.xlane.f32.xlu0 %v1071
        %v1073 = vpop.xlane.xlu0 %1072
        %v1074 = vrcp.pop %v1073
        %v1075 = vmul.f32 %v1070, %v1074
        %v1076 = vpack.c.bf16 %v1075, %v1075
        %1077 = vrot.lane.b32.xlu0 %v536, 40
        %v1078 = vpop.permute.xlu0 %1077
        %v1080 = vsel %vm540, %v1076, 0
        %v1083 = vsel %vm604, %v1078, 0
        %1085 = vmatprep.subr.bf16.mxu0 0
        %1086 = vmatpush1.bf16.msra.mxu0 %v1083
        %1087 = vmatprep.subr.bf16.mxu0 0
        %1088 = vmatpush1.bf16.msra.mxu0 0
        %1089 = vmatprep.subr.bf16.mxu0 0
        %1090 = vmatpush1.bf16.msra.mxu0 0
        %1091 = vmatprep.subr.bf16.mxu0 0
        %1092 = vmatpush1.bf16.msra.mxu0 0
        %1093 = vmatprep.subr.bf16.mxu0 0
        %1094 = vmatpush1.bf16.msra.mxu0 0
        %1095 = vmatprep.subr.bf16.mxu0 0
        %1096 = vmatpush1.bf16.msra.mxu0 0
        %1097 = vmatprep.subr.bf16.mxu0 0
        %1098 = vmatpush1.bf16.msra.mxu0 0
        %1099 = vmatprep.subr.bf16.mxu0 0
        %1100 = vmatpush1.bf16.msra.mxu0 0
        %1101 = vmatprep.subr.bf16.mxu0 0
        %1102 = vmatpush1.bf16.msra.mxu0 0
        %1103 = vmatprep.subr.bf16.mxu0 0
        %1104 = vmatpush1.bf16.msra.mxu0 0
        %1105 = vmatprep.subr.bf16.mxu0 0
        %1106 = vmatpush1.bf16.msra.mxu0 0
        %1107 = vmatprep.subr.bf16.mxu0 0
        %1108 = vmatpush1.bf16.msra.mxu0 0
        %1109 = vmatprep.subr.bf16.mxu0 0
        %1110 = vmatpush1.bf16.msra.mxu0 0
        %1111 = vmatprep.subr.bf16.mxu0 0
        %1112 = vmatpush1.bf16.msra.mxu0 0
        %1113 = vmatprep.subr.bf16.mxu0 0
        %1114 = vmatpush1.bf16.msra.mxu0 0
        %1115 = vmatprep.subr.bf16.mxu0 0
        %1116 = vmatpush1.bf16.msra.mxu0 0
        %1117 = vmatprep.mubr.bf16.mxu0 0
        %1118 = vmatmul.mubr.bf16.gmra.mrb[0].mxu0 %v1080
        %v1119 = vpop.f32.mrb[0].mxu0
        %v1120 = vadd.f32 0.0, %v1119
        %v1121 = vpop.f32.mrb[0].mxu0
        %v1122 = vpop.f32.mrb[0].mxu0
        %v1123 = vpop.f32.mrb[0].mxu0
        %1124 = vdwg.mxu0
        %v1125 = vpack.c.bf16 %v1120, %v1120
        %s1126 = scalar_lea.vmem %s5, 12
        %v1127 = vld [vmem:[%s1126] sm:$0xf]
        %v1129 = vsel %vm540, %v1125, 0
        %v1132 = vsel %vm604, %v1127, 0
        %1134 = vmatprep.subr.bf16.mxu0 0
        %1135 = vmatpush1.bf16.msra.mxu0 %v1132
        %1136 = vmatprep.subr.bf16.mxu0 0
        %1137 = vmatpush1.bf16.msra.mxu0 0
        %1138 = vmatprep.subr.bf16.mxu0 0
        %1139 = vmatpush1.bf16.msra.mxu0 0
        %1140 = vmatprep.subr.bf16.mxu0 0
        %1141 = vmatpush1.bf16.msra.mxu0 0
        %1142 = vmatprep.subr.bf16.mxu0 0
        %1143 = vmatpush1.bf16.msra.mxu0 0
        %1144 = vmatprep.subr.bf16.mxu0 0
        %1145 = vmatpush1.bf16.msra.mxu0 0
        %1146 = vmatprep.subr.bf16.mxu0 0
        %1147 = vmatpush1.bf16.msra.mxu0 0
        %1148 = vmatprep.subr.bf16.mxu0 0
        %1149 = vmatpush1.bf16.msra.mxu0 0
        %1150 = vmatprep.subr.bf16.mxu0 0
        %1151 = vmatpush1.bf16.msra.mxu0 0
        %1152 = vmatprep.subr.bf16.mxu0 0
        %1153 = vmatpush1.bf16.msra.mxu0 0
        %1154 = vmatprep.subr.bf16.mxu0 0
        %1155 = vmatpush1.bf16.msra.mxu0 0
        %1156 = vmatprep.subr.bf16.mxu0 0
        %1157 = vmatpush1.bf16.msra.mxu0 0
        %1158 = vmatprep.subr.bf16.mxu0 0
        %1159 = vmatpush1.bf16.msra.mxu0 0
        %1160 = vmatprep.subr.bf16.mxu0 0
        %1161 = vmatpush1.bf16.msra.mxu0 0
        %1162 = vmatprep.subr.bf16.mxu0 0
        %1163 = vmatpush1.bf16.msra.mxu0 0
        %1164 = vmatprep.subr.bf16.mxu0 0
        %1165 = vmatpush1.bf16.msra.mxu0 0
        %1166 = vmatprep.mubr.bf16.mxu0 0
        %1167 = vmatmul.mubr.bf16.gmra.mrb[0].mxu0 %v1129
        %v1168 = vpop.f32.mrb[0].mxu0
        %v1169 = vadd.f32 0.0, %v1168
        %v1170 = vpop.f32.mrb[0].mxu0
        %v1171 = vpop.f32.mrb[0].mxu0
        %v1172 = vpop.f32.mrb[0].mxu0
        %1173 = vdwg.mxu0
        %v1174 = vadd.f32 %v1014, %v1169
        %v1175 = vld [vmem:[%s6] sm:$0x1]
        %v1177 = vlaneseq
        %v1178 = vshrl.u32 %v1177, 7
        %v1179 = vsub.s32 0, %v1178
        %v1180 = vrot.slane %v1175, %v1179
        %v1182 = vadd.f32 %v1174, %v1180
        %v1183 = vadd.f32 %v437, %v1182
        %v1184 = vld [vmem:[%s7] sm:$0x1]
        %v1185 = vld [vmem:[%s8] sm:$0x1]
        %v1186 = vsel %vm440, %v1183, 0.0
        %1187 = vadd.xlane.f32.xlu0 %v1186
        %v1188 = vpop.xlane.xlu0 %1187
        %v1189 = vmul.f32 %v1188, %v444
        %v1190 = vsub.f32 %v1183, %v1189
        %v1191 = vmul.f32 %v1190, %v1190
        %v1192 = vsel %vm440, %v1191, 0.0
        %1193 = vadd.xlane.f32.xlu0 %v1192
        %v1194 = vpop.xlane.xlu0 %1193
        %v1195 = vmul.f32 %v1194, %v444
        %v1196 = vadd.f32 %v1195, 1e-05
        %v1197 = vrsqrt.pop %v1196
        %v1198 = vmul.f32 %v1190, %v1197
        %v1200 = vlaneseq
        %v1201 = vshrl.u32 %v1200, 7
        %v1202 = vsub.s32 0, %v1201
        %v1203 = vrot.slane %v1184, %v1202
        %v1205 = vmul.f32 %v1198, %v1203
        %v1207 = vlaneseq
        %v1208 = vshrl.u32 %v1207, 7
        %v1209 = vsub.s32 0, %v1208
        %v1210 = vrot.slane %v1185, %v1209
        %v1212 = vadd.f32 %v1205, %v1210
        %v1213 = vpack.c.bf16 %v1212, %v1212
        %v1214 = vld [vmem:[%s9] sm:$0xf]
        %v1215 = vld [vmem:[%s9 + $0x4] sm:$0xf]
        %v1216 = vld [vmem:[%s9 + $0x8] sm:$0xf]
        %v1217 = vld [vmem:[%s9 + $0xc] sm:$0xf]
        %v1218 = vld [vmem:[%s10] sm:$0x1]
        %v1220 = vlaneseq
        %v1221 = vshrl.u32 %v1220, 7
        %v1222 = vsub.s32 0, %v1221
        %v1223 = vrot.slane %v1218, %v1222
        %v1229 = vunpack.c.l.b16 %v1214
        %v1230 = vunpack.c.l.b16 %v1215
        %v1231 = vunpack.c.l.b16 %v1216
        %v1232 = vunpack.c.l.b16 %v1217
        %v1233 = vpack.c.b16 %v1230, %v1229
        %v1234 = vpack.c.b16 %v1232, %v1231
        %v1238 = vsel %vm440, %v1213, 0
        %1240 = vmatprep.subr.bf16.mxu0 0
        %1241 = vmatpush1.bf16.msra.mxu0 %v1233
        %1242 = vmatprep.subr.bf16.mxu0 0
        %1243 = vmatpush1.bf16.msra.mxu0 %v1234
        %1244 = vmatprep.subr.bf16.mxu0 0
        %1245 = vmatpush1.bf16.msra.mxu0 0
        %1246 = vmatprep.subr.bf16.mxu0 0
        %1247 = vmatpush1.bf16.msra.mxu0 0
        %1248 = vmatprep.subr.bf16.mxu0 0
        %1249 = vmatpush1.bf16.msra.mxu0 0
        %1250 = vmatprep.subr.bf16.mxu0 0
        %1251 = vmatpush1.bf16.msra.mxu0 0
        %1252 = vmatprep.subr.bf16.mxu0 0
        %1253 = vmatpush1.bf16.msra.mxu0 0
        %1254 = vmatprep.subr.bf16.mxu0 0
        %1255 = vmatpush1.bf16.msra.mxu0 0
        %1256 = vmatprep.subr.bf16.mxu0 0
        %1257 = vmatpush1.bf16.msra.mxu0 0
        %1258 = vmatprep.subr.bf16.mxu0 0
        %1259 = vmatpush1.bf16.msra.mxu0 0
        %1260 = vmatprep.subr.bf16.mxu0 0
        %1261 = vmatpush1.bf16.msra.mxu0 0
        %1262 = vmatprep.subr.bf16.mxu0 0
        %1263 = vmatpush1.bf16.msra.mxu0 0
        %1264 = vmatprep.subr.bf16.mxu0 0
        %1265 = vmatpush1.bf16.msra.mxu0 0
        %1266 = vmatprep.subr.bf16.mxu0 0
        %1267 = vmatpush1.bf16.msra.mxu0 0
        %1268 = vmatprep.subr.bf16.mxu0 0
        %1269 = vmatpush1.bf16.msra.mxu0 0
        %1270 = vmatprep.subr.bf16.mxu0 0
        %1271 = vmatpush1.bf16.msra.mxu0 0
        %1272 = vmatprep.mubr.bf16.mxu0 0
        %1273 = vmatmul.mubr.bf16.gmra.mrb[0].mxu0 %v1238
        %v1274 = vpop.f32.mrb[0].mxu0
        %v1275 = vadd.f32 %v1223, %v1274
        %v1276 = vpop.f32.mrb[0].mxu0
        %v1277 = vpop.f32.mrb[0].mxu0
        %v1278 = vpop.f32.mrb[0].mxu0
        %1279 = vdwg.mxu0
        %v1280 = vmul.f32 %v1275, 1.702
        %v1281 = vxor.u32 %v1280, 2147483648
        %v1282 = vmul.f32 %v1281, 1.442695
        %v1283 = vpow.pop %v1282
        %v1284 = vadd.f32 %v1283, 1.0
        %v1285 = vrcp.pop %v1284
        %v1286 = vmul.f32 1.0, %v1285
        %v1287 = vmul.f32 %v1275, %v1286
        %v1288 = vpack.c.bf16 %v1287, %v1287
        %v1289 = vld [vmem:[%s11] sm:$0xf]
        %v1290 = vld [vmem:[%s11 + $0x4] sm:$0xf]
        %v1291 = vld [vmem:[%s11 + $0x8] sm:$0xf]
        %v1292 = vld [vmem:[%s11 + $0xc] sm:$0xf]
        %v1293 = vld [vmem:[%s11 + $0x10] sm:$0xf]
        %v1294 = vld [vmem:[%s11 + $0x14] sm:$0xf]
        %v1295 = vld [vmem:[%s11 + $0x18] sm:$0xf]
        %v1296 = vld [vmem:[%s11 + $0x1c] sm:$0xf]
        %v1297 = vld [vmem:[%s11 + $0x20] sm:$0xf]
        %v1298 = vld [vmem:[%s11 + $0x24] sm:$0xf]
        %v1299 = vld [vmem:[%s11 + $0x28] sm:$0xf]
        %v1300 = vld [vmem:[%s11 + $0x2c] sm:$0xf]
        %v1301 = vld [vmem:[%s11 + $0x30] sm:$0xf]
        %v1302 = vld [vmem:[%s11 + $0x34] sm:$0xf]
        %v1303 = vld [vmem:[%s11 + $0x38] sm:$0xf]
        %v1304 = vld [vmem:[%s11 + $0x3c] sm:$0xf]
        %v1305 = vld [vmem:[%s12] sm:$0x1]
        %v1307 = vlaneseq
        %v1308 = vshrl.u32 %v1307, 7
        %v1309 = vsub.s32 0, %v1308
        %v1310 = vrot.slane %v1305, %v1309
        %v1328 = vunpack.c.l.b16 %v1289
        %v1329 = vunpack.c.l.b16 %v1290
        %v1330 = vunpack.c.l.b16 %v1291
        %v1331 = vunpack.c.l.b16 %v1292
        %v1332 = vunpack.c.l.b16 %v1293
        %v1333 = vunpack.c.l.b16 %v1294
        %v1334 = vunpack.c.l.b16 %v1295
        %v1335 = vunpack.c.l.b16 %v1296
        %v1336 = vunpack.c.l.b16 %v1297
        %v1337 = vunpack.c.l.b16 %v1298
        %v1338 = vunpack.c.l.b16 %v1299
        %v1339 = vunpack.c.l.b16 %v1300
        %v1340 = vunpack.c.l.b16 %v1301
        %v1341 = vunpack.c.l.b16 %v1302
        %v1342 = vunpack.c.l.b16 %v1303
        %v1343 = vunpack.c.l.b16 %v1304
        %v1344 = vpack.c.b16 %v1329, %v1328
        %v1345 = vpack.c.b16 %v1331, %v1330
        %v1346 = vpack.c.b16 %v1333, %v1332
        %v1347 = vpack.c.b16 %v1335, %v1334
        %v1348 = vpack.c.b16 %v1337, %v1336
        %v1349 = vpack.c.b16 %v1339, %v1338
        %v1350 = vpack.c.b16 %v1341, %v1340
        %v1351 = vpack.c.b16 %v1343, %v1342
        %1360 = vmatprep.subr.bf16.mxu0 0
        %1361 = vmatpush1.bf16.msra.mxu0 %v1344
        %1362 = vmatprep.subr.bf16.mxu0 0
        %1363 = vmatpush1.bf16.msra.mxu0 %v1345
        %1364 = vmatprep.subr.bf16.mxu0 0
        %1365 = vmatpush1.bf16.msra.mxu0 %v1346
        %1366 = vmatprep.subr.bf16.mxu0 0
        %1367 = vmatpush1.bf16.msra.mxu0 %v1347
        %1368 = vmatprep.subr.bf16.mxu0 0
        %1369 = vmatpush1.bf16.msra.mxu0 %v1348
        %1370 = vmatprep.subr.bf16.mxu0 0
        %1371 = vmatpush1.bf16.msra.mxu0 %v1349
        %1372 = vmatprep.subr.bf16.mxu0 0
        %1373 = vmatpush1.bf16.msra.mxu0 %v1350
        %1374 = vmatprep.subr.bf16.mxu0 0
        %1375 = vmatpush1.bf16.msra.mxu0 %v1351
        %1376 = vmatprep.subr.bf16.mxu0 0
        %1377 = vmatpush1.bf16.msra.mxu0 0
        %1378 = vmatprep.subr.bf16.mxu0 0
        %1379 = vmatpush1.bf16.msra.mxu0 0
        %1380 = vmatprep.subr.bf16.mxu0 0
        %1381 = vmatpush1.bf16.msra.mxu0 0
        %1382 = vmatprep.subr.bf16.mxu0 0
        %1383 = vmatpush1.bf16.msra.mxu0 0
        %1384 = vmatprep.subr.bf16.mxu0 0
        %1385 = vmatpush1.bf16.msra.mxu0 0
        %1386 = vmatprep.subr.bf16.mxu0 0
        %1387 = vmatpush1.bf16.msra.mxu0 0
        %1388 = vmatprep.subr.bf16.mxu0 0
        %1389 = vmatpush1.bf16.msra.mxu0 0
        %1390 = vmatprep.subr.bf16.mxu0 0
        %1391 = vmatpush1.bf16.msra.mxu0 0
        %1392 = vmatprep.mubr.bf16.mxu0 0
        %1393 = vmatmul.mubr.bf16.gmra.mrb[0].mxu0 %v1288
        %v1394 = vpop.f32.mrb[0].mxu0
        %v1395 = vadd.f32 %v1310, %v1394
        %v1396 = vpop.f32.mrb[0].mxu0
        %v1397 = vpop.f32.mrb[0].mxu0
        %v1398 = vpop.f32.mrb[0].mxu0
        %1399 = vdwg.mxu0
        %v1400 = vadd.f32 %v1183, %v1395
        %1401 = vst.msk [vmem:[%s431] sm:$0xff] %vm440, %v1400
        %s1402 = sand.u32 %s313, 1
        %s1403 = scalar_lea.sflag [#allocation3], %s1402
        %s1404 = sand.u32 %s313, 1
        %s1405 = smul.addr %s1404, 8
        %s1406 = scalar_lea.vmem [#allocation2], %s1405
        // Predicated region
        $region73: #{tpu_custom_call.1} parent=71 // pred_check
          %p1407 = pneg %p323
        $region74: #{tpu_custom_call.1} parent=71 // pred_check_branch
          %1409 = sbr.rel (%p1407) target = $region76
        $region75: #{tpu_custom_call.1} parent=71 // pred_region
          %s1411 = ssub.s32 128, 128
          %1412 = vsyncadd %s1403, %s1411
          %s1413 = smul.addr %s27, 128
          %s1414 = scalar_lea.hbm %s13, %s1413
          %s1416 = sshll.u32 %s1406, 4
          %s1417 = int_to_ptr.vmem [resolvable:$true] %s1416
          %1419 = dma.vmem_to_hbm [thread:$0]  %s1417, 128, %s1414, %s1403
        $region76: #{tpu_custom_call.1} parent=71 // pred_fallthru
          _
      $region72: #{tpu_custom_call.1} parent=5 // pred_fallthru
        _
      %p1420 = scmp.le.s32.totalorder 2, %s22
      // Predicated region
      $region77: #{tpu_custom_call.1} parent=5 // pred_check
        %p1421 = pneg %p1420
      $region78: #{tpu_custom_call.1} parent=5 // pred_check_branch
        %1423 = sbr.rel (%p1421) target = $region80
      $region79: #{tpu_custom_call.1} parent=5 // pred_region
        %s1424 = ssub.s32 %s22, 2
        // Predicated region
        $region81: #{tpu_custom_call.1} parent=79 // pred_check
          %p1425 = pneg %p329
        $region82: #{tpu_custom_call.1} parent=79 // pred_check_branch
          %1427 = sbr.rel (%p1425) target = $region84
        $region83: #{tpu_custom_call.1} parent=79 // pred_region
          %s1428 = sand.u32 %s314, 1
          %s1429 = scalar_lea.sflag [#allocation3], %s1428
          %s1430 = sand.u32 %s314, 1
          %s1431 = smul.addr %s1430, 8
          %s1432 = scalar_lea.vmem [#allocation2], %s1431
          %1433 = dma.done %s1429, 128
        $region84: #{tpu_custom_call.1} parent=79 // pred_fallthru
          _
      $region80: #{tpu_custom_call.1} parent=5 // pred_fallthru
        _
    $region6: #{tpu_custom_call.1} parent=1 // loop_footer
      %s26 = sadd.s32 1, %s22
    $region7: #{tpu_custom_call.1} parent=1 // loop_footer_branch
      %21 = sbr.rel target = $region3
    $region8: #{tpu_custom_call.1} parent=1 // loop_exit
      _
    %1434 = vsyncpa [#allocation3], 1
    %s1435 = scalar_lea.sflag [#allocation3], 1
    %1436 = vsyncpa %s1435, 1

</llo_original>
